<compile_context>
chip_gen: v7x
topology: tpu7x:2x2x1
jax: 0.10.0
libtpu: 0.0.40
codegen_flags: <defaults>
</compile_context>

<pallas_src>
import functools

import jax
import jax.numpy as jnp
from jax.experimental import pallas as pl
from jax.experimental.pallas import tpu as pltpu


def _attn_pre_kernel(x_ref, lap_ref, win_ref, bin_ref, aqkv_ref,
                     wout_ref, bout_ref, o_ref, *, na):
    """One batch-tile of the Attention_preprocessor forward.

    x_ref    : (TB*na, I)   bf16  per-agent inputs (row = (batch, agent))
    lap_ref  : (TB*na, 1)   f32   soft-Laplacian weight per (batch, agent) row
    win/bin  : (I, H) bf16, (1, H) f32      mlp_in
    aqkv_ref : (H, 3H) f32                  [Aq^T | Ak^T | Av^T] fused projection
    wout/bout: (H, O) bf16, (1, O) f32      mlp_out
    o_ref    : (TB, O)      f32   per-batch-element agent-mean output
    """
    rows, _ = x_ref.shape
    hid = win_ref.shape[1]
    out_dim = wout_ref.shape[1]
    tb = rows // na
    f32, bf16 = jnp.float32, jnp.bfloat16

    lap = lap_ref[...]                                              # (rows, 1)

    # --- mlp_in: Linear + SiLU, Laplacian soft mask (bf16 MXU operands, f32 accum) ---
    h = jnp.dot(x_ref[...], win_ref[...],
                preferred_element_type=f32) + bin_ref[...]
    h = h * jax.nn.sigmoid(h)                                       # SiLU (f32)
    h = h * lap                                                     # (rows, H)

    # --- fused Q/K/V projection: one (rows, 3H) matmul + one SiLU (f32 for accuracy) ---
    qkv = jnp.dot(h, aqkv_ref[...], preferred_element_type=f32)     # (rows, 3H)
    qkv = qkv * jax.nn.sigmoid(qkv)
    qkv = qkv.reshape(tb, na, 3 * hid)
    qt = qkv[:, :, :hid]            # rows of Q^T  -> Q[b] = qt[b].T   (tb, na, H)
    kt = qkv[:, :, hid:2 * hid]     # rows of K    (torch already transposes K)
    vt = qkv[:, :, 2 * hid:]        # rows of V^T  -> V[b] = vt[b].T

    # --- attention scores S = Q @ K : contract over the agent axis directly (no swapaxes) ---
    s = jnp.einsum('bni,bnk->bik', qt, kt, preferred_element_type=f32)   # (tb, H, H)
    s = s - jnp.max(s, axis=-1, keepdims=True)
    e = jnp.exp(s)
    inv = pl.reciprocal(jnp.sum(e, axis=-1, keepdims=True), approx=True)  # EUP, tiny
    attn = e * inv

    # --- x2 = SiLU((attn @ V)^T) : (tb, na, H) ---
    z = jnp.einsum('bnk,bik->bni', vt, attn, preferred_element_type=f32)
    x2 = z * jax.nn.sigmoid(z)

    # --- mlp_out: Linear + SiLU, mask, mean over agents ---
    y = jnp.dot(x2.reshape(rows, hid).astype(bf16), wout_ref[...],
                preferred_element_type=f32) + bout_ref[...]
    y = y * jax.nn.sigmoid(y)
    y = (y * lap).reshape(tb, na, out_dim)
    # Output volume per step is only tb*O f32 (a few KB): the masked partial store
    # from O < 128 lanes is negligible vs. the streamed-activation DMA traffic.
    o_ref[...] = jnp.mean(y, axis=1).astype(o_ref.dtype)


def _pick_batch_tile(B, block_b):
    """Largest tile <= block_b that divides B and keeps the (8,128) sublane rule."""
    tb = min(block_b, B)
    while tb > 1 and not (B % tb == 0 and (tb % 8 == 0 or tb == B)):
        tb -= 1
    if not (B % tb == 0 and (tb % 8 == 0 or tb == B)):
        tb = B
    return tb


def attention_preprocessor_forward(x, lap, params, *, block_b=128):
    """x: (B, na, input_dim); lap: (B, 1, na). Returns (B // na, na, output_dim)."""
    B, na, input_dim = x.shape
    (win, bin_), aq, ak, av, (wout, bout) = params
    hidden_dim = win.shape[1]
    output_dim = wout.shape[1]

    if B % na != 0:
        raise ValueError("batch must be divisible by n_agents (final torch reshape).")

    tb = _pick_batch_tile(B, block_b)
    rows = tb * na

    # Layout glue stays in XLA: flatten (batch, agent) rows; one-time casts / transposes.
    x2d = x.reshape(B * na, input_dim).astype(jnp.bfloat16)          # halves streamed DMA
    lap_col = lap.reshape(B * na, 1).astype(jnp.float32)
    win_b = win.astype(jnp.bfloat16)
    wout_b = wout.astype(jnp.bfloat16)
    # Fused QKV weight [Aq^T | Ak^T | Av^T] in f32 (softmax logits stay accurate).
    aqkv = jnp.concatenate([aq.T, ak.T, av.T], axis=1).astype(jnp.float32)  # (H, 3H)

    const2 = lambda i: (0, 0)

    out2d = pl.pallas_call(
        functools.partial(_attn_pre_kernel, na=na),
        out_shape=jax.ShapeDtypeStruct((B, output_dim), jnp.float32),
        grid_spec=pltpu.PrefetchScalarGridSpec(
            num_scalar_prefetch=0,
            grid=(B // tb,),
            in_specs=[
                pl.BlockSpec((rows, input_dim), lambda i: (i, 0)),    # activations: streamed
                pl.BlockSpec((rows, 1), lambda i: (i, 0)),            # laplacian mask: streamed
                pl.BlockSpec((input_dim, hidden_dim), const2),        # weights: VMEM-resident
                pl.BlockSpec((1, hidden_dim), const2),
                pl.BlockSpec((hidden_dim, 3 * hidden_dim), const2),   # fused Q/K/V
                pl.BlockSpec((hidden_dim, output_dim), const2),
                pl.BlockSpec((1, output_dim), const2),
            ],
            out_specs=pl.BlockSpec((tb, output_dim), lambda i: (i, 0)),
        ),
        compiler_params=pltpu.CompilerParams(
            dimension_semantics=("parallel",),           # lets v7x split the batch grid
            vmem_limit_bytes=64 * 1024 * 1024),           # headroom for large batch tiles
    )(x2d, lap_col, win_b, bin_, aqkv, wout_b, bout)

    # torch: (...).mean(dim=1).reshape(-1, na, output_dim)  (mean already done in-kernel)
    return out2d.reshape(B // na, na, output_dim)


def init_params(key, input_dim, hidden_dim, output_dim):
    """PyTorch-style init: Linear W/b ~ U(+-1/sqrt(fan_in)); Aq/Ak/Av ~ N(0,1).

    Linear weights are stored transposed, i.e. (in_features, out_features)."""
    ks = jax.random.split(key, 7)

    def linear(kw, kb, fan_in, fan_out):
        bound = 1.0 / (fan_in ** 0.5)
        w = jax.random.uniform(kw, (fan_in, fan_out), jnp.float32, -bound, bound)
        b = jax.random.uniform(kb, (1, fan_out), jnp.float32, -bound, bound)
        return w, b

    win, bin_ = linear(ks[0], ks[1], input_dim, hidden_dim)          # mlp_in
    wout, bout = linear(ks[2], ks[3], hidden_dim, output_dim)        # mlp_out
    aq = jax.random.normal(ks[4], (hidden_dim, hidden_dim), jnp.float32)
    ak = jax.random.normal(ks[5], (hidden_dim, hidden_dim), jnp.float32)
    av = jax.random.normal(ks[6], (hidden_dim, hidden_dim), jnp.float32)
    # NOTE: the torch module also declares Bq_4/Bk_4/Bv_4 but never uses them in forward.
    return (win, bin_), aq, ak, av, (wout, bout)


def soft_laplacian(q_agents, r_communication):
    """JAX port of robotarium `laplacian`: (B, na, 2) positions -> (B, na, na)."""
    diff = q_agents[:, :, None, :] - q_agents[:, None, :, :]
    dist = jnp.sqrt(jnp.sum(diff * diff, axis=-1))
    return (dist <= r_communication).astype(jnp.float32) * jax.nn.sigmoid(
        -2.0 * (dist - r_communication))


def reference_forward(x, lap, params):
    """Pure-JAX (f32) transcription of Attention_preprocessor.forward for checking."""
    B, na, input_dim = x.shape
    (win, bin_), aq, ak, av, (wout, bout) = params
    hidden_dim = win.shape[1]
    output_dim = wout.shape[1]
    lap2 = lap.reshape(B, na)

    h = jax.nn.silu(x.reshape(B * na, input_dim) @ win + bin_).reshape(B, na, hidden_dim)
    h = h * lap2[:, :, None]

    q = jax.nn.silu(jnp.einsum('ij,bnj->bin', aq, h))                # (B, H, na)
    k = jax.nn.silu(jnp.einsum('ij,bnj->bin', ak, h))                # (B, H, na); torch K = k^T
    v = jax.nn.silu(jnp.einsum('ij,bnj->bin', av, h))                # (B, H, na)

    s = jnp.einsum('bhn,bnk->bhk', q, jnp.swapaxes(k, 1, 2))         # (B, H, H)
    attn = jax.nn.softmax(s, axis=-1)
    z = jnp.einsum('bhk,bkn->bhn', attn, v)                          # (B, H, na)
    x2 = jax.nn.silu(jnp.swapaxes(z, 1, 2))                          # (B, na, H)

    y = jax.nn.silu(x2.reshape(B * na, hidden_dim) @ wout + bout).reshape(B, na, output_dim)
    y = y * lap2[:, :, None]
    return y.mean(axis=1).reshape(B // na, na, output_dim)


if __name__ == "__main__":
    # Small config consistent with the module: na agents, per-agent feature dims.
    na, input_dim, hidden_dim, output_dim = 8, 24, 32, 16
    batch = 32                       # divisible by na (final reshape) and by the tile

    key = jax.random.PRNGKey(0)
    key, kx, kq = jax.random.split(key, 3)
    x = jax.random.normal(kx, (batch, na, input_dim), jnp.float32)

    # Soft-Laplacian connectivity row, as the torch forward's kron/broadcast expects.
    q_agents = jax.random.uniform(kq, (batch, na, 2), jnp.float32)
    lap = soft_laplacian(q_agents, r_communication=0.6)[:, 0:1, :]   # (B, 1, na)

    params = init_params(key, input_dim, hidden_dim, output_dim)

    # block_b=16 keeps the (parallel) grid length at 2 for this tiny demo batch;
    # production sizes use the default block_b=128 (rows ~ 1k per step).
    out = attention_preprocessor_forward(x, lap, params, block_b=16)
    out = jax.block_until_ready(out)

    ref = reference_forward(x, lap, params)
    assert out.shape == (batch // na, na, output_dim), out.shape
    # bf16 x / Win / Wout MXU operands (f32 accumulation) -> loosened tolerance.
    assert jnp.allclose(out, ref, atol=5e-2, rtol=5e-2), float(jnp.max(jnp.abs(out - ref)))

    print("KERNEL_OK")
</pallas_src>

<mosaic_0001>
module attributes {stable_mosaic.version = 11 : i64} {
  func.func @_attn_pre_kernel(%arg0: i32, %arg1: memref<128x24xbf16, #tpu.memory_space<vmem>>, %arg2: memref<128x1xf32, #tpu.memory_space<vmem>>, %arg3: memref<24x32xbf16, #tpu.memory_space<vmem>>, %arg4: memref<1x32xf32, #tpu.memory_space<vmem>>, %arg5: memref<32x96xf32, #tpu.memory_space<vmem>>, %arg6: memref<32x16xbf16, #tpu.memory_space<vmem>>, %arg7: memref<1x16xf32, #tpu.memory_space<vmem>>, %arg8: memref<16x16xf32, #tpu.memory_space<vmem>>) attributes {dimension_semantics = [#tpu.dimension_semantics<parallel>], iteration_bounds = array<i64: 2>, scalar_prefetch = 0 : i64, scratch_operands = 0 : i64, tpu.core_type = #tpu.core_type<tc>, window_params = [{transform_indices = @transform_0, window_bounds = array<i64: 128, 24>}, {transform_indices = @transform_1, window_bounds = array<i64: 128, 1>}, {pipeline_mode = #tpu.pipeline_mode<synchronous>, transform_indices = @transform_2, window_bounds = array<i64: 24, 32>}, {pipeline_mode = #tpu.pipeline_mode<synchronous>, transform_indices = @transform_3, window_bounds = array<i64: 1, 32>}, {pipeline_mode = #tpu.pipeline_mode<synchronous>, transform_indices = @transform_4, window_bounds = array<i64: 32, 96>}, {pipeline_mode = #tpu.pipeline_mode<synchronous>, transform_indices = @transform_5, window_bounds = array<i64: 32, 16>}, {pipeline_mode = #tpu.pipeline_mode<synchronous>, transform_indices = @transform_6, window_bounds = array<i64: 1, 16>}, {transform_indices = @transform_7, window_bounds = array<i64: 16, 16>}]} {
    %c0 = arith.constant 0 : index
    %c0_0 = arith.constant 0 : index
    %0 = vector.load %arg2[%c0, %c0_0] : memref<128x1xf32, #tpu.memory_space<vmem>>, vector<128x1xf32>
    %c0_1 = arith.constant 0 : index
    %c0_2 = arith.constant 0 : index
    %1 = vector.load %arg1[%c0_1, %c0_2] : memref<128x24xbf16, #tpu.memory_space<vmem>>, vector<128x24xbf16>
    %c0_3 = arith.constant 0 : index
    %c0_4 = arith.constant 0 : index
    %2 = vector.load %arg3[%c0_3, %c0_4] : memref<24x32xbf16, #tpu.memory_space<vmem>>, vector<24x32xbf16>
    %cst = arith.constant dense<0.000000e+00> : vector<128x32xf32>
    %3 = tpu.matmul %1, %2, %cst {dimension_numbers = #tpu.dot_dimension_numbers<[1], [0], [0], [1], [0, 0, 1, 1], [], []>} : vector<128x24xbf16>, vector<24x32xbf16>, vector<128x32xf32> -> vector<128x32xf32>
    %c0_5 = arith.constant 0 : index
    %c0_6 = arith.constant 0 : index
    %4 = vector.load %arg4[%c0_5, %c0_6] : memref<1x32xf32, #tpu.memory_space<vmem>>, vector<1x32xf32>
    %5 = vector.broadcast %4 : vector<1x32xf32> to vector<128x32xf32>
    %6 = arith.addf %3, %5 : vector<128x32xf32>
    %7 = arith.negf %6 : vector<128x32xf32>
    %8 = math.exp %7 : vector<128x32xf32>
    %cst_7 = arith.constant 1.000000e+00 : f32
    %9 = vector.broadcast %cst_7 : f32 to vector<128x32xf32>
    %10 = arith.addf %9, %8 : vector<128x32xf32>
    %11 = arith.divf %9, %10 : vector<128x32xf32>
    %12 = arith.mulf %6, %11 : vector<128x32xf32>
    %13 = vector.broadcast %0 : vector<128x1xf32> to vector<128x32xf32>
    %14 = arith.mulf %12, %13 : vector<128x32xf32>
    %c0_8 = arith.constant 0 : index
    %c0_9 = arith.constant 0 : index
    %15 = vector.load %arg5[%c0_8, %c0_9] : memref<32x96xf32, #tpu.memory_space<vmem>>, vector<32x96xf32>
    %cst_10 = arith.constant dense<0.000000e+00> : vector<128x96xf32>
    %16 = tpu.matmul %14, %15, %cst_10 {dimension_numbers = #tpu.dot_dimension_numbers<[1], [0], [0], [1], [0, 0, 1, 1], [], []>} : vector<128x32xf32>, vector<32x96xf32>, vector<128x96xf32> -> vector<128x96xf32>
    %17 = arith.negf %16 : vector<128x96xf32>
    %18 = math.exp %17 : vector<128x96xf32>
    %cst_11 = arith.constant 1.000000e+00 : f32
    %19 = vector.broadcast %cst_11 : f32 to vector<128x96xf32>
    %20 = arith.addf %19, %18 : vector<128x96xf32>
    %21 = arith.divf %19, %20 : vector<128x96xf32>
    %22 = arith.mulf %16, %21 : vector<128x96xf32>
    %23 = vector.shape_cast %22 : vector<128x96xf32> to vector<16x8x96xf32>
    %24 = vector.extract_strided_slice %23 {offsets = [0, 0, 0], sizes = [16, 8, 32], strides = [1, 1, 1]} : vector<16x8x96xf32> to vector<16x8x32xf32>
    %25 = vector.extract_strided_slice %23 {offsets = [0, 0, 32], sizes = [16, 8, 32], strides = [1, 1, 1]} : vector<16x8x96xf32> to vector<16x8x32xf32>
    %26 = vector.extract_strided_slice %23 {offsets = [0, 0, 64], sizes = [16, 8, 32], strides = [1, 1, 1]} : vector<16x8x96xf32> to vector<16x8x32xf32>
    "tpu.trace_start"() <{level = 10 : i32, message = "bni,bnk->bik"}> : () -> ()
    %cst_12 = arith.constant dense<0.000000e+00> : vector<16x32x32xf32>
    %27 = tpu.matmul %24, %25, %cst_12 {dimension_numbers = #tpu.dot_dimension_numbers<[1], [1], [2], [2], [0, 0, 0, 2, 1, 2], [0], [0]>} : vector<16x8x32xf32>, vector<16x8x32xf32>, vector<16x32x32xf32> -> vector<16x32x32xf32>
    "tpu.trace_stop"() : () -> ()
    %cst_13 = arith.constant dense<0xFF800000> : vector<16x32xf32>
    %28 = vector.multi_reduction <maximumf>, %27, %cst_13 [2] : vector<16x32x32xf32> to vector<16x32xf32>
    %29 = vector.shape_cast %28 : vector<16x32xf32> to vector<16x32x1xf32>
    %30 = vector.broadcast %29 : vector<16x32x1xf32> to vector<16x32x32xf32>
    %31 = arith.subf %27, %30 : vector<16x32x32xf32>
    %32 = math.exp %31 : vector<16x32x32xf32>
    %cst_14 = arith.constant dense<0.000000e+00> : vector<16x32xf32>
    %33 = vector.multi_reduction <add>, %32, %cst_14 [2] : vector<16x32x32xf32> to vector<16x32xf32>
    %34 = vector.shape_cast %33 : vector<16x32xf32> to vector<16x32x1xf32>
    %35 = tpu.reciprocal %34 {approx = true} : vector<16x32x1xf32> -> vector<16x32x1xf32>
    %36 = vector.broadcast %35 : vector<16x32x1xf32> to vector<16x32x32xf32>
    %37 = arith.mulf %32, %36 : vector<16x32x32xf32>
    "tpu.trace_start"() <{level = 10 : i32, message = "bnk,bik->bni"}> : () -> ()
    %cst_15 = arith.constant dense<0.000000e+00> : vector<16x8x32xf32>
    %38 = tpu.matmul %26, %37, %cst_15 {dimension_numbers = #tpu.dot_dimension_numbers<[2], [2], [1], [1], [0, 0, 0, 1, 1, 1], [0], [0]>} : vector<16x8x32xf32>, vector<16x32x32xf32>, vector<16x8x32xf32> -> vector<16x8x32xf32>
    "tpu.trace_stop"() : () -> ()
    %39 = arith.negf %38 : vector<16x8x32xf32>
    %40 = math.exp %39 : vector<16x8x32xf32>
    %cst_16 = arith.constant 1.000000e+00 : f32
    %41 = vector.broadcast %cst_16 : f32 to vector<16x8x32xf32>
    %42 = arith.addf %41, %40 : vector<16x8x32xf32>
    %43 = arith.divf %41, %42 : vector<16x8x32xf32>
    %44 = arith.mulf %38, %43 : vector<16x8x32xf32>
    %45 = vector.shape_cast %44 : vector<16x8x32xf32> to vector<128x32xf32>
    %46 = arith.truncf %45 : vector<128x32xf32> to vector<128x32xbf16>
    %c0_17 = arith.constant 0 : index
    %c0_18 = arith.constant 0 : index
    %47 = vector.load %arg6[%c0_17, %c0_18] : memref<32x16xbf16, #tpu.memory_space<vmem>>, vector<32x16xbf16>
    %cst_19 = arith.constant dense<0.000000e+00> : vector<128x16xf32>
    %48 = tpu.matmul %46, %47, %cst_19 {dimension_numbers = #tpu.dot_dimension_numbers<[1], [0], [0], [1], [0, 0, 1, 1], [], []>} : vector<128x32xbf16>, vector<32x16xbf16>, vector<128x16xf32> -> vector<128x16xf32>
    %c0_20 = arith.constant 0 : index
    %c0_21 = arith.constant 0 : index
    %49 = vector.load %arg7[%c0_20, %c0_21] : memref<1x16xf32, #tpu.memory_space<vmem>>, vector<1x16xf32>
    %50 = vector.broadcast %49 : vector<1x16xf32> to vector<128x16xf32>
    %51 = arith.addf %48, %50 : vector<128x16xf32>
    %52 = arith.negf %51 : vector<128x16xf32>
    %53 = math.exp %52 : vector<128x16xf32>
    %cst_22 = arith.constant 1.000000e+00 : f32
    %54 = vector.broadcast %cst_22 : f32 to vector<128x16xf32>
    %55 = arith.addf %54, %53 : vector<128x16xf32>
    %56 = arith.divf %54, %55 : vector<128x16xf32>
    %57 = arith.mulf %51, %56 : vector<128x16xf32>
    %58 = vector.broadcast %0 : vector<128x1xf32> to vector<128x16xf32>
    %59 = arith.mulf %57, %58 : vector<128x16xf32>
    %60 = vector.shape_cast %59 : vector<128x16xf32> to vector<16x8x16xf32>
    %cst_23 = arith.constant dense<0.000000e+00> : vector<16x16xf32>
    %61 = vector.multi_reduction <add>, %60, %cst_23 [1] : vector<16x8x16xf32> to vector<16x16xf32>
    %cst_24 = arith.constant 8.000000e+00 : f32
    %62 = vector.broadcast %cst_24 : f32 to vector<16x16xf32>
    %63 = arith.divf %61, %62 : vector<16x16xf32>
    %c0_25 = arith.constant 0 : index
    %c0_26 = arith.constant 0 : index
    %64 = vector.load %arg8[%c0_25, %c0_26] : memref<16x16xf32, #tpu.memory_space<vmem>>, vector<16x16xf32>
    tpu.vector_store %arg8[%c0_25, %c0_26], %63 {strides = array<i32>} : memref<16x16xf32, #tpu.memory_space<vmem>>, vector<16x16xf32>,
    return
  }
  func.func @transform_0(%arg0: i32) -> (i32, i32) {
    %c0_i32 = arith.constant 0 : i32
    %c0_i32_0 = arith.constant 0 : i32
    return %arg0, %c0_i32 : i32, i32
  }
  func.func @transform_1(%arg0: i32) -> (i32, i32) {
    %c0_i32 = arith.constant 0 : i32
    %c0_i32_0 = arith.constant 0 : i32
    return %arg0, %c0_i32 : i32, i32
  }
  func.func @transform_2(%arg0: i32) -> (i32, i32) {
    %c0_i32 = arith.constant 0 : i32
    %c0_i32_0 = arith.constant 0 : i32
    %c0_i32_1 = arith.constant 0 : i32
    return %c0_i32, %c0_i32_0 : i32, i32
  }
  func.func @transform_3(%arg0: i32) -> (i32, i32) {
    %c0_i32 = arith.constant 0 : i32
    %c0_i32_0 = arith.constant 0 : i32
    %c0_i32_1 = arith.constant 0 : i32
    return %c0_i32, %c0_i32_0 : i32, i32
  }
  func.func @transform_4(%arg0: i32) -> (i32, i32) {
    %c0_i32 = arith.constant 0 : i32
    %c0_i32_0 = arith.constant 0 : i32
    %c0_i32_1 = arith.constant 0 : i32
    return %c0_i32, %c0_i32_0 : i32, i32
  }
  func.func @transform_5(%arg0: i32) -> (i32, i32) {
    %c0_i32 = arith.constant 0 : i32
    %c0_i32_0 = arith.constant 0 : i32
    %c0_i32_1 = arith.constant 0 : i32
    return %c0_i32, %c0_i32_0 : i32, i32
  }
  func.func @transform_6(%arg0: i32) -> (i32, i32) {
    %c0_i32 = arith.constant 0 : i32
    %c0_i32_0 = arith.constant 0 : i32
    %c0_i32_1 = arith.constant 0 : i32
    return %c0_i32, %c0_i32_0 : i32, i32
  }
  func.func @transform_7(%arg0: i32) -> (i32, i32) {
    %c0_i32 = arith.constant 0 : i32
    %c0_i32_0 = arith.constant 0 : i32
    return %arg0, %c0_i32 : i32, i32
  }
}

</mosaic_0001>

<llo_original>
// kernel: tpu_custom_call.1
$region0: #{tpu_custom_call.1}
  #allocation0 [shape = 'u32[]', space=smem, size = 0x4, offset = 0x4, fixed_abs, tag = 'smem constant byte address 0x4 - core index']
  #allocation1 [shape = 'u32[144,128]{1,0:T(1,128)}', space=vmem, size = 0x12000, scoped, tag = 'internal scratch']
  %s0 = inlined_call_operand.hbm [shape: bf16[256,24], index: 0, kind: input, shape index: {}]
  %s1 = inlined_call_operand.hbm [shape: f32[256,1], index: 1, kind: input, shape index: {}]
  %s2 = inlined_call_operand.hbm [shape: bf16[24,32], index: 2, kind: input, shape index: {}]
  %s3 = inlined_call_operand.hbm [shape: f32[1,32], index: 3, kind: input, shape index: {}]
  %s4 = inlined_call_operand.hbm [shape: f32[32,96], index: 4, kind: input, shape index: {}]
  %s5 = inlined_call_operand.hbm [shape: bf16[32,16], index: 5, kind: input, shape index: {}]
  %s6 = inlined_call_operand.hbm [shape: f32[1,16], index: 6, kind: input, shape index: {}]
  %s7 = inlined_call_operand.hbm [shape: f32[32,16], index: 7, kind: output, shape index: {}]
  %s8 = sld [smem:[#allocation0]]
  $region89: #{tpu_custom_call.1} parent=0
    _
  %s10 = ssub.s32 1, %s8
  %s11 = scalar_select 0, %s10, %s8
  $region1: #{tpu_custom_call.1} parent=0
    #allocation2 [shape = 'u8[65536]{0}', space=vmem, size = 0x10000, scoped, tag = 'input window, operand 0']
    #allocation3 [shape = 's32[2]{0}', space=sflag, size = 0x8, scoped, tag = 'scoped memory for tpu_custom_call.1']
    #allocation4 [shape = 's32[2]{0}', space=sflag, size = 0x8, scoped, tag = 'scoped memory for tpu_custom_call.1']
    #allocation5 [shape = 'u8[131072]{0}', space=vmem, size = 0x20000, scoped, tag = 'input window, operand 1']
    #allocation6 [shape = 's32[2]{0}', space=sflag, size = 0x8, scoped, tag = 'scoped memory for tpu_custom_call.1']
    #allocation7 [shape = 'u8[6144]{0}', space=vmem, size = 0x1800, scoped, tag = 'input window, operand 2, single buffered']
    #allocation8 [shape = 'u8[512]{0}', space=vmem, size = 0x400, scoped, tag = 'input window, operand 3, single buffered']
    #allocation9 [shape = 's32[1]{0}', space=sflag, size = 0x4, scoped, tag = 'scoped memory for tpu_custom_call.1']
    #allocation10 [shape = 'u8[16384]{0}', space=vmem, size = 0x4000, scoped, tag = 'input window, operand 4, single buffered']
    #allocation11 [shape = 'u8[8192]{0}', space=vmem, size = 0x2000, scoped, tag = 'input window, operand 5, single buffered']
    #allocation12 [shape = 's32[1]{0}', space=sflag, size = 0x4, scoped, tag = 'scoped memory for tpu_custom_call.1']
    #allocation13 [shape = 'u8[512]{0}', space=vmem, size = 0x400, scoped, tag = 'input window, operand 6, single buffered']
    #allocation14 [shape = 'u8[16384]{0}', space=vmem, size = 0x4000, scoped, tag = 'output window, operand 0']
    %12 = vsyncpa [#allocation3], 0
    %s13 = scalar_lea.sflag [#allocation3], 1
    %14 = vsyncpa %s13, 0
    %15 = vsyncpa [#allocation6], 0
    %s16 = scalar_lea.sflag [#allocation6], 1
    %17 = vsyncpa %s16, 0
    %18 = vsyncpa [#allocation9], 0
    %19 = vsyncpa [#allocation12], 0
    %20 = vsyncpa [#allocation4], 0
    %s21 = scalar_lea.sflag [#allocation4], 1
    %22 = vsyncpa %s21, 0
    loop: start=0, step=1, limit=4
    $region2: #{tpu_custom_call.1} parent=1 // loop_pre_header
      _
    $region3: #{tpu_custom_call.1} parent=1 // loop_header
      %s24 = sphi 0, %s28
      %p25 = scmp.ge.s32.totalorder %s24, 4
      %s34 = sphi 0, %s36
      %s37 = sphi 0, %s34
      %s38 = sphi 0, %s37
      %s54 = sphi 0, %s38
      %s60 = sphi 0, %s62
      %s63 = sphi 0, %s60
      %s64 = sphi 0, %s63
      %s80 = sphi 0, %s64
      %s84 = sphi 0, %s84
      %s86 = sphi 0, %s84
      %s87 = sphi 0, %s86
      %s101 = sphi 0, %s87
      %s105 = sphi 0, %s105
      %s107 = sphi 0, %s105
      %s108 = sphi 0, %s107
      %s122 = sphi 0, %s108
      %s126 = sphi 0, %s126
      %s128 = sphi 0, %s126
      %s129 = sphi 0, %s128
      %s143 = sphi 0, %s129
      %s147 = sphi 0, %s147
      %s149 = sphi 0, %s147
      %s150 = sphi 0, %s149
      %s164 = sphi 0, %s150
      %s168 = sphi 0, %s168
      %s170 = sphi 0, %s168
      %s171 = sphi 0, %s170
      %s185 = sphi 0, %s171
      %s191 = sphi 0, %s193
      %s194 = sphi 0, %s191
      %s195 = sphi 0, %s194
      %s211 = sphi 0, %s195
    $region4: #{tpu_custom_call.1} parent=1 // loop_header_branch
      %27 = sbr.rel (%p25) target = $region8
    $region5: #{tpu_custom_call.1} parent=1 // loop_body
      %s29 = ssub.s32 %s24, 1
      %s30 = ssub.s32 %s24, 2
      %s31 = sadd.s32 %s24, 1
      %s32 = ssub.s32 %s24, %s31
      %p33 = scmp.eq.s32.totalorder %s32, 0
      %s35 = sadd.s32 %s34, 1
      %s36 = scalar_select %p33, %s34, %s35
      %p39 = pneg %p33
      %p40 = scmp.eq.s32.totalorder %s24, 1
      %p41 = por %p39, %p40
      %p42 = scmp.ne.s32.totalorder %s34, %s37
      %p43 = scmp.eq.s32.totalorder %s24, 0
      %p44 = por %p42, %p43
      %p45 = scmp.ne.s32.totalorder %s34, %s37
      %p46 = scmp.eq.s32.totalorder %s29, 1
      %p47 = por %p45, %p46
      %p48 = scmp.ne.s32.totalorder %s37, %s38
      %p49 = scmp.eq.s32.totalorder %s29, 0
      %p50 = por %p48, %p49
      %p51 = scmp.ne.s32.totalorder %s37, %s38
      %p52 = scmp.eq.s32.totalorder %s30, 1
      %p53 = por %p51, %p52
      %p55 = scmp.ne.s32.totalorder %s38, %s54
      %p56 = scmp.eq.s32.totalorder %s30, 0
      %p57 = por %p55, %p56
      %s58 = ssub.s32 %s24, %s31
      %p59 = scmp.eq.s32.totalorder %s58, 0
      %s61 = sadd.s32 %s60, 1
      %s62 = scalar_select %p59, %s60, %s61
      %p65 = pneg %p59
      %p66 = scmp.eq.s32.totalorder %s24, 1
      %p67 = por %p65, %p66
      %p68 = scmp.ne.s32.totalorder %s60, %s63
      %p69 = scmp.eq.s32.totalorder %s24, 0
      %p70 = por %p68, %p69
      %p71 = scmp.ne.s32.totalorder %s60, %s63
      %p72 = scmp.eq.s32.totalorder %s29, 1
      %p73 = por %p71, %p72
      %p74 = scmp.ne.s32.totalorder %s63, %s64
      %p75 = scmp.eq.s32.totalorder %s29, 0
      %p76 = por %p74, %p75
      %p77 = scmp.ne.s32.totalorder %s63, %s64
      %p78 = scmp.eq.s32.totalorder %s30, 1
      %p79 = por %p77, %p78
      %p81 = scmp.ne.s32.totalorder %s64, %s80
      %p82 = scmp.eq.s32.totalorder %s30, 0
      %p83 = por %p81, %p82
      %s85 = sadd.s32 %s84, 1
      %p88 = scmp.eq.s32.totalorder %s24, 1
      %p89 = scmp.ne.s32.totalorder %s84, %s86
      %p90 = scmp.eq.s32.totalorder %s24, 0
      %p91 = por %p89, %p90
      %p92 = scmp.ne.s32.totalorder %s84, %s86
      %p93 = scmp.eq.s32.totalorder %s29, 1
      %p94 = por %p92, %p93
      %p95 = scmp.ne.s32.totalorder %s86, %s87
      %p96 = scmp.eq.s32.totalorder %s29, 0
      %p97 = por %p95, %p96
      %p98 = scmp.ne.s32.totalorder %s86, %s87
      %p99 = scmp.eq.s32.totalorder %s30, 1
      %p100 = por %p98, %p99
      %p102 = scmp.ne.s32.totalorder %s87, %s101
      %p103 = scmp.eq.s32.totalorder %s30, 0
      %p104 = por %p102, %p103
      %s106 = sadd.s32 %s105, 1
      %p109 = scmp.eq.s32.totalorder %s24, 1
      %p110 = scmp.ne.s32.totalorder %s105, %s107
      %p111 = scmp.eq.s32.totalorder %s24, 0
      %p112 = por %p110, %p111
      %p113 = scmp.ne.s32.totalorder %s105, %s107
      %p114 = scmp.eq.s32.totalorder %s29, 1
      %p115 = por %p113, %p114
      %p116 = scmp.ne.s32.totalorder %s107, %s108
      %p117 = scmp.eq.s32.totalorder %s29, 0
      %p118 = por %p116, %p117
      %p119 = scmp.ne.s32.totalorder %s107, %s108
      %p120 = scmp.eq.s32.totalorder %s30, 1
      %p121 = por %p119, %p120
      %p123 = scmp.ne.s32.totalorder %s108, %s122
      %p124 = scmp.eq.s32.totalorder %s30, 0
      %p125 = por %p123, %p124
      %s127 = sadd.s32 %s126, 1
      %p130 = scmp.eq.s32.totalorder %s24, 1
      %p131 = scmp.ne.s32.totalorder %s126, %s128
      %p132 = scmp.eq.s32.totalorder %s24, 0
      %p133 = por %p131, %p132
      %p134 = scmp.ne.s32.totalorder %s126, %s128
      %p135 = scmp.eq.s32.totalorder %s29, 1
      %p136 = por %p134, %p135
      %p137 = scmp.ne.s32.totalorder %s128, %s129
      %p138 = scmp.eq.s32.totalorder %s29, 0
      %p139 = por %p137, %p138
      %p140 = scmp.ne.s32.totalorder %s128, %s129
      %p141 = scmp.eq.s32.totalorder %s30, 1
      %p142 = por %p140, %p141
      %p144 = scmp.ne.s32.totalorder %s129, %s143
      %p145 = scmp.eq.s32.totalorder %s30, 0
      %p146 = por %p144, %p145
      %s148 = sadd.s32 %s147, 1
      %p151 = scmp.eq.s32.totalorder %s24, 1
      %p152 = scmp.ne.s32.totalorder %s147, %s149
      %p153 = scmp.eq.s32.totalorder %s24, 0
      %p154 = por %p152, %p153
      %p155 = scmp.ne.s32.totalorder %s147, %s149
      %p156 = scmp.eq.s32.totalorder %s29, 1
      %p157 = por %p155, %p156
      %p158 = scmp.ne.s32.totalorder %s149, %s150
      %p159 = scmp.eq.s32.totalorder %s29, 0
      %p160 = por %p158, %p159
      %p161 = scmp.ne.s32.totalorder %s149, %s150
      %p162 = scmp.eq.s32.totalorder %s30, 1
      %p163 = por %p161, %p162
      %p165 = scmp.ne.s32.totalorder %s150, %s164
      %p166 = scmp.eq.s32.totalorder %s30, 0
      %p167 = por %p165, %p166
      %s169 = sadd.s32 %s168, 1
      %p172 = scmp.eq.s32.totalorder %s24, 1
      %p173 = scmp.ne.s32.totalorder %s168, %s170
      %p174 = scmp.eq.s32.totalorder %s24, 0
      %p175 = por %p173, %p174
      %p176 = scmp.ne.s32.totalorder %s168, %s170
      %p177 = scmp.eq.s32.totalorder %s29, 1
      %p178 = por %p176, %p177
      %p179 = scmp.ne.s32.totalorder %s170, %s171
      %p180 = scmp.eq.s32.totalorder %s29, 0
      %p181 = por %p179, %p180
      %p182 = scmp.ne.s32.totalorder %s170, %s171
      %p183 = scmp.eq.s32.totalorder %s30, 1
      %p184 = por %p182, %p183
      %p186 = scmp.ne.s32.totalorder %s171, %s185
      %p187 = scmp.eq.s32.totalorder %s30, 0
      %p188 = por %p186, %p187
      %s189 = ssub.s32 %s24, %s31
      %p190 = scmp.eq.s32.totalorder %s189, 0
      %s192 = sadd.s32 %s191, 1
      %s193 = scalar_select %p190, %s191, %s192
      %p196 = pneg %p190
      %p197 = scmp.eq.s32.totalorder %s24, 1
      %p198 = por %p196, %p197
      %p199 = scmp.ne.s32.totalorder %s191, %s194
      %p200 = scmp.eq.s32.totalorder %s24, 0
      %p201 = por %p199, %p200
      %p202 = scmp.ne.s32.totalorder %s191, %s194
      %p203 = scmp.eq.s32.totalorder %s29, 1
      %p204 = por %p202, %p203
      %p205 = scmp.ne.s32.totalorder %s194, %s195
      %p206 = scmp.eq.s32.totalorder %s29, 0
      %p207 = por %p205, %p206
      %p208 = scmp.ne.s32.totalorder %s194, %s195
      %p209 = scmp.eq.s32.totalorder %s30, 1
      %p210 = por %p208, %p209
      %p212 = scmp.ne.s32.totalorder %s195, %s211
      %p213 = scmp.eq.s32.totalorder %s30, 0
      %p214 = por %p212, %p213
      %p215 = scmp.le.s32.totalorder 1, %s24
      %p216 = scmp.lt.s32.totalorder %s24, 3
      %p217 = pnand %p215, %p216
      %p218 = pneg %p217
      // Predicated region
      $region9: #{tpu_custom_call.1} parent=5 // pred_check
        _
      $region10: #{tpu_custom_call.1} parent=5 // pred_check_branch
        %220 = sbr.rel (%p217) target = $region12
      $region11: #{tpu_custom_call.1} parent=5 // pred_region
        %s221 = ssub.s32 %s24, 1
        // Predicated region
        $region13: #{tpu_custom_call.1} parent=11 // pred_check
          %p222 = pneg %p97
        $region14: #{tpu_custom_call.1} parent=11 // pred_check_branch
          %224 = sbr.rel (%p222) target = $region16
        $region15: #{tpu_custom_call.1} parent=11 // pred_region
          %s226 = ssub.s32 192, 192
          %227 = vsyncadd [#allocation6], %s226
          %s228 = sshll.u32 [#allocation7], 4
          %s229 = int_to_ptr.vmem [resolvable:$true] %s228
          %234 = dma.hbm_to_vmem [thread:$0]  %s2, 192, %s229, [#allocation6], 64, 64, 4
        $region16: #{tpu_custom_call.1} parent=11 // pred_fallthru
          _
        // Predicated region
        $region17: #{tpu_custom_call.1} parent=11 // pred_check
          %p235 = pneg %p118
        $region18: #{tpu_custom_call.1} parent=11 // pred_check_branch
          %237 = sbr.rel (%p235) target = $region20
        $region19: #{tpu_custom_call.1} parent=11 // pred_region
          %s239 = ssub.s32 16, 16
          %240 = vsyncadd [#allocation9], %s239
          %s242 = sshll.u32 [#allocation8], 4
          %s243 = int_to_ptr.vmem [resolvable:$true] %s242
          %245 = dma.hbm_to_vmem [thread:$0]  %s3, 16, %s243, [#allocation9]
        $region20: #{tpu_custom_call.1} parent=11 // pred_fallthru
          _
        // Predicated region
        $region21: #{tpu_custom_call.1} parent=11 // pred_check
          %p246 = pneg %p139
        $region22: #{tpu_custom_call.1} parent=11 // pred_check_branch
          %248 = sbr.rel (%p246) target = $region24
        $region23: #{tpu_custom_call.1} parent=11 // pred_region
          %s250 = ssub.s32 512, 512
          %251 = vsyncadd [#allocation9], %s250
          %s252 = sshll.u32 [#allocation10], 4
          %s253 = int_to_ptr.vmem [resolvable:$true] %s252
          %258 = dma.hbm_to_vmem [thread:$0]  %s4, 512, %s253, [#allocation9], 128, 128, 8
        $region24: #{tpu_custom_call.1} parent=11 // pred_fallthru
          _
        // Predicated region
        $region25: #{tpu_custom_call.1} parent=11 // pred_check
          %p259 = pneg %p160
        $region26: #{tpu_custom_call.1} parent=11 // pred_check_branch
          %261 = sbr.rel (%p259) target = $region28
        $region27: #{tpu_custom_call.1} parent=11 // pred_region
          %s263 = ssub.s32 256, 256
          %264 = vsyncadd [#allocation12], %s263
          %s265 = sshll.u32 [#allocation11], 4
          %s266 = int_to_ptr.vmem [resolvable:$true] %s265
          %271 = dma.hbm_to_vmem [thread:$0]  %s5, 256, %s266, [#allocation12], 64, 64, 4
        $region28: #{tpu_custom_call.1} parent=11 // pred_fallthru
          _
        // Predicated region
        $region29: #{tpu_custom_call.1} parent=11 // pred_check
          %p272 = pneg %p181
        $region30: #{tpu_custom_call.1} parent=11 // pred_check_branch
          %274 = sbr.rel (%p272) target = $region32
        $region31: #{tpu_custom_call.1} parent=11 // pred_region
          %s276 = ssub.s32 16, 16
          %277 = vsyncadd [#allocation12], %s276
          %s279 = sshll.u32 [#allocation13], 4
          %s280 = int_to_ptr.vmem [resolvable:$true] %s279
          %282 = dma.hbm_to_vmem [thread:$0]  %s6, 16, %s280, [#allocation12]
        $region32: #{tpu_custom_call.1} parent=11 // pred_fallthru
          _
      $region12: #{tpu_custom_call.1} parent=5 // pred_fallthru
        _
      %p283 = scmp.lt.s32.totalorder %s24, 2
      // Predicated region
      $region33: #{tpu_custom_call.1} parent=5 // pred_check
        %p284 = pneg %p283
      $region34: #{tpu_custom_call.1} parent=5 // pred_check_branch
        %286 = sbr.rel (%p284) target = $region36
      $region35: #{tpu_custom_call.1} parent=5 // pred_region
        // Predicated region
        $region37: #{tpu_custom_call.1} parent=35 // pred_check
          %p287 = pneg %p44
        $region38: #{tpu_custom_call.1} parent=35 // pred_check_branch
          %289 = sbr.rel (%p287) target = $region40
        $region39: #{tpu_custom_call.1} parent=35 // pred_region
          %s290 = sand.u32 %s34, 1
          %s291 = scalar_lea.sflag [#allocation3], %s290
          %s292 = sand.u32 %s34, 1
          %s293 = smul.addr %s292, 64
          %s294 = scalar_lea.vmem [#allocation2], %s293
          %s295 = smul.u32 16, %s24
          %s297 = ssub.s32 1024, 1024
          %298 = vsyncadd %s291, %s297
          %s299 = smul.addr %s295, 64
          %s300 = scalar_lea.hbm %s0, %s299
          %s301 = sshll.u32 %s294, 4
          %s302 = int_to_ptr.vmem [resolvable:$true] %s301
          %307 = dma.hbm_to_vmem [thread:$0]  %s300, 1024, %s302, %s291, 64, 64, 4
        $region40: #{tpu_custom_call.1} parent=35 // pred_fallthru
          _
        // Predicated region
        $region41: #{tpu_custom_call.1} parent=35 // pred_check
          %p308 = pneg %p70
        $region42: #{tpu_custom_call.1} parent=35 // pred_check_branch
          %310 = sbr.rel (%p308) target = $region44
        $region43: #{tpu_custom_call.1} parent=35 // pred_region
          %s311 = sand.u32 %s24, 1
          %s312 = scalar_lea.sflag [#allocation6], %s311
          %s313 = sand.u32 %s60, 1
          %s314 = smul.addr %s313, 128
          %s315 = scalar_lea.vmem [#allocation5], %s314
          %s316 = smul.u32 16, %s24
          %s318 = ssub.s32 2048, 2048
          %319 = vsyncadd %s312, %s318
          %s320 = smul.addr %s316, 128
          %s321 = scalar_lea.hbm %s1, %s320
          %s322 = sshll.u32 %s315, 4
          %s323 = int_to_ptr.vmem [resolvable:$true] %s322
          %328 = dma.hbm_to_vmem [thread:$0]  %s321, 2048, %s323, %s312, 128, 128, 8
        $region44: #{tpu_custom_call.1} parent=35 // pred_fallthru
          _
      $region36: #{tpu_custom_call.1} parent=5 // pred_fallthru
        _
      %p329 = scmp.le.s32.totalorder 1, %s24
      %p330 = scmp.lt.s32.totalorder %s24, 3
      %p331 = pnand %p329, %p330
      %p332 = pneg %p331
      // Predicated region
      $region45: #{tpu_custom_call.1} parent=5 // pred_check
        _
      $region46: #{tpu_custom_call.1} parent=5 // pred_check_branch
        %334 = sbr.rel (%p331) target = $region48
      $region47: #{tpu_custom_call.1} parent=5 // pred_region
        %s335 = ssub.s32 %s24, 1
        %s336 = sand.u32 %s37, 1
        %s337 = scalar_lea.sflag [#allocation3], %s336
        %s338 = sand.u32 %s37, 1
        %s339 = smul.addr %s338, 64
        %s340 = scalar_lea.vmem [#allocation2], %s339
        // Predicated region
        $region49: #{tpu_custom_call.1} parent=47 // pred_check
          %p341 = pneg %p50
        $region50: #{tpu_custom_call.1} parent=47 // pred_check_branch
          %343 = sbr.rel (%p341) target = $region52
        $region51: #{tpu_custom_call.1} parent=47 // pred_region
          %344 = dma.done %s337, 1024
        $region52: #{tpu_custom_call.1} parent=47 // pred_fallthru
          _
        %s345 = sand.u32 %s29, 1
        %s346 = scalar_lea.sflag [#allocation6], %s345
        %s347 = sand.u32 %s63, 1
        %s348 = smul.addr %s347, 128
        %s349 = scalar_lea.vmem [#allocation5], %s348
        // Predicated region
        $region53: #{tpu_custom_call.1} parent=47 // pred_check
          %p350 = pneg %p76
        $region54: #{tpu_custom_call.1} parent=47 // pred_check_branch
          %352 = sbr.rel (%p350) target = $region56
        $region55: #{tpu_custom_call.1} parent=47 // pred_region
          %353 = dma.done %s346, 2048
        $region56: #{tpu_custom_call.1} parent=47 // pred_fallthru
          _
        // Predicated region
        $region57: #{tpu_custom_call.1} parent=47 // pred_check
          %p354 = pneg %p97
        $region58: #{tpu_custom_call.1} parent=47 // pred_check_branch
          %356 = sbr.rel (%p354) target = $region60
        $region59: #{tpu_custom_call.1} parent=47 // pred_region
          %357 = dma.done [#allocation6], 192
        $region60: #{tpu_custom_call.1} parent=47 // pred_fallthru
          _
        // Predicated region
        $region61: #{tpu_custom_call.1} parent=47 // pred_check
          %p358 = pneg %p118
        $region62: #{tpu_custom_call.1} parent=47 // pred_check_branch
          %360 = sbr.rel (%p358) target = $region64
        $region63: #{tpu_custom_call.1} parent=47 // pred_region
          %361 = dma.done [#allocation9], 16
        $region64: #{tpu_custom_call.1} parent=47 // pred_fallthru
          _
        // Predicated region
        $region65: #{tpu_custom_call.1} parent=47 // pred_check
          %p362 = pneg %p139
        $region66: #{tpu_custom_call.1} parent=47 // pred_check_branch
          %364 = sbr.rel (%p362) target = $region68
        $region67: #{tpu_custom_call.1} parent=47 // pred_region
          %365 = dma.done [#allocation9], 512
        $region68: #{tpu_custom_call.1} parent=47 // pred_fallthru
          _
        // Predicated region
        $region69: #{tpu_custom_call.1} parent=47 // pred_check
          %p366 = pneg %p160
        $region70: #{tpu_custom_call.1} parent=47 // pred_check_branch
          %368 = sbr.rel (%p366) target = $region72
        $region71: #{tpu_custom_call.1} parent=47 // pred_region
          %369 = dma.done [#allocation12], 256
        $region72: #{tpu_custom_call.1} parent=47 // pred_fallthru
          _
        // Predicated region
        $region73: #{tpu_custom_call.1} parent=47 // pred_check
          %p370 = pneg %p181
        $region74: #{tpu_custom_call.1} parent=47 // pred_check_branch
          %372 = sbr.rel (%p370) target = $region76
        $region75: #{tpu_custom_call.1} parent=47 // pred_region
          %373 = dma.done [#allocation12], 16
        $region76: #{tpu_custom_call.1} parent=47 // pred_fallthru
          _
        %s374 = sand.u32 %s37, 1
        %s375 = scalar_lea.sflag [#allocation3], %s374
        %s376 = sand.u32 %s37, 1
        %s377 = smul.addr %s376, 64
        %s378 = scalar_lea.vmem [#allocation2], %s377
        %p379 = pneg %p50
        %p380 = pneg %p47
        %s381 = sand.u32 %s29, 1
        %s382 = scalar_lea.sflag [#allocation6], %s381
        %s383 = sand.u32 %s63, 1
        %s384 = smul.addr %s383, 128
        %s385 = scalar_lea.vmem [#allocation5], %s384
        %p386 = pneg %p76
        %p387 = pneg %p73
        %p388 = pneg %p97
        %p389 = pneg %p94
        %p390 = pneg %p118
        %p391 = pneg %p115
        %p392 = pneg %p139
        %p393 = pneg %p136
        %p394 = pneg %p160
        %p395 = pneg %p157
        %p396 = pneg %p181
        %p397 = pneg %p178
        %p398 = pneg %p207
        %p399 = pneg %p204
        %s400 = sand.u32 %s194, 1
        %s401 = scalar_lea.sflag [#allocation4], %s400
        %s402 = sand.u32 %s194, 1
        %s403 = smul.addr %s402, 16
        %s404 = scalar_lea.vmem [#allocation14], %s403
        %s405 = smul.u32 16, %s29
        %s406 = smul.u32 16, %s29
        %s407 = smul.u32 2, %s29
        %v409 = vld [vmem:[%s349] sm:$0xff]
        %v410 = vld [vmem:[%s349 + $0x8] sm:$0xff]
        %v411 = vld [vmem:[%s349 + $0x10] sm:$0xff]
        %v412 = vld [vmem:[%s349 + $0x18] sm:$0xff]
        %v413 = vld [vmem:[%s349 + $0x20] sm:$0xff]
        %v414 = vld [vmem:[%s349 + $0x28] sm:$0xff]
        %v415 = vld [vmem:[%s349 + $0x30] sm:$0xff]
        %v416 = vld [vmem:[%s349 + $0x38] sm:$0xff]
        %v417 = vld [vmem:[%s349 + $0x40] sm:$0xff]
        %v418 = vld [vmem:[%s349 + $0x48] sm:$0xff]
        %v419 = vld [vmem:[%s349 + $0x50] sm:$0xff]
        %v420 = vld [vmem:[%s349 + $0x58] sm:$0xff]
        %v421 = vld [vmem:[%s349 + $0x60] sm:$0xff]
        %v422 = vld [vmem:[%s349 + $0x68] sm:$0xff]
        %v423 = vld [vmem:[%s349 + $0x70] sm:$0xff]
        %v424 = vld [vmem:[%s349 + $0x78] sm:$0xff]
        %v425 = vld [vmem:[%s340] sm:$0xf]
        %v426 = vld [vmem:[%s340 + $0x4] sm:$0xf]
        %v427 = vld [vmem:[%s340 + $0x8] sm:$0xf]
        %v428 = vld [vmem:[%s340 + $0xc] sm:$0xf]
        %v429 = vld [vmem:[%s340 + $0x10] sm:$0xf]
        %v430 = vld [vmem:[%s340 + $0x14] sm:$0xf]
        %v431 = vld [vmem:[%s340 + $0x18] sm:$0xf]
        %v432 = vld [vmem:[%s340 + $0x1c] sm:$0xf]
        %v433 = vld [vmem:[%s340 + $0x20] sm:$0xf]
        %v434 = vld [vmem:[%s340 + $0x24] sm:$0xf]
        %v435 = vld [vmem:[%s340 + $0x28] sm:$0xf]
        %v436 = vld [vmem:[%s340 + $0x2c] sm:$0xf]
        %v437 = vld [vmem:[%s340 + $0x30] sm:$0xf]
        %v438 = vld [vmem:[%s340 + $0x34] sm:$0xf]
        %v439 = vld [vmem:[%s340 + $0x38] sm:$0xf]
        %v440 = vld [vmem:[%s340 + $0x3c] sm:$0xf]
        %v441 = vld [vmem:[#allocation7] sm:$0xf]
        %v442 = vld [vmem:[#allocation7 + $0x4] sm:$0xf]
        %v443 = vld [vmem:[#allocation7 + $0x8] sm:$0xf]
        %v444 = vld [vmem:[#allocation8] sm:$0x1]
        %v446 = vlaneseq
        %v447 = vshrl.u32 %v446, 7
        %v448 = vsub.s32 0, %v447
        %v449 = vrot.slane %v444, %v448
        %v467 = vunpack.c.l.b16 %v425
        %v468 = vunpack.c.l.b16 %v426
        %v469 = vunpack.c.l.b16 %v427
        %v470 = vunpack.c.l.b16 %v428
        %v471 = vunpack.c.l.b16 %v429
        %v472 = vunpack.c.l.b16 %v430
        %v473 = vunpack.c.l.b16 %v431
        %v474 = vunpack.c.l.b16 %v432
        %v475 = vunpack.c.l.b16 %v433
        %v476 = vunpack.c.l.b16 %v434
        %v477 = vunpack.c.l.b16 %v435
        %v478 = vunpack.c.l.b16 %v436
        %v479 = vunpack.c.l.b16 %v437
        %v480 = vunpack.c.l.b16 %v438
        %v481 = vunpack.c.l.b16 %v439
        %v482 = vunpack.c.l.b16 %v440
        %v483 = vpack.c.b16 %v468, %v467
        %v484 = vpack.c.b16 %v470, %v469
        %v485 = vpack.c.b16 %v472, %v471
        %v486 = vpack.c.b16 %v474, %v473
        %v487 = vpack.c.b16 %v476, %v475
        %v488 = vpack.c.b16 %v478, %v477
        %v489 = vpack.c.b16 %v480, %v479
        %v490 = vpack.c.b16 %v482, %v481
        %v494 = vunpack.c.l.b16 %v441
        %v495 = vunpack.c.l.b16 %v442
        %v496 = vunpack.c.l.b16 %v443
        %v497 = vpack.c.b16 %v495, %v494
        %v498 = vpack.c.b16 %v496, %v496
        %vm500 = vcmask 195584
        %v502 = vsel %vm500, %v483, 0
        %v505 = vsel %vm500, %v484, 0
        %v508 = vsel %vm500, %v485, 0
        %v511 = vsel %vm500, %v486, 0
        %v514 = vsel %vm500, %v487, 0
        %v517 = vsel %vm500, %v488, 0
        %v520 = vsel %vm500, %v489, 0
        %v523 = vsel %vm500, %v490, 0
        %vm525 = vcmask 1043456
        %v527 = vsel %vm525, %v498, 0
        %529 = vmatprep.subr.bf16.mxu0 0
        %530 = vmatpush1.bf16.msra.mxu0 %v497
        %531 = vmatprep.subr.bf16.mxu0 0
        %532 = vmatpush1.bf16.msra.mxu0 %v527
        %533 = vmatprep.subr.bf16.mxu0 0
        %534 = vmatpush1.bf16.msra.mxu0 0
        %535 = vmatprep.subr.bf16.mxu0 0
        %536 = vmatpush1.bf16.msra.mxu0 0
        %537 = vmatprep.subr.bf16.mxu0 0
        %538 = vmatpush1.bf16.msra.mxu0 0
        %539 = vmatprep.subr.bf16.mxu0 0
        %540 = vmatpush1.bf16.msra.mxu0 0
        %541 = vmatprep.subr.bf16.mxu0 0
        %542 = vmatpush1.bf16.msra.mxu0 0
        %543 = vmatprep.subr.bf16.mxu0 0
        %544 = vmatpush1.bf16.msra.mxu0 0
        %545 = vmatprep.subr.bf16.mxu0 0
        %546 = vmatpush1.bf16.msra.mxu0 0
        %547 = vmatprep.subr.bf16.mxu0 0
        %548 = vmatpush1.bf16.msra.mxu0 0
        %549 = vmatprep.subr.bf16.mxu0 0
        %550 = vmatpush1.bf16.msra.mxu0 0
        %551 = vmatprep.subr.bf16.mxu0 0
        %552 = vmatpush1.bf16.msra.mxu0 0
        %553 = vmatprep.subr.bf16.mxu0 0
        %554 = vmatpush1.bf16.msra.mxu0 0
        %555 = vmatprep.subr.bf16.mxu0 0
        %556 = vmatpush1.bf16.msra.mxu0 0
        %557 = vmatprep.subr.bf16.mxu0 0
        %558 = vmatpush1.bf16.msra.mxu0 0
        %559 = vmatprep.subr.bf16.mxu0 0
        %560 = vmatpush1.bf16.msra.mxu0 0
        %561 = vmatprep.mubr.bf16.mxu0 0
        %562 = vmatmul.mubr.bf16.gmra.mrb[0].mxu0 %v502
        %v563 = vpop.f32.mrb[0].mxu0
        %v564 = vadd.f32 %v449, %v563
        %v565 = vpop.f32.mrb[0].mxu0
        %v566 = vpop.f32.mrb[0].mxu0
        %v567 = vadd.f32 %v449, %v566
        %v568 = vpop.f32.mrb[0].mxu0
        %569 = vmatprep.mubr.bf16.mxu0 0
        %570 = vmatmul.mubr.bf16.gmra.mrb[0].mxu0 %v505
        %v571 = vpop.f32.mrb[0].mxu0
        %v572 = vadd.f32 %v449, %v571
        %v573 = vpop.f32.mrb[0].mxu0
        %v574 = vpop.f32.mrb[0].mxu0
        %v575 = vadd.f32 %v449, %v574
        %v576 = vpop.f32.mrb[0].mxu0
        %577 = vmatprep.mubr.bf16.mxu0 0
        %578 = vmatmul.mubr.bf16.gmra.mrb[0].mxu0 %v508
        %v579 = vpop.f32.mrb[0].mxu0
        %v580 = vadd.f32 %v449, %v579
        %v581 = vpop.f32.mrb[0].mxu0
        %v582 = vpop.f32.mrb[0].mxu0
        %v583 = vadd.f32 %v449, %v582
        %v584 = vpop.f32.mrb[0].mxu0
        %585 = vmatprep.mubr.bf16.mxu0 0
        %586 = vmatmul.mubr.bf16.gmra.mrb[0].mxu0 %v511
        %v587 = vpop.f32.mrb[0].mxu0
        %v588 = vadd.f32 %v449, %v587
        %v589 = vpop.f32.mrb[0].mxu0
        %v590 = vpop.f32.mrb[0].mxu0
        %v591 = vadd.f32 %v449, %v590
        %v592 = vpop.f32.mrb[0].mxu0
        %593 = vmatprep.mubr.bf16.mxu0 0
        %594 = vmatmul.mubr.bf16.gmra.mrb[0].mxu0 %v514
        %v595 = vpop.f32.mrb[0].mxu0
        %v596 = vadd.f32 %v449, %v595
        %v597 = vpop.f32.mrb[0].mxu0
        %v598 = vpop.f32.mrb[0].mxu0
        %v599 = vadd.f32 %v449, %v598
        %v600 = vpop.f32.mrb[0].mxu0
        %601 = vmatprep.mubr.bf16.mxu0 0
        %602 = vmatmul.mubr.bf16.gmra.mrb[0].mxu0 %v517
        %v603 = vpop.f32.mrb[0].mxu0
        %v604 = vadd.f32 %v449, %v603
        %v605 = vpop.f32.mrb[0].mxu0
        %v606 = vpop.f32.mrb[0].mxu0
        %v607 = vadd.f32 %v449, %v606
        %v608 = vpop.f32.mrb[0].mxu0
        %609 = vmatprep.mubr.bf16.mxu0 0
        %610 = vmatmul.mubr.bf16.gmra.mrb[0].mxu0 %v520
        %v611 = vpop.f32.mrb[0].mxu0
        %v612 = vadd.f32 %v449, %v611
        %v613 = vpop.f32.mrb[0].mxu0
        %v614 = vpop.f32.mrb[0].mxu0
        %v615 = vadd.f32 %v449, %v614
        %v616 = vpop.f32.mrb[0].mxu0
        %617 = vmatprep.mubr.bf16.mxu0 0
        %618 = vmatmul.mubr.bf16.gmra.mrb[0].mxu0 %v523
        %v619 = vpop.f32.mrb[0].mxu0
        %v620 = vadd.f32 %v449, %v619
        %v621 = vpop.f32.mrb[0].mxu0
        %v622 = vpop.f32.mrb[0].mxu0
        %v623 = vadd.f32 %v449, %v622
        %v624 = vpop.f32.mrb[0].mxu0
        %625 = vdwg.mxu0
        %v626 = vxor.u32 %v564, 2147483648
        %v627 = vxor.u32 %v567, 2147483648
        %v628 = vxor.u32 %v572, 2147483648
        %v629 = vxor.u32 %v575, 2147483648
        %v630 = vxor.u32 %v580, 2147483648
        %v631 = vxor.u32 %v583, 2147483648
        %v632 = vxor.u32 %v588, 2147483648
        %v633 = vxor.u32 %v591, 2147483648
        %v634 = vxor.u32 %v596, 2147483648
        %v635 = vxor.u32 %v599, 2147483648
        %v636 = vxor.u32 %v604, 2147483648
        %v637 = vxor.u32 %v607, 2147483648
        %v638 = vxor.u32 %v612, 2147483648
        %v639 = vxor.u32 %v615, 2147483648
        %v640 = vxor.u32 %v620, 2147483648
        %v641 = vxor.u32 %v623, 2147483648
        %v642 = vmul.f32 %v626, 1.442695
        %v643 = vpow.pop %v642
        %v644 = vmul.f32 %v627, 1.442695
        %v645 = vpow.pop %v644
        %v646 = vmul.f32 %v628, 1.442695
        %v647 = vpow.pop %v646
        %v648 = vmul.f32 %v629, 1.442695
        %v649 = vpow.pop %v648
        %v650 = vmul.f32 %v630, 1.442695
        %v651 = vpow.pop %v650
        %v652 = vmul.f32 %v631, 1.442695
        %v653 = vpow.pop %v652
        %v654 = vmul.f32 %v632, 1.442695
        %v655 = vpow.pop %v654
        %v656 = vmul.f32 %v633, 1.442695
        %v657 = vpow.pop %v656
        %v658 = vmul.f32 %v634, 1.442695
        %v659 = vpow.pop %v658
        %v660 = vmul.f32 %v635, 1.442695
        %v661 = vpow.pop %v660
        %v662 = vmul.f32 %v636, 1.442695
        %v663 = vpow.pop %v662
        %v664 = vmul.f32 %v637, 1.442695
        %v665 = vpow.pop %v664
        %v666 = vmul.f32 %v638, 1.442695
        %v667 = vpow.pop %v666
        %v668 = vmul.f32 %v639, 1.442695
        %v669 = vpow.pop %v668
        %v670 = vmul.f32 %v640, 1.442695
        %v671 = vpow.pop %v670
        %v672 = vmul.f32 %v641, 1.442695
        %v673 = vpow.pop %v672
        %v674 = vadd.f32 %v643, 1.0
        %v675 = vadd.f32 %v645, 1.0
        %v676 = vadd.f32 %v647, 1.0
        %v677 = vadd.f32 %v649, 1.0
        %v678 = vadd.f32 %v651, 1.0
        %v679 = vadd.f32 %v653, 1.0
        %v680 = vadd.f32 %v655, 1.0
        %v681 = vadd.f32 %v657, 1.0
        %v682 = vadd.f32 %v659, 1.0
        %v683 = vadd.f32 %v661, 1.0
        %v684 = vadd.f32 %v663, 1.0
        %v685 = vadd.f32 %v665, 1.0
        %v686 = vadd.f32 %v667, 1.0
        %v687 = vadd.f32 %v669, 1.0
        %v688 = vadd.f32 %v671, 1.0
        %v689 = vadd.f32 %v673, 1.0
        %v690 = vrcp.pop %v674
        %v691 = vmul.f32 1.0, %v690
        %v692 = vrcp.pop %v675
        %v693 = vmul.f32 1.0, %v692
        %v694 = vrcp.pop %v676
        %v695 = vmul.f32 1.0, %v694
        %v696 = vrcp.pop %v677
        %v697 = vmul.f32 1.0, %v696
        %v698 = vrcp.pop %v678
        %v699 = vmul.f32 1.0, %v698
        %v700 = vrcp.pop %v679
        %v701 = vmul.f32 1.0, %v700
        %v702 = vrcp.pop %v680
        %v703 = vmul.f32 1.0, %v702
        %v704 = vrcp.pop %v681
        %v705 = vmul.f32 1.0, %v704
        %v706 = vrcp.pop %v682
        %v707 = vmul.f32 1.0, %v706
        %v708 = vrcp.pop %v683
        %v709 = vmul.f32 1.0, %v708
        %v710 = vrcp.pop %v684
        %v711 = vmul.f32 1.0, %v710
        %v712 = vrcp.pop %v685
        %v713 = vmul.f32 1.0, %v712
        %v714 = vrcp.pop %v686
        %v715 = vmul.f32 1.0, %v714
        %v716 = vrcp.pop %v687
        %v717 = vmul.f32 1.0, %v716
        %v718 = vrcp.pop %v688
        %v719 = vmul.f32 1.0, %v718
        %v720 = vrcp.pop %v689
        %v721 = vmul.f32 1.0, %v720
        %v722 = vmul.f32 %v564, %v691
        %v723 = vmul.f32 %v567, %v693
        %v724 = vmul.f32 %v572, %v695
        %v725 = vmul.f32 %v575, %v697
        %v726 = vmul.f32 %v580, %v699
        %v727 = vmul.f32 %v583, %v701
        %v728 = vmul.f32 %v588, %v703
        %v729 = vmul.f32 %v591, %v705
        %v730 = vmul.f32 %v596, %v707
        %v731 = vmul.f32 %v599, %v709
        %v732 = vmul.f32 %v604, %v711
        %v733 = vmul.f32 %v607, %v713
        %v734 = vmul.f32 %v612, %v715
        %v735 = vmul.f32 %v615, %v717
        %v736 = vmul.f32 %v620, %v719
        %v737 = vmul.f32 %v623, %v721
        %739 = vset.pattern.permute.xlu0 0
        %740 = vperm.xlu0 %739, %v409
        %v741 = vpop.permute.xlu0 %740
        %744 = vset.pattern.permute.xlu0 0
        %745 = vperm.xlu0 %744, %v410
        %v746 = vpop.permute.xlu0 %745
        %749 = vset.pattern.permute.xlu0 0
        %750 = vperm.xlu0 %749, %v411
        %v751 = vpop.permute.xlu0 %750
        %754 = vset.pattern.permute.xlu0 0
        %755 = vperm.xlu0 %754, %v412
        %v756 = vpop.permute.xlu0 %755
        %759 = vset.pattern.permute.xlu0 0
        %760 = vperm.xlu0 %759, %v413
        %v761 = vpop.permute.xlu0 %760
        %764 = vset.pattern.permute.xlu0 0
        %765 = vperm.xlu0 %764, %v414
        %v766 = vpop.permute.xlu0 %765
        %769 = vset.pattern.permute.xlu0 0
        %770 = vperm.xlu0 %769, %v415
        %v771 = vpop.permute.xlu0 %770
        %774 = vset.pattern.permute.xlu0 0
        %775 = vperm.xlu0 %774, %v416
        %v776 = vpop.permute.xlu0 %775
        %779 = vset.pattern.permute.xlu0 0
        %780 = vperm.xlu0 %779, %v417
        %v781 = vpop.permute.xlu0 %780
        %784 = vset.pattern.permute.xlu0 0
        %785 = vperm.xlu0 %784, %v418
        %v786 = vpop.permute.xlu0 %785
        %789 = vset.pattern.permute.xlu0 0
        %790 = vperm.xlu0 %789, %v419
        %v791 = vpop.permute.xlu0 %790
        %794 = vset.pattern.permute.xlu0 0
        %795 = vperm.xlu0 %794, %v420
        %v796 = vpop.permute.xlu0 %795
        %799 = vset.pattern.permute.xlu0 0
        %800 = vperm.xlu0 %799, %v421
        %v801 = vpop.permute.xlu0 %800
        %804 = vset.pattern.permute.xlu0 0
        %805 = vperm.xlu0 %804, %v422
        %v806 = vpop.permute.xlu0 %805
        %809 = vset.pattern.permute.xlu0 0
        %810 = vperm.xlu0 %809, %v423
        %v811 = vpop.permute.xlu0 %810
        %814 = vset.pattern.permute.xlu0 0
        %815 = vperm.xlu0 %814, %v424
        %v816 = vpop.permute.xlu0 %815
        %v818 = vmul.f32 %v722, %v741
        %v819 = vmul.f32 %v723, %v746
        %v820 = vmul.f32 %v724, %v751
        %v821 = vmul.f32 %v725, %v756
        %v822 = vmul.f32 %v726, %v761
        %v823 = vmul.f32 %v727, %v766
        %v824 = vmul.f32 %v728, %v771
        %v825 = vmul.f32 %v729, %v776
        %v826 = vmul.f32 %v730, %v781
        %v827 = vmul.f32 %v731, %v786
        %v828 = vmul.f32 %v732, %v791
        %v829 = vmul.f32 %v733, %v796
        %v830 = vmul.f32 %v734, %v801
        %v831 = vmul.f32 %v735, %v806
        %v832 = vmul.f32 %v736, %v811
        %v833 = vmul.f32 %v737, %v816
        %v834 = vld [vmem:[#allocation10] sm:$0xff]
        %v835 = vld [vmem:[#allocation10 + $0x8] sm:$0xff]
        %v836 = vld [vmem:[#allocation10 + $0x10] sm:$0xff]
        %v837 = vld [vmem:[#allocation10 + $0x18] sm:$0xff]
        %vm838 = vcmask 261120
        %v840 = vsel %vm838, %v818, 0
        %v843 = vsel %vm838, %v819, 0
        %v846 = vsel %vm838, %v820, 0
        %v849 = vsel %vm838, %v821, 0
        %v852 = vsel %vm838, %v822, 0
        %v855 = vsel %vm838, %v823, 0
        %v858 = vsel %vm838, %v824, 0
        %v861 = vsel %vm838, %v825, 0
        %v864 = vsel %vm838, %v826, 0
        %v867 = vsel %vm838, %v827, 0
        %v870 = vsel %vm838, %v828, 0
        %v873 = vsel %vm838, %v829, 0
        %v876 = vsel %vm838, %v830, 0
        %v879 = vsel %vm838, %v831, 0
        %v882 = vsel %vm838, %v832, 0
        %v885 = vsel %vm838, %v833, 0
        %887 = vmatprep.subr.mxu0 0.0
        %888 = vmatpush1.msra.mxu0 %v834
        %889 = vmatprep.subr.mxu0 0.0
        %890 = vmatpush1.msra.mxu0 %v835
        %891 = vmatprep.subr.mxu0 0.0
        %892 = vmatpush1.msra.mxu0 %v836
        %893 = vmatprep.subr.mxu0 0.0
        %894 = vmatpush1.msra.mxu0 %v837
        %895 = vmatprep.subr.mxu0 0.0
        %896 = vmatpush1.msra.mxu0 0.0
        %897 = vmatprep.subr.mxu0 0.0
        %898 = vmatpush1.msra.mxu0 0.0
        %899 = vmatprep.subr.mxu0 0.0
        %900 = vmatpush1.msra.mxu0 0.0
        %901 = vmatprep.subr.mxu0 0.0
        %902 = vmatpush1.msra.mxu0 0.0
        %903 = vmatprep.subr.mxu0 0.0
        %904 = vmatpush1.msra.mxu0 0.0
        %905 = vmatprep.subr.mxu0 0.0
        %906 = vmatpush1.msra.mxu0 0.0
        %907 = vmatprep.subr.mxu0 0.0
        %908 = vmatpush1.msra.mxu0 0.0
        %909 = vmatprep.subr.mxu0 0.0
        %910 = vmatpush1.msra.mxu0 0.0
        %911 = vmatprep.subr.mxu0 0.0
        %912 = vmatpush1.msra.mxu0 0.0
        %913 = vmatprep.subr.mxu0 0.0
        %914 = vmatpush1.msra.mxu0 0.0
        %915 = vmatprep.subr.mxu0 0.0
        %916 = vmatpush1.msra.mxu0 0.0
        %917 = vmatprep.subr.mxu0 0.0
        %918 = vmatpush1.msra.mxu0 0.0
        %919 = vmatprep.subr.mxu0 0.0
        %920 = vmatpush1.msra.mxu0 0.0
        %921 = vmatprep.subr.mxu0 0.0
        %922 = vmatpush1.msra.mxu0 0.0
        %923 = vmatprep.subr.mxu0 0.0
        %924 = vmatpush1.msra.mxu0 0.0
        %925 = vmatprep.subr.mxu0 0.0
        %926 = vmatpush1.msra.mxu0 0.0
        %927 = vmatprep.subr.mxu0 0.0
        %928 = vmatpush1.msra.mxu0 0.0
        %929 = vmatprep.subr.mxu0 0.0
        %930 = vmatpush1.msra.mxu0 0.0
        %931 = vmatprep.subr.mxu0 0.0
        %932 = vmatpush1.msra.mxu0 0.0
        %933 = vmatprep.subr.mxu0 0.0
        %934 = vmatpush1.msra.mxu0 0.0
        %935 = vmatprep.subr.mxu0 0.0
        %936 = vmatpush1.msra.mxu0 0.0
        %937 = vmatprep.subr.mxu0 0.0
        %938 = vmatpush1.msra.mxu0 0.0
        %939 = vmatprep.subr.mxu0 0.0
        %940 = vmatpush1.msra.mxu0 0.0
        %941 = vmatprep.subr.mxu0 0.0
        %942 = vmatpush1.msra.mxu0 0.0
        %943 = vmatprep.subr.mxu0 0.0
        %944 = vmatpush1.msra.mxu0 0.0
        %945 = vmatprep.subr.mxu0 0.0
        %946 = vmatpush1.msra.mxu0 0.0
        %947 = vmatprep.subr.mxu0 0.0
        %948 = vmatpush1.msra.mxu0 0.0
        %949 = vmatprep.subr.mxu0 0.0
        %950 = vmatpush1.msra.mxu0 0.0
        %951 = vmatprep.mubr.f32.mxu0 0.0
        %952 = vmatmul.mubr.f32.gmra.mrb[0].mxu0 %v840
        %v953 = vpop.f32.mrb[0].mxu0
        %v954 = vadd.f32 0.0, %v953
        %v955 = vpop.f32.mrb[0].mxu0
        %956 = vmatprep.mubr.f32.mxu0 0.0
        %957 = vmatmul.mubr.f32.gmra.mrb[0].mxu0 %v843
        %v958 = vpop.f32.mrb[0].mxu0
        %v959 = vadd.f32 0.0, %v958
        %v960 = vpop.f32.mrb[0].mxu0
        %961 = vmatprep.mubr.f32.mxu0 0.0
        %962 = vmatmul.mubr.f32.gmra.mrb[0].mxu0 %v846
        %v963 = vpop.f32.mrb[0].mxu0
        %v964 = vadd.f32 0.0, %v963
        %v965 = vpop.f32.mrb[0].mxu0
        %966 = vmatprep.mubr.f32.mxu0 0.0
        %967 = vmatmul.mubr.f32.gmra.mrb[0].mxu0 %v849
        %v968 = vpop.f32.mrb[0].mxu0
        %v969 = vadd.f32 0.0, %v968
        %v970 = vpop.f32.mrb[0].mxu0
        %971 = vmatprep.mubr.f32.mxu0 0.0
        %972 = vmatmul.mubr.f32.gmra.mrb[0].mxu0 %v852
        %v973 = vpop.f32.mrb[0].mxu0
        %v974 = vadd.f32 0.0, %v973
        %v975 = vpop.f32.mrb[0].mxu0
        %976 = vmatprep.mubr.f32.mxu0 0.0
        %977 = vmatmul.mubr.f32.gmra.mrb[0].mxu0 %v855
        %v978 = vpop.f32.mrb[0].mxu0
        %v979 = vadd.f32 0.0, %v978
        %v980 = vpop.f32.mrb[0].mxu0
        %981 = vmatprep.mubr.f32.mxu0 0.0
        %982 = vmatmul.mubr.f32.gmra.mrb[0].mxu0 %v858
        %v983 = vpop.f32.mrb[0].mxu0
        %v984 = vadd.f32 0.0, %v983
        %v985 = vpop.f32.mrb[0].mxu0
        %986 = vmatprep.mubr.f32.mxu0 0.0
        %987 = vmatmul.mubr.f32.gmra.mrb[0].mxu0 %v861
        %v988 = vpop.f32.mrb[0].mxu0
        %v989 = vadd.f32 0.0, %v988
        %v990 = vpop.f32.mrb[0].mxu0
        %991 = vmatprep.mubr.f32.mxu0 0.0
        %992 = vmatmul.mubr.f32.gmra.mrb[0].mxu0 %v864
        %v993 = vpop.f32.mrb[0].mxu0
        %v994 = vadd.f32 0.0, %v993
        %v995 = vpop.f32.mrb[0].mxu0
        %996 = vmatprep.mubr.f32.mxu0 0.0
        %997 = vmatmul.mubr.f32.gmra.mrb[0].mxu0 %v867
        %v998 = vpop.f32.mrb[0].mxu0
        %v999 = vadd.f32 0.0, %v998
        %v1000 = vpop.f32.mrb[0].mxu0
        %1001 = vmatprep.mubr.f32.mxu0 0.0
        %1002 = vmatmul.mubr.f32.gmra.mrb[0].mxu0 %v870
        %v1003 = vpop.f32.mrb[0].mxu0
        %v1004 = vadd.f32 0.0, %v1003
        %v1005 = vpop.f32.mrb[0].mxu0
        %1006 = vmatprep.mubr.f32.mxu0 0.0
        %1007 = vmatmul.mubr.f32.gmra.mrb[0].mxu0 %v873
        %v1008 = vpop.f32.mrb[0].mxu0
        %v1009 = vadd.f32 0.0, %v1008
        %v1010 = vpop.f32.mrb[0].mxu0
        %1011 = vmatprep.mubr.f32.mxu0 0.0
        %1012 = vmatmul.mubr.f32.gmra.mrb[0].mxu0 %v876
        %v1013 = vpop.f32.mrb[0].mxu0
        %v1014 = vadd.f32 0.0, %v1013
        %v1015 = vpop.f32.mrb[0].mxu0
        %1016 = vmatprep.mubr.f32.mxu0 0.0
        %1017 = vmatmul.mubr.f32.gmra.mrb[0].mxu0 %v879
        %v1018 = vpop.f32.mrb[0].mxu0
        %v1019 = vadd.f32 0.0, %v1018
        %v1020 = vpop.f32.mrb[0].mxu0
        %1021 = vmatprep.mubr.f32.mxu0 0.0
        %1022 = vmatmul.mubr.f32.gmra.mrb[0].mxu0 %v882
        %v1023 = vpop.f32.mrb[0].mxu0
        %v1024 = vadd.f32 0.0, %v1023
        %v1025 = vpop.f32.mrb[0].mxu0
        %1026 = vmatprep.mubr.f32.mxu0 0.0
        %1027 = vmatmul.mubr.f32.gmra.mrb[0].mxu0 %v885
        %v1028 = vpop.f32.mrb[0].mxu0
        %v1029 = vadd.f32 0.0, %v1028
        %v1030 = vpop.f32.mrb[0].mxu0
        %1031 = vdwg.mxu0
        %v1032 = vxor.u32 %v954, 2147483648
        %v1033 = vxor.u32 %v959, 2147483648
        %v1034 = vxor.u32 %v964, 2147483648
        %v1035 = vxor.u32 %v969, 2147483648
        %v1036 = vxor.u32 %v974, 2147483648
        %v1037 = vxor.u32 %v979, 2147483648
        %v1038 = vxor.u32 %v984, 2147483648
        %v1039 = vxor.u32 %v989, 2147483648
        %v1040 = vxor.u32 %v994, 2147483648
        %v1041 = vxor.u32 %v999, 2147483648
        %v1042 = vxor.u32 %v1004, 2147483648
        %v1043 = vxor.u32 %v1009, 2147483648
        %v1044 = vxor.u32 %v1014, 2147483648
        %v1045 = vxor.u32 %v1019, 2147483648
        %v1046 = vxor.u32 %v1024, 2147483648
        %v1047 = vxor.u32 %v1029, 2147483648
        %v1048 = vmul.f32 %v1032, 1.442695
        %v1049 = vpow.pop %v1048
        %v1050 = vmul.f32 %v1033, 1.442695
        %v1051 = vpow.pop %v1050
        %v1052 = vmul.f32 %v1034, 1.442695
        %v1053 = vpow.pop %v1052
        %v1054 = vmul.f32 %v1035, 1.442695
        %v1055 = vpow.pop %v1054
        %v1056 = vmul.f32 %v1036, 1.442695
        %v1057 = vpow.pop %v1056
        %v1058 = vmul.f32 %v1037, 1.442695
        %v1059 = vpow.pop %v1058
        %v1060 = vmul.f32 %v1038, 1.442695
        %v1061 = vpow.pop %v1060
        %v1062 = vmul.f32 %v1039, 1.442695
        %v1063 = vpow.pop %v1062
        %v1064 = vmul.f32 %v1040, 1.442695
        %v1065 = vpow.pop %v1064
        %v1066 = vmul.f32 %v1041, 1.442695
        %v1067 = vpow.pop %v1066
        %v1068 = vmul.f32 %v1042, 1.442695
        %v1069 = vpow.pop %v1068
        %v1070 = vmul.f32 %v1043, 1.442695
        %v1071 = vpow.pop %v1070
        %v1072 = vmul.f32 %v1044, 1.442695
        %v1073 = vpow.pop %v1072
        %v1074 = vmul.f32 %v1045, 1.442695
        %v1075 = vpow.pop %v1074
        %v1076 = vmul.f32 %v1046, 1.442695
        %v1077 = vpow.pop %v1076
        %v1078 = vmul.f32 %v1047, 1.442695
        %v1079 = vpow.pop %v1078
        %v1080 = vadd.f32 %v1049, 1.0
        %v1081 = vadd.f32 %v1051, 1.0
        %v1082 = vadd.f32 %v1053, 1.0
        %v1083 = vadd.f32 %v1055, 1.0
        %v1084 = vadd.f32 %v1057, 1.0
        %v1085 = vadd.f32 %v1059, 1.0
        %v1086 = vadd.f32 %v1061, 1.0
        %v1087 = vadd.f32 %v1063, 1.0
        %v1088 = vadd.f32 %v1065, 1.0
        %v1089 = vadd.f32 %v1067, 1.0
        %v1090 = vadd.f32 %v1069, 1.0
        %v1091 = vadd.f32 %v1071, 1.0
        %v1092 = vadd.f32 %v1073, 1.0
        %v1093 = vadd.f32 %v1075, 1.0
        %v1094 = vadd.f32 %v1077, 1.0
        %v1095 = vadd.f32 %v1079, 1.0
        %v1096 = vrcp.pop %v1080
        %v1097 = vmul.f32 1.0, %v1096
        %v1098 = vrcp.pop %v1081
        %v1099 = vmul.f32 1.0, %v1098
        %v1100 = vrcp.pop %v1082
        %v1101 = vmul.f32 1.0, %v1100
        %v1102 = vrcp.pop %v1083
        %v1103 = vmul.f32 1.0, %v1102
        %v1104 = vrcp.pop %v1084
        %v1105 = vmul.f32 1.0, %v1104
        %v1106 = vrcp.pop %v1085
        %v1107 = vmul.f32 1.0, %v1106
        %v1108 = vrcp.pop %v1086
        %v1109 = vmul.f32 1.0, %v1108
        %v1110 = vrcp.pop %v1087
        %v1111 = vmul.f32 1.0, %v1110
        %v1112 = vrcp.pop %v1088
        %v1113 = vmul.f32 1.0, %v1112
        %v1114 = vrcp.pop %v1089
        %v1115 = vmul.f32 1.0, %v1114
        %v1116 = vrcp.pop %v1090
        %v1117 = vmul.f32 1.0, %v1116
        %v1118 = vrcp.pop %v1091
        %v1119 = vmul.f32 1.0, %v1118
        %v1120 = vrcp.pop %v1092
        %v1121 = vmul.f32 1.0, %v1120
        %v1122 = vrcp.pop %v1093
        %v1123 = vmul.f32 1.0, %v1122
        %v1124 = vrcp.pop %v1094
        %v1125 = vmul.f32 1.0, %v1124
        %v1126 = vrcp.pop %v1095
        %v1127 = vmul.f32 1.0, %v1126
        %v1128 = vmul.f32 %v954, %v1097
        %v1129 = vmul.f32 %v959, %v1099
        %v1130 = vmul.f32 %v964, %v1101
        %v1131 = vmul.f32 %v969, %v1103
        %v1132 = vmul.f32 %v974, %v1105
        %v1133 = vmul.f32 %v979, %v1107
        %v1134 = vmul.f32 %v984, %v1109
        %v1135 = vmul.f32 %v989, %v1111
        %v1136 = vmul.f32 %v994, %v1113
        %v1137 = vmul.f32 %v999, %v1115
        %v1138 = vmul.f32 %v1004, %v1117
        %v1139 = vmul.f32 %v1009, %v1119
        %v1140 = vmul.f32 %v1014, %v1121
        %v1141 = vmul.f32 %v1019, %v1123
        %v1142 = vmul.f32 %v1024, %v1125
        %v1143 = vmul.f32 %v1029, %v1127
        %1144 = vxpose.xlu0.b32.start [1/16] %v1128, 128
        %1145 = vxpose.xlu0.b32.cont [2/16] 0.0, 128
        %1146 = vxpose.xlu0.b32.cont [3/16] 0.0, 128
        %1147 = vxpose.xlu0.b32.cont [4/16] 0.0, 128
        %1148 = vxpose.xlu0.b32.cont [5/16] 0.0, 128
        %1149 = vxpose.xlu0.b32.cont [6/16] 0.0, 128
        %1150 = vxpose.xlu0.b32.cont [7/16] 0.0, 128
        %1151 = vxpose.xlu0.b32.cont [8/16] 0.0, 128
        %1152 = vxpose.xlu0.b32.cont [9/16] 0.0, 128
        %1153 = vxpose.xlu0.b32.cont [10/16] 0.0, 128
        %1154 = vxpose.xlu0.b32.cont [11/16] 0.0, 128
        %1155 = vxpose.xlu0.b32.cont [12/16] 0.0, 128
        %1156 = vxpose.xlu0.b32.cont [13/16] 0.0, 128
        %1157 = vxpose.xlu0.b32.cont [14/16] 0.0, 128
        %1158 = vxpose.xlu0.b32.cont [15/16] 0.0, 128
        %1159 = vxpose.xlu0.b32.end [16/16] 0.0, 128
        %v1160 = vpop.trf.xlu0
        %v1161 = vpop.trf.xlu0
        %v1162 = vpop.trf.xlu0
        %v1163 = vpop.trf.xlu0
        %v1164 = vpop.trf.xlu0
        %v1165 = vpop.trf.xlu0
        %v1166 = vpop.trf.xlu0
        %v1167 = vpop.trf.xlu0
        %v1168 = vpop.trf.xlu0
        %v1169 = vpop.trf.xlu0
        %v1170 = vpop.trf.xlu0
        %v1171 = vpop.trf.xlu0
        %v1172 = vpop.trf.xlu0
        %v1173 = vpop.trf.xlu0
        %v1174 = vpop.trf.xlu0
        %v1175 = vpop.trf.xlu0
        %1177 = vrot.lane.b32.xlu0 %v1128, 96
        %v1178 = vpop.permute.xlu0 %1177
        %vm1180 = vcmask 64512
        %v1182 = vsel %vm1180, %v1160, 0
        %v1185 = vsel %vm1180, %v1161, 0
        %v1188 = vsel %vm1180, %v1162, 0
        %v1191 = vsel %vm1180, %v1163, 0
        %1193 = vmatprep.subr.mxu0 0.0
        %1194 = vmatpush1.msra.mxu0 %v1178
        %1195 = vmatprep.subr.mxu0 0.0
        %1196 = vmatpush1.msra.mxu0 0.0
        %1197 = vmatprep.subr.mxu0 0.0
        %1198 = vmatpush1.msra.mxu0 0.0
        %1199 = vmatprep.subr.mxu0 0.0
        %1200 = vmatpush1.msra.mxu0 0.0
        %1201 = vmatprep.subr.mxu0 0.0
        %1202 = vmatpush1.msra.mxu0 0.0
        %1203 = vmatprep.subr.mxu0 0.0
        %1204 = vmatpush1.msra.mxu0 0.0
        %1205 = vmatprep.subr.mxu0 0.0
        %1206 = vmatpush1.msra.mxu0 0.0
        %1207 = vmatprep.subr.mxu0 0.0
        %1208 = vmatpush1.msra.mxu0 0.0
        %1209 = vmatprep.subr.mxu0 0.0
        %1210 = vmatpush1.msra.mxu0 0.0
        %1211 = vmatprep.subr.mxu0 0.0
        %1212 = vmatpush1.msra.mxu0 0.0
        %1213 = vmatprep.subr.mxu0 0.0
        %1214 = vmatpush1.msra.mxu0 0.0
        %1215 = vmatprep.subr.mxu0 0.0
        %1216 = vmatpush1.msra.mxu0 0.0
        %1217 = vmatprep.subr.mxu0 0.0
        %1218 = vmatpush1.msra.mxu0 0.0
        %1219 = vmatprep.subr.mxu0 0.0
        %1220 = vmatpush1.msra.mxu0 0.0
        %1221 = vmatprep.subr.mxu0 0.0
        %1222 = vmatpush1.msra.mxu0 0.0
        %1223 = vmatprep.subr.mxu0 0.0
        %1224 = vmatpush1.msra.mxu0 0.0
        %1225 = vmatprep.subr.mxu0 0.0
        %1226 = vmatpush1.msra.mxu0 0.0
        %1227 = vmatprep.subr.mxu0 0.0
        %1228 = vmatpush1.msra.mxu0 0.0
        %1229 = vmatprep.subr.mxu0 0.0
        %1230 = vmatpush1.msra.mxu0 0.0
        %1231 = vmatprep.subr.mxu0 0.0
        %1232 = vmatpush1.msra.mxu0 0.0
        %1233 = vmatprep.subr.mxu0 0.0
        %1234 = vmatpush1.msra.mxu0 0.0
        %1235 = vmatprep.subr.mxu0 0.0
        %1236 = vmatpush1.msra.mxu0 0.0
        %1237 = vmatprep.subr.mxu0 0.0
        %1238 = vmatpush1.msra.mxu0 0.0
        %1239 = vmatprep.subr.mxu0 0.0
        %1240 = vmatpush1.msra.mxu0 0.0
        %1241 = vmatprep.subr.mxu0 0.0
        %1242 = vmatpush1.msra.mxu0 0.0
        %1243 = vmatprep.subr.mxu0 0.0
        %1244 = vmatpush1.msra.mxu0 0.0
        %1245 = vmatprep.subr.mxu0 0.0
        %1246 = vmatpush1.msra.mxu0 0.0
        %1247 = vmatprep.subr.mxu0 0.0
        %1248 = vmatpush1.msra.mxu0 0.0
        %1249 = vmatprep.subr.mxu0 0.0
        %1250 = vmatpush1.msra.mxu0 0.0
        %1251 = vmatprep.subr.mxu0 0.0
        %1252 = vmatpush1.msra.mxu0 0.0
        %1253 = vmatprep.subr.mxu0 0.0
        %1254 = vmatpush1.msra.mxu0 0.0
        %1255 = vmatprep.subr.mxu0 0.0
        %1256 = vmatpush1.msra.mxu0 0.0
        %1257 = vmatprep.mubr.f32.mxu0 0.0
        %1258 = vmatmul.mubr.f32.gmra.mrb[0].mxu0 %v1182
        %v1259 = vpop.f32.mrb[0].mxu0
        %v1260 = vadd.f32 0.0, %v1259
        %v1261 = vpop.f32.mrb[0].mxu0
        %1262 = vmatprep.mubr.f32.mxu0 0.0
        %1263 = vmatmul.mubr.f32.gmra.mrb[0].mxu0 %v1185
        %v1264 = vpop.f32.mrb[0].mxu0
        %v1265 = vadd.f32 0.0, %v1264
        %v1266 = vpop.f32.mrb[0].mxu0
        %1267 = vmatprep.mubr.f32.mxu0 0.0
        %1268 = vmatmul.mubr.f32.gmra.mrb[0].mxu0 %v1188
        %v1269 = vpop.f32.mrb[0].mxu0
        %v1270 = vadd.f32 0.0, %v1269
        %v1271 = vpop.f32.mrb[0].mxu0
        %1272 = vmatprep.mubr.f32.mxu0 0.0
        %1273 = vmatmul.mubr.f32.gmra.mrb[0].mxu0 %v1191
        %v1274 = vpop.f32.mrb[0].mxu0
        %v1275 = vadd.f32 0.0, %v1274
        %v1276 = vpop.f32.mrb[0].mxu0
        %1277 = vdwg.mxu0
        %1278 = vxpose.xlu0.b32.start [1/16] %v1129, 128
        %1279 = vxpose.xlu0.b32.cont [2/16] 0.0, 128
        %1280 = vxpose.xlu0.b32.cont [3/16] 0.0, 128
        %1281 = vxpose.xlu0.b32.cont [4/16] 0.0, 128
        %1282 = vxpose.xlu0.b32.cont [5/16] 0.0, 128
        %1283 = vxpose.xlu0.b32.cont [6/16] 0.0, 128
        %1284 = vxpose.xlu0.b32.cont [7/16] 0.0, 128
        %1285 = vxpose.xlu0.b32.cont [8/16] 0.0, 128
        %1286 = vxpose.xlu0.b32.cont [9/16] 0.0, 128
        %1287 = vxpose.xlu0.b32.cont [10/16] 0.0, 128
        %1288 = vxpose.xlu0.b32.cont [11/16] 0.0, 128
        %1289 = vxpose.xlu0.b32.cont [12/16] 0.0, 128
        %1290 = vxpose.xlu0.b32.cont [13/16] 0.0, 128
        %1291 = vxpose.xlu0.b32.cont [14/16] 0.0, 128
        %1292 = vxpose.xlu0.b32.cont [15/16] 0.0, 128
        %1293 = vxpose.xlu0.b32.end [16/16] 0.0, 128
        %v1294 = vpop.trf.xlu0
        %v1295 = vpop.trf.xlu0
        %v1296 = vpop.trf.xlu0
        %v1297 = vpop.trf.xlu0
        %v1298 = vpop.trf.xlu0
        %v1299 = vpop.trf.xlu0
        %v1300 = vpop.trf.xlu0
        %v1301 = vpop.trf.xlu0
        %v1302 = vpop.trf.xlu0
        %v1303 = vpop.trf.xlu0
        %v1304 = vpop.trf.xlu0
        %v1305 = vpop.trf.xlu0
        %v1306 = vpop.trf.xlu0
        %v1307 = vpop.trf.xlu0
        %v1308 = vpop.trf.xlu0
        %v1309 = vpop.trf.xlu0
        %1311 = vrot.lane.b32.xlu0 %v1129, 96
        %v1312 = vpop.permute.xlu0 %1311
        %v1315 = vsel %vm1180, %v1294, 0
        %v1318 = vsel %vm1180, %v1295, 0
        %v1321 = vsel %vm1180, %v1296, 0
        %v1324 = vsel %vm1180, %v1297, 0
        %1326 = vmatprep.subr.mxu0 0.0
        %1327 = vmatpush1.msra.mxu0 %v1312
        %1328 = vmatprep.subr.mxu0 0.0
        %1329 = vmatpush1.msra.mxu0 0.0
        %1330 = vmatprep.subr.mxu0 0.0
        %1331 = vmatpush1.msra.mxu0 0.0
        %1332 = vmatprep.subr.mxu0 0.0
        %1333 = vmatpush1.msra.mxu0 0.0
        %1334 = vmatprep.subr.mxu0 0.0
        %1335 = vmatpush1.msra.mxu0 0.0
        %1336 = vmatprep.subr.mxu0 0.0
        %1337 = vmatpush1.msra.mxu0 0.0
        %1338 = vmatprep.subr.mxu0 0.0
        %1339 = vmatpush1.msra.mxu0 0.0
        %1340 = vmatprep.subr.mxu0 0.0
        %1341 = vmatpush1.msra.mxu0 0.0
        %1342 = vmatprep.subr.mxu0 0.0
        %1343 = vmatpush1.msra.mxu0 0.0
        %1344 = vmatprep.subr.mxu0 0.0
        %1345 = vmatpush1.msra.mxu0 0.0
        %1346 = vmatprep.subr.mxu0 0.0
        %1347 = vmatpush1.msra.mxu0 0.0
        %1348 = vmatprep.subr.mxu0 0.0
        %1349 = vmatpush1.msra.mxu0 0.0
        %1350 = vmatprep.subr.mxu0 0.0
        %1351 = vmatpush1.msra.mxu0 0.0
        %1352 = vmatprep.subr.mxu0 0.0
        %1353 = vmatpush1.msra.mxu0 0.0
        %1354 = vmatprep.subr.mxu0 0.0
        %1355 = vmatpush1.msra.mxu0 0.0
        %1356 = vmatprep.subr.mxu0 0.0
        %1357 = vmatpush1.msra.mxu0 0.0
        %1358 = vmatprep.subr.mxu0 0.0
        %1359 = vmatpush1.msra.mxu0 0.0
        %1360 = vmatprep.subr.mxu0 0.0
        %1361 = vmatpush1.msra.mxu0 0.0
        %1362 = vmatprep.subr.mxu0 0.0
        %1363 = vmatpush1.msra.mxu0 0.0
        %1364 = vmatprep.subr.mxu0 0.0
        %1365 = vmatpush1.msra.mxu0 0.0
        %1366 = vmatprep.subr.mxu0 0.0
        %1367 = vmatpush1.msra.mxu0 0.0
        %1368 = vmatprep.subr.mxu0 0.0
        %1369 = vmatpush1.msra.mxu0 0.0
        %1370 = vmatprep.subr.mxu0 0.0
        %1371 = vmatpush1.msra.mxu0 0.0
        %1372 = vmatprep.subr.mxu0 0.0
        %1373 = vmatpush1.msra.mxu0 0.0
        %1374 = vmatprep.subr.mxu0 0.0
        %1375 = vmatpush1.msra.mxu0 0.0
        %1376 = vmatprep.subr.mxu0 0.0
        %1377 = vmatpush1.msra.mxu0 0.0
        %1378 = vmatprep.subr.mxu0 0.0
        %1379 = vmatpush1.msra.mxu0 0.0
        %1380 = vmatprep.subr.mxu0 0.0
        %1381 = vmatpush1.msra.mxu0 0.0
        %1382 = vmatprep.subr.mxu0 0.0
        %1383 = vmatpush1.msra.mxu0 0.0
        %1384 = vmatprep.subr.mxu0 0.0
        %1385 = vmatpush1.msra.mxu0 0.0
        %1386 = vmatprep.subr.mxu0 0.0
        %1387 = vmatpush1.msra.mxu0 0.0
        %1388 = vmatprep.subr.mxu0 0.0
        %1389 = vmatpush1.msra.mxu0 0.0
        %1390 = vmatprep.mubr.f32.mxu0 0.0
        %1391 = vmatmul.mubr.f32.gmra.mrb[0].mxu0 %v1315
        %v1392 = vpop.f32.mrb[0].mxu0
        %v1393 = vadd.f32 0.0, %v1392
        %v1394 = vpop.f32.mrb[0].mxu0
        %1395 = vmatprep.mubr.f32.mxu0 0.0
        %1396 = vmatmul.mubr.f32.gmra.mrb[0].mxu0 %v1318
        %v1397 = vpop.f32.mrb[0].mxu0
        %v1398 = vadd.f32 0.0, %v1397
        %v1399 = vpop.f32.mrb[0].mxu0
        %1400 = vmatprep.mubr.f32.mxu0 0.0
        %1401 = vmatmul.mubr.f32.gmra.mrb[0].mxu0 %v1321
        %v1402 = vpop.f32.mrb[0].mxu0
        %v1403 = vadd.f32 0.0, %v1402
        %v1404 = vpop.f32.mrb[0].mxu0
        %1405 = vmatprep.mubr.f32.mxu0 0.0
        %1406 = vmatmul.mubr.f32.gmra.mrb[0].mxu0 %v1324
        %v1407 = vpop.f32.mrb[0].mxu0
        %v1408 = vadd.f32 0.0, %v1407
        %v1409 = vpop.f32.mrb[0].mxu0
        %1410 = vdwg.mxu0
        %1411 = vxpose.xlu0.b32.start [1/16] %v1130, 128
        %1412 = vxpose.xlu0.b32.cont [2/16] 0.0, 128
        %1413 = vxpose.xlu0.b32.cont [3/16] 0.0, 128
        %1414 = vxpose.xlu0.b32.cont [4/16] 0.0, 128
        %1415 = vxpose.xlu0.b32.cont [5/16] 0.0, 128
        %1416 = vxpose.xlu0.b32.cont [6/16] 0.0, 128
        %1417 = vxpose.xlu0.b32.cont [7/16] 0.0, 128
        %1418 = vxpose.xlu0.b32.cont [8/16] 0.0, 128
        %1419 = vxpose.xlu0.b32.cont [9/16] 0.0, 128
        %1420 = vxpose.xlu0.b32.cont [10/16] 0.0, 128
        %1421 = vxpose.xlu0.b32.cont [11/16] 0.0, 128
        %1422 = vxpose.xlu0.b32.cont [12/16] 0.0, 128
        %1423 = vxpose.xlu0.b32.cont [13/16] 0.0, 128
        %1424 = vxpose.xlu0.b32.cont [14/16] 0.0, 128
        %1425 = vxpose.xlu0.b32.cont [15/16] 0.0, 128
        %1426 = vxpose.xlu0.b32.end [16/16] 0.0, 128
        %v1427 = vpop.trf.xlu0
        %v1428 = vpop.trf.xlu0
        %v1429 = vpop.trf.xlu0
        %v1430 = vpop.trf.xlu0
        %v1431 = vpop.trf.xlu0
        %v1432 = vpop.trf.xlu0
        %v1433 = vpop.trf.xlu0
        %v1434 = vpop.trf.xlu0
        %v1435 = vpop.trf.xlu0
        %v1436 = vpop.trf.xlu0
        %v1437 = vpop.trf.xlu0
        %v1438 = vpop.trf.xlu0
        %v1439 = vpop.trf.xlu0
        %v1440 = vpop.trf.xlu0
        %v1441 = vpop.trf.xlu0
        %v1442 = vpop.trf.xlu0
        %1444 = vrot.lane.b32.xlu0 %v1130, 96
        %v1445 = vpop.permute.xlu0 %1444
        %v1448 = vsel %vm1180, %v1427, 0
        %v1451 = vsel %vm1180, %v1428, 0
        %v1454 = vsel %vm1180, %v1429, 0
        %v1457 = vsel %vm1180, %v1430, 0
        %1459 = vmatprep.subr.mxu0 0.0
        %1460 = vmatpush1.msra.mxu0 %v1445
        %1461 = vmatprep.subr.mxu0 0.0
        %1462 = vmatpush1.msra.mxu0 0.0
        %1463 = vmatprep.subr.mxu0 0.0
        %1464 = vmatpush1.msra.mxu0 0.0
        %1465 = vmatprep.subr.mxu0 0.0
        %1466 = vmatpush1.msra.mxu0 0.0
        %1467 = vmatprep.subr.mxu0 0.0
        %1468 = vmatpush1.msra.mxu0 0.0
        %1469 = vmatprep.subr.mxu0 0.0
        %1470 = vmatpush1.msra.mxu0 0.0
        %1471 = vmatprep.subr.mxu0 0.0
        %1472 = vmatpush1.msra.mxu0 0.0
        %1473 = vmatprep.subr.mxu0 0.0
        %1474 = vmatpush1.msra.mxu0 0.0
        %1475 = vmatprep.subr.mxu0 0.0
        %1476 = vmatpush1.msra.mxu0 0.0
        %1477 = vmatprep.subr.mxu0 0.0
        %1478 = vmatpush1.msra.mxu0 0.0
        %1479 = vmatprep.subr.mxu0 0.0
        %1480 = vmatpush1.msra.mxu0 0.0
        %1481 = vmatprep.subr.mxu0 0.0
        %1482 = vmatpush1.msra.mxu0 0.0
        %1483 = vmatprep.subr.mxu0 0.0
        %1484 = vmatpush1.msra.mxu0 0.0
        %1485 = vmatprep.subr.mxu0 0.0
        %1486 = vmatpush1.msra.mxu0 0.0
        %1487 = vmatprep.subr.mxu0 0.0
        %1488 = vmatpush1.msra.mxu0 0.0
        %1489 = vmatprep.subr.mxu0 0.0
        %1490 = vmatpush1.msra.mxu0 0.0
        %1491 = vmatprep.subr.mxu0 0.0
        %1492 = vmatpush1.msra.mxu0 0.0
        %1493 = vmatprep.subr.mxu0 0.0
        %1494 = vmatpush1.msra.mxu0 0.0
        %1495 = vmatprep.subr.mxu0 0.0
        %1496 = vmatpush1.msra.mxu0 0.0
        %1497 = vmatprep.subr.mxu0 0.0
        %1498 = vmatpush1.msra.mxu0 0.0
        %1499 = vmatprep.subr.mxu0 0.0
        %1500 = vmatpush1.msra.mxu0 0.0
        %1501 = vmatprep.subr.mxu0 0.0
        %1502 = vmatpush1.msra.mxu0 0.0
        %1503 = vmatprep.subr.mxu0 0.0
        %1504 = vmatpush1.msra.mxu0 0.0
        %1505 = vmatprep.subr.mxu0 0.0
        %1506 = vmatpush1.msra.mxu0 0.0
        %1507 = vmatprep.subr.mxu0 0.0
        %1508 = vmatpush1.msra.mxu0 0.0
        %1509 = vmatprep.subr.mxu0 0.0
        %1510 = vmatpush1.msra.mxu0 0.0
        %1511 = vmatprep.subr.mxu0 0.0
        %1512 = vmatpush1.msra.mxu0 0.0
        %1513 = vmatprep.subr.mxu0 0.0
        %1514 = vmatpush1.msra.mxu0 0.0
        %1515 = vmatprep.subr.mxu0 0.0
        %1516 = vmatpush1.msra.mxu0 0.0
        %1517 = vmatprep.subr.mxu0 0.0
        %1518 = vmatpush1.msra.mxu0 0.0
        %1519 = vmatprep.subr.mxu0 0.0
        %1520 = vmatpush1.msra.mxu0 0.0
        %1521 = vmatprep.subr.mxu0 0.0
        %1522 = vmatpush1.msra.mxu0 0.0
        %1523 = vmatprep.mubr.f32.mxu0 0.0
        %1524 = vmatmul.mubr.f32.gmra.mrb[0].mxu0 %v1448
        %v1525 = vpop.f32.mrb[0].mxu0
        %v1526 = vadd.f32 0.0, %v1525
        %v1527 = vpop.f32.mrb[0].mxu0
        %1528 = vmatprep.mubr.f32.mxu0 0.0
        %1529 = vmatmul.mubr.f32.gmra.mrb[0].mxu0 %v1451
        %v1530 = vpop.f32.mrb[0].mxu0
        %v1531 = vadd.f32 0.0, %v1530
        %v1532 = vpop.f32.mrb[0].mxu0
        %1533 = vmatprep.mubr.f32.mxu0 0.0
        %1534 = vmatmul.mubr.f32.gmra.mrb[0].mxu0 %v1454
        %v1535 = vpop.f32.mrb[0].mxu0
        %v1536 = vadd.f32 0.0, %v1535
        %v1537 = vpop.f32.mrb[0].mxu0
        %1538 = vmatprep.mubr.f32.mxu0 0.0
        %1539 = vmatmul.mubr.f32.gmra.mrb[0].mxu0 %v1457
        %v1540 = vpop.f32.mrb[0].mxu0
        %v1541 = vadd.f32 0.0, %v1540
        %v1542 = vpop.f32.mrb[0].mxu0
        %1543 = vdwg.mxu0
        %1544 = vxpose.xlu0.b32.start [1/16] %v1131, 128
        %1545 = vxpose.xlu0.b32.cont [2/16] 0.0, 128
        %1546 = vxpose.xlu0.b32.cont [3/16] 0.0, 128
        %1547 = vxpose.xlu0.b32.cont [4/16] 0.0, 128
        %1548 = vxpose.xlu0.b32.cont [5/16] 0.0, 128
        %1549 = vxpose.xlu0.b32.cont [6/16] 0.0, 128
        %1550 = vxpose.xlu0.b32.cont [7/16] 0.0, 128
        %1551 = vxpose.xlu0.b32.cont [8/16] 0.0, 128
        %1552 = vxpose.xlu0.b32.cont [9/16] 0.0, 128
        %1553 = vxpose.xlu0.b32.cont [10/16] 0.0, 128
        %1554 = vxpose.xlu0.b32.cont [11/16] 0.0, 128
        %1555 = vxpose.xlu0.b32.cont [12/16] 0.0, 128
        %1556 = vxpose.xlu0.b32.cont [13/16] 0.0, 128
        %1557 = vxpose.xlu0.b32.cont [14/16] 0.0, 128
        %1558 = vxpose.xlu0.b32.cont [15/16] 0.0, 128
        %1559 = vxpose.xlu0.b32.end [16/16] 0.0, 128
        %v1560 = vpop.trf.xlu0
        %v1561 = vpop.trf.xlu0
        %v1562 = vpop.trf.xlu0
        %v1563 = vpop.trf.xlu0
        %v1564 = vpop.trf.xlu0
        %v1565 = vpop.trf.xlu0
        %v1566 = vpop.trf.xlu0
        %v1567 = vpop.trf.xlu0
        %v1568 = vpop.trf.xlu0
        %v1569 = vpop.trf.xlu0
        %v1570 = vpop.trf.xlu0
        %v1571 = vpop.trf.xlu0
        %v1572 = vpop.trf.xlu0
        %v1573 = vpop.trf.xlu0
        %v1574 = vpop.trf.xlu0
        %v1575 = vpop.trf.xlu0
        %1577 = vrot.lane.b32.xlu0 %v1131, 96
        %v1578 = vpop.permute.xlu0 %1577
        %v1581 = vsel %vm1180, %v1560, 0
        %v1584 = vsel %vm1180, %v1561, 0
        %v1587 = vsel %vm1180, %v1562, 0
        %v1590 = vsel %vm1180, %v1563, 0
        %1592 = vmatprep.subr.mxu0 0.0
        %1593 = vmatpush1.msra.mxu0 %v1578
        %1594 = vmatprep.subr.mxu0 0.0
        %1595 = vmatpush1.msra.mxu0 0.0
        %1596 = vmatprep.subr.mxu0 0.0
        %1597 = vmatpush1.msra.mxu0 0.0
        %1598 = vmatprep.subr.mxu0 0.0
        %1599 = vmatpush1.msra.mxu0 0.0
        %1600 = vmatprep.subr.mxu0 0.0
        %1601 = vmatpush1.msra.mxu0 0.0
        %1602 = vmatprep.subr.mxu0 0.0
        %1603 = vmatpush1.msra.mxu0 0.0
        %1604 = vmatprep.subr.mxu0 0.0
        %1605 = vmatpush1.msra.mxu0 0.0
        %1606 = vmatprep.subr.mxu0 0.0
        %1607 = vmatpush1.msra.mxu0 0.0
        %1608 = vmatprep.subr.mxu0 0.0
        %1609 = vmatpush1.msra.mxu0 0.0
        %1610 = vmatprep.subr.mxu0 0.0
        %1611 = vmatpush1.msra.mxu0 0.0
        %1612 = vmatprep.subr.mxu0 0.0
        %1613 = vmatpush1.msra.mxu0 0.0
        %1614 = vmatprep.subr.mxu0 0.0
        %1615 = vmatpush1.msra.mxu0 0.0
        %1616 = vmatprep.subr.mxu0 0.0
        %1617 = vmatpush1.msra.mxu0 0.0
        %1618 = vmatprep.subr.mxu0 0.0
        %1619 = vmatpush1.msra.mxu0 0.0
        %1620 = vmatprep.subr.mxu0 0.0
        %1621 = vmatpush1.msra.mxu0 0.0
        %1622 = vmatprep.subr.mxu0 0.0
        %1623 = vmatpush1.msra.mxu0 0.0
        %1624 = vmatprep.subr.mxu0 0.0
        %1625 = vmatpush1.msra.mxu0 0.0
        %1626 = vmatprep.subr.mxu0 0.0
        %1627 = vmatpush1.msra.mxu0 0.0
        %1628 = vmatprep.subr.mxu0 0.0
        %1629 = vmatpush1.msra.mxu0 0.0
        %1630 = vmatprep.subr.mxu0 0.0
        %1631 = vmatpush1.msra.mxu0 0.0
        %1632 = vmatprep.subr.mxu0 0.0
        %1633 = vmatpush1.msra.mxu0 0.0
        %1634 = vmatprep.subr.mxu0 0.0
        %1635 = vmatpush1.msra.mxu0 0.0
        %1636 = vmatprep.subr.mxu0 0.0
        %1637 = vmatpush1.msra.mxu0 0.0
        %1638 = vmatprep.subr.mxu0 0.0
        %1639 = vmatpush1.msra.mxu0 0.0
        %1640 = vmatprep.subr.mxu0 0.0
        %1641 = vmatpush1.msra.mxu0 0.0
        %1642 = vmatprep.subr.mxu0 0.0
        %1643 = vmatpush1.msra.mxu0 0.0
        %1644 = vmatprep.subr.mxu0 0.0
        %1645 = vmatpush1.msra.mxu0 0.0
        %1646 = vmatprep.subr.mxu0 0.0
        %1647 = vmatpush1.msra.mxu0 0.0
        %1648 = vmatprep.subr.mxu0 0.0
        %1649 = vmatpush1.msra.mxu0 0.0
        %1650 = vmatprep.subr.mxu0 0.0
        %1651 = vmatpush1.msra.mxu0 0.0
        %1652 = vmatprep.subr.mxu0 0.0
        %1653 = vmatpush1.msra.mxu0 0.0
        %1654 = vmatprep.subr.mxu0 0.0
        %1655 = vmatpush1.msra.mxu0 0.0
        %1656 = vmatprep.mubr.f32.mxu0 0.0
        %1657 = vmatmul.mubr.f32.gmra.mrb[0].mxu0 %v1581
        %v1658 = vpop.f32.mrb[0].mxu0
        %v1659 = vadd.f32 0.0, %v1658
        %v1660 = vpop.f32.mrb[0].mxu0
        %1661 = vmatprep.mubr.f32.mxu0 0.0
        %1662 = vmatmul.mubr.f32.gmra.mrb[0].mxu0 %v1584
        %v1663 = vpop.f32.mrb[0].mxu0
        %v1664 = vadd.f32 0.0, %v1663
        %v1665 = vpop.f32.mrb[0].mxu0
        %1666 = vmatprep.mubr.f32.mxu0 0.0
        %1667 = vmatmul.mubr.f32.gmra.mrb[0].mxu0 %v1587
        %v1668 = vpop.f32.mrb[0].mxu0
        %v1669 = vadd.f32 0.0, %v1668
        %v1670 = vpop.f32.mrb[0].mxu0
        %1671 = vmatprep.mubr.f32.mxu0 0.0
        %1672 = vmatmul.mubr.f32.gmra.mrb[0].mxu0 %v1590
        %v1673 = vpop.f32.mrb[0].mxu0
        %v1674 = vadd.f32 0.0, %v1673
        %v1675 = vpop.f32.mrb[0].mxu0
        %1676 = vdwg.mxu0
        %1677 = vxpose.xlu0.b32.start [1/16] %v1132, 128
        %1678 = vxpose.xlu0.b32.cont [2/16] 0.0, 128
        %1679 = vxpose.xlu0.b32.cont [3/16] 0.0, 128
        %1680 = vxpose.xlu0.b32.cont [4/16] 0.0, 128
        %1681 = vxpose.xlu0.b32.cont [5/16] 0.0, 128
        %1682 = vxpose.xlu0.b32.cont [6/16] 0.0, 128
        %1683 = vxpose.xlu0.b32.cont [7/16] 0.0, 128
        %1684 = vxpose.xlu0.b32.cont [8/16] 0.0, 128
        %1685 = vxpose.xlu0.b32.cont [9/16] 0.0, 128
        %1686 = vxpose.xlu0.b32.cont [10/16] 0.0, 128
        %1687 = vxpose.xlu0.b32.cont [11/16] 0.0, 128
        %1688 = vxpose.xlu0.b32.cont [12/16] 0.0, 128
        %1689 = vxpose.xlu0.b32.cont [13/16] 0.0, 128
        %1690 = vxpose.xlu0.b32.cont [14/16] 0.0, 128
        %1691 = vxpose.xlu0.b32.cont [15/16] 0.0, 128
        %1692 = vxpose.xlu0.b32.end [16/16] 0.0, 128
        %v1693 = vpop.trf.xlu0
        %v1694 = vpop.trf.xlu0
        %v1695 = vpop.trf.xlu0
        %v1696 = vpop.trf.xlu0
        %v1697 = vpop.trf.xlu0
        %v1698 = vpop.trf.xlu0
        %v1699 = vpop.trf.xlu0
        %v1700 = vpop.trf.xlu0
        %v1701 = vpop.trf.xlu0
        %v1702 = vpop.trf.xlu0
        %v1703 = vpop.trf.xlu0
        %v1704 = vpop.trf.xlu0
        %v1705 = vpop.trf.xlu0
        %v1706 = vpop.trf.xlu0
        %v1707 = vpop.trf.xlu0
        %v1708 = vpop.trf.xlu0
        %1710 = vrot.lane.b32.xlu0 %v1132, 96
        %v1711 = vpop.permute.xlu0 %1710
        %v1714 = vsel %vm1180, %v1693, 0
        %v1717 = vsel %vm1180, %v1694, 0
        %v1720 = vsel %vm1180, %v1695, 0
        %v1723 = vsel %vm1180, %v1696, 0
        %1725 = vmatprep.subr.mxu0 0.0
        %1726 = vmatpush1.msra.mxu0 %v1711
        %1727 = vmatprep.subr.mxu0 0.0
        %1728 = vmatpush1.msra.mxu0 0.0
        %1729 = vmatprep.subr.mxu0 0.0
        %1730 = vmatpush1.msra.mxu0 0.0
        %1731 = vmatprep.subr.mxu0 0.0
        %1732 = vmatpush1.msra.mxu0 0.0
        %1733 = vmatprep.subr.mxu0 0.0
        %1734 = vmatpush1.msra.mxu0 0.0
        %1735 = vmatprep.subr.mxu0 0.0
        %1736 = vmatpush1.msra.mxu0 0.0
        %1737 = vmatprep.subr.mxu0 0.0
        %1738 = vmatpush1.msra.mxu0 0.0
        %1739 = vmatprep.subr.mxu0 0.0
        %1740 = vmatpush1.msra.mxu0 0.0
        %1741 = vmatprep.subr.mxu0 0.0
        %1742 = vmatpush1.msra.mxu0 0.0
        %1743 = vmatprep.subr.mxu0 0.0
        %1744 = vmatpush1.msra.mxu0 0.0
        %1745 = vmatprep.subr.mxu0 0.0
        %1746 = vmatpush1.msra.mxu0 0.0
        %1747 = vmatprep.subr.mxu0 0.0
        %1748 = vmatpush1.msra.mxu0 0.0
        %1749 = vmatprep.subr.mxu0 0.0
        %1750 = vmatpush1.msra.mxu0 0.0
        %1751 = vmatprep.subr.mxu0 0.0
        %1752 = vmatpush1.msra.mxu0 0.0
        %1753 = vmatprep.subr.mxu0 0.0
        %1754 = vmatpush1.msra.mxu0 0.0
        %1755 = vmatprep.subr.mxu0 0.0
        %1756 = vmatpush1.msra.mxu0 0.0
        %1757 = vmatprep.subr.mxu0 0.0
        %1758 = vmatpush1.msra.mxu0 0.0
        %1759 = vmatprep.subr.mxu0 0.0
        %1760 = vmatpush1.msra.mxu0 0.0
        %1761 = vmatprep.subr.mxu0 0.0
        %1762 = vmatpush1.msra.mxu0 0.0
        %1763 = vmatprep.subr.mxu0 0.0
        %1764 = vmatpush1.msra.mxu0 0.0
        %1765 = vmatprep.subr.mxu0 0.0
        %1766 = vmatpush1.msra.mxu0 0.0
        %1767 = vmatprep.subr.mxu0 0.0
        %1768 = vmatpush1.msra.mxu0 0.0
        %1769 = vmatprep.subr.mxu0 0.0
        %1770 = vmatpush1.msra.mxu0 0.0
        %1771 = vmatprep.subr.mxu0 0.0
        %1772 = vmatpush1.msra.mxu0 0.0
        %1773 = vmatprep.subr.mxu0 0.0
        %1774 = vmatpush1.msra.mxu0 0.0
        %1775 = vmatprep.subr.mxu0 0.0
        %1776 = vmatpush1.msra.mxu0 0.0
        %1777 = vmatprep.subr.mxu0 0.0
        %1778 = vmatpush1.msra.mxu0 0.0
        %1779 = vmatprep.subr.mxu0 0.0
        %1780 = vmatpush1.msra.mxu0 0.0
        %1781 = vmatprep.subr.mxu0 0.0
        %1782 = vmatpush1.msra.mxu0 0.0
        %1783 = vmatprep.subr.mxu0 0.0
        %1784 = vmatpush1.msra.mxu0 0.0
        %1785 = vmatprep.subr.mxu0 0.0
        %1786 = vmatpush1.msra.mxu0 0.0
        %1787 = vmatprep.subr.mxu0 0.0
        %1788 = vmatpush1.msra.mxu0 0.0
        %1789 = vmatprep.mubr.f32.mxu0 0.0
        %1790 = vmatmul.mubr.f32.gmra.mrb[0].mxu0 %v1714
        %v1791 = vpop.f32.mrb[0].mxu0
        %v1792 = vadd.f32 0.0, %v1791
        %v1793 = vpop.f32.mrb[0].mxu0
        %1794 = vmatprep.mubr.f32.mxu0 0.0
        %1795 = vmatmul.mubr.f32.gmra.mrb[0].mxu0 %v1717
        %v1796 = vpop.f32.mrb[0].mxu0
        %v1797 = vadd.f32 0.0, %v1796
        %v1798 = vpop.f32.mrb[0].mxu0
        %1799 = vmatprep.mubr.f32.mxu0 0.0
        %1800 = vmatmul.mubr.f32.gmra.mrb[0].mxu0 %v1720
        %v1801 = vpop.f32.mrb[0].mxu0
        %v1802 = vadd.f32 0.0, %v1801
        %v1803 = vpop.f32.mrb[0].mxu0
        %1804 = vmatprep.mubr.f32.mxu0 0.0
        %1805 = vmatmul.mubr.f32.gmra.mrb[0].mxu0 %v1723
        %v1806 = vpop.f32.mrb[0].mxu0
        %v1807 = vadd.f32 0.0, %v1806
        %v1808 = vpop.f32.mrb[0].mxu0
        %1809 = vdwg.mxu0
        %1810 = vxpose.xlu0.b32.start [1/16] %v1133, 128
        %1811 = vxpose.xlu0.b32.cont [2/16] 0.0, 128
        %1812 = vxpose.xlu0.b32.cont [3/16] 0.0, 128
        %1813 = vxpose.xlu0.b32.cont [4/16] 0.0, 128
        %1814 = vxpose.xlu0.b32.cont [5/16] 0.0, 128
        %1815 = vxpose.xlu0.b32.cont [6/16] 0.0, 128
        %1816 = vxpose.xlu0.b32.cont [7/16] 0.0, 128
        %1817 = vxpose.xlu0.b32.cont [8/16] 0.0, 128
        %1818 = vxpose.xlu0.b32.cont [9/16] 0.0, 128
        %1819 = vxpose.xlu0.b32.cont [10/16] 0.0, 128
        %1820 = vxpose.xlu0.b32.cont [11/16] 0.0, 128
        %1821 = vxpose.xlu0.b32.cont [12/16] 0.0, 128
        %1822 = vxpose.xlu0.b32.cont [13/16] 0.0, 128
        %1823 = vxpose.xlu0.b32.cont [14/16] 0.0, 128
        %1824 = vxpose.xlu0.b32.cont [15/16] 0.0, 128
        %1825 = vxpose.xlu0.b32.end [16/16] 0.0, 128
        %v1826 = vpop.trf.xlu0
        %v1827 = vpop.trf.xlu0
        %v1828 = vpop.trf.xlu0
        %v1829 = vpop.trf.xlu0
        %v1830 = vpop.trf.xlu0
        %v1831 = vpop.trf.xlu0
        %v1832 = vpop.trf.xlu0
        %v1833 = vpop.trf.xlu0
        %v1834 = vpop.trf.xlu0
        %v1835 = vpop.trf.xlu0
        %v1836 = vpop.trf.xlu0
        %v1837 = vpop.trf.xlu0
        %v1838 = vpop.trf.xlu0
        %v1839 = vpop.trf.xlu0
        %v1840 = vpop.trf.xlu0
        %v1841 = vpop.trf.xlu0
        %1843 = vrot.lane.b32.xlu0 %v1133, 96
        %v1844 = vpop.permute.xlu0 %1843
        %v1847 = vsel %vm1180, %v1826, 0
        %v1850 = vsel %vm1180, %v1827, 0
        %v1853 = vsel %vm1180, %v1828, 0
        %v1856 = vsel %vm1180, %v1829, 0
        %1858 = vmatprep.subr.mxu0 0.0
        %1859 = vmatpush1.msra.mxu0 %v1844
        %1860 = vmatprep.subr.mxu0 0.0
        %1861 = vmatpush1.msra.mxu0 0.0
        %1862 = vmatprep.subr.mxu0 0.0
        %1863 = vmatpush1.msra.mxu0 0.0
        %1864 = vmatprep.subr.mxu0 0.0
        %1865 = vmatpush1.msra.mxu0 0.0
        %1866 = vmatprep.subr.mxu0 0.0
        %1867 = vmatpush1.msra.mxu0 0.0
        %1868 = vmatprep.subr.mxu0 0.0
        %1869 = vmatpush1.msra.mxu0 0.0
        %1870 = vmatprep.subr.mxu0 0.0
        %1871 = vmatpush1.msra.mxu0 0.0
        %1872 = vmatprep.subr.mxu0 0.0
        %1873 = vmatpush1.msra.mxu0 0.0
        %1874 = vmatprep.subr.mxu0 0.0
        %1875 = vmatpush1.msra.mxu0 0.0
        %1876 = vmatprep.subr.mxu0 0.0
        %1877 = vmatpush1.msra.mxu0 0.0
        %1878 = vmatprep.subr.mxu0 0.0
        %1879 = vmatpush1.msra.mxu0 0.0
        %1880 = vmatprep.subr.mxu0 0.0
        %1881 = vmatpush1.msra.mxu0 0.0
        %1882 = vmatprep.subr.mxu0 0.0
        %1883 = vmatpush1.msra.mxu0 0.0
        %1884 = vmatprep.subr.mxu0 0.0
        %1885 = vmatpush1.msra.mxu0 0.0
        %1886 = vmatprep.subr.mxu0 0.0
        %1887 = vmatpush1.msra.mxu0 0.0
        %1888 = vmatprep.subr.mxu0 0.0
        %1889 = vmatpush1.msra.mxu0 0.0
        %1890 = vmatprep.subr.mxu0 0.0
        %1891 = vmatpush1.msra.mxu0 0.0
        %1892 = vmatprep.subr.mxu0 0.0
        %1893 = vmatpush1.msra.mxu0 0.0
        %1894 = vmatprep.subr.mxu0 0.0
        %1895 = vmatpush1.msra.mxu0 0.0
        %1896 = vmatprep.subr.mxu0 0.0
        %1897 = vmatpush1.msra.mxu0 0.0
        %1898 = vmatprep.subr.mxu0 0.0
        %1899 = vmatpush1.msra.mxu0 0.0
        %1900 = vmatprep.subr.mxu0 0.0
        %1901 = vmatpush1.msra.mxu0 0.0
        %1902 = vmatprep.subr.mxu0 0.0
        %1903 = vmatpush1.msra.mxu0 0.0
        %1904 = vmatprep.subr.mxu0 0.0
        %1905 = vmatpush1.msra.mxu0 0.0
        %1906 = vmatprep.subr.mxu0 0.0
        %1907 = vmatpush1.msra.mxu0 0.0
        %1908 = vmatprep.subr.mxu0 0.0
        %1909 = vmatpush1.msra.mxu0 0.0
        %1910 = vmatprep.subr.mxu0 0.0
        %1911 = vmatpush1.msra.mxu0 0.0
        %1912 = vmatprep.subr.mxu0 0.0
        %1913 = vmatpush1.msra.mxu0 0.0
        %1914 = vmatprep.subr.mxu0 0.0
        %1915 = vmatpush1.msra.mxu0 0.0
        %1916 = vmatprep.subr.mxu0 0.0
        %1917 = vmatpush1.msra.mxu0 0.0
        %1918 = vmatprep.subr.mxu0 0.0
        %1919 = vmatpush1.msra.mxu0 0.0
        %1920 = vmatprep.subr.mxu0 0.0
        %1921 = vmatpush1.msra.mxu0 0.0
        %1922 = vmatprep.mubr.f32.mxu0 0.0
        %1923 = vmatmul.mubr.f32.gmra.mrb[0].mxu0 %v1847
        %v1924 = vpop.f32.mrb[0].mxu0
        %v1925 = vadd.f32 0.0, %v1924
        %v1926 = vpop.f32.mrb[0].mxu0
        %1927 = vmatprep.mubr.f32.mxu0 0.0
        %1928 = vmatmul.mubr.f32.gmra.mrb[0].mxu0 %v1850
        %v1929 = vpop.f32.mrb[0].mxu0
        %v1930 = vadd.f32 0.0, %v1929
        %v1931 = vpop.f32.mrb[0].mxu0
        %1932 = vmatprep.mubr.f32.mxu0 0.0
        %1933 = vmatmul.mubr.f32.gmra.mrb[0].mxu0 %v1853
        %v1934 = vpop.f32.mrb[0].mxu0
        %v1935 = vadd.f32 0.0, %v1934
        %v1936 = vpop.f32.mrb[0].mxu0
        %1937 = vmatprep.mubr.f32.mxu0 0.0
        %1938 = vmatmul.mubr.f32.gmra.mrb[0].mxu0 %v1856
        %v1939 = vpop.f32.mrb[0].mxu0
        %v1940 = vadd.f32 0.0, %v1939
        %v1941 = vpop.f32.mrb[0].mxu0
        %1942 = vdwg.mxu0
        %1943 = vxpose.xlu0.b32.start [1/16] %v1134, 128
        %1944 = vxpose.xlu0.b32.cont [2/16] 0.0, 128
        %1945 = vxpose.xlu0.b32.cont [3/16] 0.0, 128
        %1946 = vxpose.xlu0.b32.cont [4/16] 0.0, 128
        %1947 = vxpose.xlu0.b32.cont [5/16] 0.0, 128
        %1948 = vxpose.xlu0.b32.cont [6/16] 0.0, 128
        %1949 = vxpose.xlu0.b32.cont [7/16] 0.0, 128
        %1950 = vxpose.xlu0.b32.cont [8/16] 0.0, 128
        %1951 = vxpose.xlu0.b32.cont [9/16] 0.0, 128
        %1952 = vxpose.xlu0.b32.cont [10/16] 0.0, 128
        %1953 = vxpose.xlu0.b32.cont [11/16] 0.0, 128
        %1954 = vxpose.xlu0.b32.cont [12/16] 0.0, 128
        %1955 = vxpose.xlu0.b32.cont [13/16] 0.0, 128
        %1956 = vxpose.xlu0.b32.cont [14/16] 0.0, 128
        %1957 = vxpose.xlu0.b32.cont [15/16] 0.0, 128
        %1958 = vxpose.xlu0.b32.end [16/16] 0.0, 128
        %v1959 = vpop.trf.xlu0
        %v1960 = vpop.trf.xlu0
        %v1961 = vpop.trf.xlu0
        %v1962 = vpop.trf.xlu0
        %v1963 = vpop.trf.xlu0
        %v1964 = vpop.trf.xlu0
        %v1965 = vpop.trf.xlu0
        %v1966 = vpop.trf.xlu0
        %v1967 = vpop.trf.xlu0
        %v1968 = vpop.trf.xlu0
        %v1969 = vpop.trf.xlu0
        %v1970 = vpop.trf.xlu0
        %v1971 = vpop.trf.xlu0
        %v1972 = vpop.trf.xlu0
        %v1973 = vpop.trf.xlu0
        %v1974 = vpop.trf.xlu0
        %1976 = vrot.lane.b32.xlu0 %v1134, 96
        %v1977 = vpop.permute.xlu0 %1976
        %v1980 = vsel %vm1180, %v1959, 0
        %v1983 = vsel %vm1180, %v1960, 0
        %v1986 = vsel %vm1180, %v1961, 0
        %v1989 = vsel %vm1180, %v1962, 0
        %1991 = vmatprep.subr.mxu0 0.0
        %1992 = vmatpush1.msra.mxu0 %v1977
        %1993 = vmatprep.subr.mxu0 0.0
        %1994 = vmatpush1.msra.mxu0 0.0
        %1995 = vmatprep.subr.mxu0 0.0
        %1996 = vmatpush1.msra.mxu0 0.0
        %1997 = vmatprep.subr.mxu0 0.0
        %1998 = vmatpush1.msra.mxu0 0.0
        %1999 = vmatprep.subr.mxu0 0.0
        %2000 = vmatpush1.msra.mxu0 0.0
        %2001 = vmatprep.subr.mxu0 0.0
        %2002 = vmatpush1.msra.mxu0 0.0
        %2003 = vmatprep.subr.mxu0 0.0
        %2004 = vmatpush1.msra.mxu0 0.0
        %2005 = vmatprep.subr.mxu0 0.0
        %2006 = vmatpush1.msra.mxu0 0.0
        %2007 = vmatprep.subr.mxu0 0.0
        %2008 = vmatpush1.msra.mxu0 0.0
        %2009 = vmatprep.subr.mxu0 0.0
        %2010 = vmatpush1.msra.mxu0 0.0
        %2011 = vmatprep.subr.mxu0 0.0
        %2012 = vmatpush1.msra.mxu0 0.0
        %2013 = vmatprep.subr.mxu0 0.0
        %2014 = vmatpush1.msra.mxu0 0.0
        %2015 = vmatprep.subr.mxu0 0.0
        %2016 = vmatpush1.msra.mxu0 0.0
        %2017 = vmatprep.subr.mxu0 0.0
        %2018 = vmatpush1.msra.mxu0 0.0
        %2019 = vmatprep.subr.mxu0 0.0
        %2020 = vmatpush1.msra.mxu0 0.0
        %2021 = vmatprep.subr.mxu0 0.0
        %2022 = vmatpush1.msra.mxu0 0.0
        %2023 = vmatprep.subr.mxu0 0.0
        %2024 = vmatpush1.msra.mxu0 0.0
        %2025 = vmatprep.subr.mxu0 0.0
        %2026 = vmatpush1.msra.mxu0 0.0
        %2027 = vmatprep.subr.mxu0 0.0
        %2028 = vmatpush1.msra.mxu0 0.0
        %2029 = vmatprep.subr.mxu0 0.0
        %2030 = vmatpush1.msra.mxu0 0.0
        %2031 = vmatprep.subr.mxu0 0.0
        %2032 = vmatpush1.msra.mxu0 0.0
        %2033 = vmatprep.subr.mxu0 0.0
        %2034 = vmatpush1.msra.mxu0 0.0
        %2035 = vmatprep.subr.mxu0 0.0
        %2036 = vmatpush1.msra.mxu0 0.0
        %2037 = vmatprep.subr.mxu0 0.0
        %2038 = vmatpush1.msra.mxu0 0.0
        %2039 = vmatprep.subr.mxu0 0.0
        %2040 = vmatpush1.msra.mxu0 0.0
        %2041 = vmatprep.subr.mxu0 0.0
        %2042 = vmatpush1.msra.mxu0 0.0
        %2043 = vmatprep.subr.mxu0 0.0
        %2044 = vmatpush1.msra.mxu0 0.0
        %2045 = vmatprep.subr.mxu0 0.0
        %2046 = vmatpush1.msra.mxu0 0.0
        %2047 = vmatprep.subr.mxu0 0.0
        %2048 = vmatpush1.msra.mxu0 0.0
        %2049 = vmatprep.subr.mxu0 0.0
        %2050 = vmatpush1.msra.mxu0 0.0
        %2051 = vmatprep.subr.mxu0 0.0
        %2052 = vmatpush1.msra.mxu0 0.0
        %2053 = vmatprep.subr.mxu0 0.0
        %2054 = vmatpush1.msra.mxu0 0.0
        %2055 = vmatprep.mubr.f32.mxu0 0.0
        %2056 = vmatmul.mubr.f32.gmra.mrb[0].mxu0 %v1980
        %v2057 = vpop.f32.mrb[0].mxu0
        %v2058 = vadd.f32 0.0, %v2057
        %v2059 = vpop.f32.mrb[0].mxu0
        %2060 = vmatprep.mubr.f32.mxu0 0.0
        %2061 = vmatmul.mubr.f32.gmra.mrb[0].mxu0 %v1983
        %v2062 = vpop.f32.mrb[0].mxu0
        %v2063 = vadd.f32 0.0, %v2062
        %v2064 = vpop.f32.mrb[0].mxu0
        %2065 = vmatprep.mubr.f32.mxu0 0.0
        %2066 = vmatmul.mubr.f32.gmra.mrb[0].mxu0 %v1986
        %v2067 = vpop.f32.mrb[0].mxu0
        %v2068 = vadd.f32 0.0, %v2067
        %v2069 = vpop.f32.mrb[0].mxu0
        %2070 = vmatprep.mubr.f32.mxu0 0.0
        %2071 = vmatmul.mubr.f32.gmra.mrb[0].mxu0 %v1989
        %v2072 = vpop.f32.mrb[0].mxu0
        %v2073 = vadd.f32 0.0, %v2072
        %v2074 = vpop.f32.mrb[0].mxu0
        %2075 = vdwg.mxu0
        %2076 = vxpose.xlu0.b32.start [1/16] %v1135, 128
        %2077 = vxpose.xlu0.b32.cont [2/16] 0.0, 128
        %2078 = vxpose.xlu0.b32.cont [3/16] 0.0, 128
        %2079 = vxpose.xlu0.b32.cont [4/16] 0.0, 128
        %2080 = vxpose.xlu0.b32.cont [5/16] 0.0, 128
        %2081 = vxpose.xlu0.b32.cont [6/16] 0.0, 128
        %2082 = vxpose.xlu0.b32.cont [7/16] 0.0, 128
        %2083 = vxpose.xlu0.b32.cont [8/16] 0.0, 128
        %2084 = vxpose.xlu0.b32.cont [9/16] 0.0, 128
        %2085 = vxpose.xlu0.b32.cont [10/16] 0.0, 128
        %2086 = vxpose.xlu0.b32.cont [11/16] 0.0, 128
        %2087 = vxpose.xlu0.b32.cont [12/16] 0.0, 128
        %2088 = vxpose.xlu0.b32.cont [13/16] 0.0, 128
        %2089 = vxpose.xlu0.b32.cont [14/16] 0.0, 128
        %2090 = vxpose.xlu0.b32.cont [15/16] 0.0, 128
        %2091 = vxpose.xlu0.b32.end [16/16] 0.0, 128
        %v2092 = vpop.trf.xlu0
        %v2093 = vpop.trf.xlu0
        %v2094 = vpop.trf.xlu0
        %v2095 = vpop.trf.xlu0
        %v2096 = vpop.trf.xlu0
        %v2097 = vpop.trf.xlu0
        %v2098 = vpop.trf.xlu0
        %v2099 = vpop.trf.xlu0
        %v2100 = vpop.trf.xlu0
        %v2101 = vpop.trf.xlu0
        %v2102 = vpop.trf.xlu0
        %v2103 = vpop.trf.xlu0
        %v2104 = vpop.trf.xlu0
        %v2105 = vpop.trf.xlu0
        %v2106 = vpop.trf.xlu0
        %v2107 = vpop.trf.xlu0
        %2109 = vrot.lane.b32.xlu0 %v1135, 96
        %v2110 = vpop.permute.xlu0 %2109
        %v2113 = vsel %vm1180, %v2092, 0
        %v2116 = vsel %vm1180, %v2093, 0
        %v2119 = vsel %vm1180, %v2094, 0
        %v2122 = vsel %vm1180, %v2095, 0
        %2124 = vmatprep.subr.mxu0 0.0
        %2125 = vmatpush1.msra.mxu0 %v2110
        %2126 = vmatprep.subr.mxu0 0.0
        %2127 = vmatpush1.msra.mxu0 0.0
        %2128 = vmatprep.subr.mxu0 0.0
        %2129 = vmatpush1.msra.mxu0 0.0
        %2130 = vmatprep.subr.mxu0 0.0
        %2131 = vmatpush1.msra.mxu0 0.0
        %2132 = vmatprep.subr.mxu0 0.0
        %2133 = vmatpush1.msra.mxu0 0.0
        %2134 = vmatprep.subr.mxu0 0.0
        %2135 = vmatpush1.msra.mxu0 0.0
        %2136 = vmatprep.subr.mxu0 0.0
        %2137 = vmatpush1.msra.mxu0 0.0
        %2138 = vmatprep.subr.mxu0 0.0
        %2139 = vmatpush1.msra.mxu0 0.0
        %2140 = vmatprep.subr.mxu0 0.0
        %2141 = vmatpush1.msra.mxu0 0.0
        %2142 = vmatprep.subr.mxu0 0.0
        %2143 = vmatpush1.msra.mxu0 0.0
        %2144 = vmatprep.subr.mxu0 0.0
        %2145 = vmatpush1.msra.mxu0 0.0
        %2146 = vmatprep.subr.mxu0 0.0
        %2147 = vmatpush1.msra.mxu0 0.0
        %2148 = vmatprep.subr.mxu0 0.0
        %2149 = vmatpush1.msra.mxu0 0.0
        %2150 = vmatprep.subr.mxu0 0.0
        %2151 = vmatpush1.msra.mxu0 0.0
        %2152 = vmatprep.subr.mxu0 0.0
        %2153 = vmatpush1.msra.mxu0 0.0
        %2154 = vmatprep.subr.mxu0 0.0
        %2155 = vmatpush1.msra.mxu0 0.0
        %2156 = vmatprep.subr.mxu0 0.0
        %2157 = vmatpush1.msra.mxu0 0.0
        %2158 = vmatprep.subr.mxu0 0.0
        %2159 = vmatpush1.msra.mxu0 0.0
        %2160 = vmatprep.subr.mxu0 0.0
        %2161 = vmatpush1.msra.mxu0 0.0
        %2162 = vmatprep.subr.mxu0 0.0
        %2163 = vmatpush1.msra.mxu0 0.0
        %2164 = vmatprep.subr.mxu0 0.0
        %2165 = vmatpush1.msra.mxu0 0.0
        %2166 = vmatprep.subr.mxu0 0.0
        %2167 = vmatpush1.msra.mxu0 0.0
        %2168 = vmatprep.subr.mxu0 0.0
        %2169 = vmatpush1.msra.mxu0 0.0
        %2170 = vmatprep.subr.mxu0 0.0
        %2171 = vmatpush1.msra.mxu0 0.0
        %2172 = vmatprep.subr.mxu0 0.0
        %2173 = vmatpush1.msra.mxu0 0.0
        %2174 = vmatprep.subr.mxu0 0.0
        %2175 = vmatpush1.msra.mxu0 0.0
        %2176 = vmatprep.subr.mxu0 0.0
        %2177 = vmatpush1.msra.mxu0 0.0
        %2178 = vmatprep.subr.mxu0 0.0
        %2179 = vmatpush1.msra.mxu0 0.0
        %2180 = vmatprep.subr.mxu0 0.0
        %2181 = vmatpush1.msra.mxu0 0.0
        %2182 = vmatprep.subr.mxu0 0.0
        %2183 = vmatpush1.msra.mxu0 0.0
        %2184 = vmatprep.subr.mxu0 0.0
        %2185 = vmatpush1.msra.mxu0 0.0
        %2186 = vmatprep.subr.mxu0 0.0
        %2187 = vmatpush1.msra.mxu0 0.0
        %2188 = vmatprep.mubr.f32.mxu0 0.0
        %2189 = vmatmul.mubr.f32.gmra.mrb[0].mxu0 %v2113
        %v2190 = vpop.f32.mrb[0].mxu0
        %v2191 = vadd.f32 0.0, %v2190
        %v2192 = vpop.f32.mrb[0].mxu0
        %2193 = vmatprep.mubr.f32.mxu0 0.0
        %2194 = vmatmul.mubr.f32.gmra.mrb[0].mxu0 %v2116
        %v2195 = vpop.f32.mrb[0].mxu0
        %v2196 = vadd.f32 0.0, %v2195
        %v2197 = vpop.f32.mrb[0].mxu0
        %2198 = vmatprep.mubr.f32.mxu0 0.0
        %2199 = vmatmul.mubr.f32.gmra.mrb[0].mxu0 %v2119
        %v2200 = vpop.f32.mrb[0].mxu0
        %v2201 = vadd.f32 0.0, %v2200
        %v2202 = vpop.f32.mrb[0].mxu0
        %2203 = vmatprep.mubr.f32.mxu0 0.0
        %2204 = vmatmul.mubr.f32.gmra.mrb[0].mxu0 %v2122
        %v2205 = vpop.f32.mrb[0].mxu0
        %v2206 = vadd.f32 0.0, %v2205
        %v2207 = vpop.f32.mrb[0].mxu0
        %2208 = vdwg.mxu0
        %2209 = vxpose.xlu0.b32.start [1/16] %v1136, 128
        %2210 = vxpose.xlu0.b32.cont [2/16] 0.0, 128
        %2211 = vxpose.xlu0.b32.cont [3/16] 0.0, 128
        %2212 = vxpose.xlu0.b32.cont [4/16] 0.0, 128
        %2213 = vxpose.xlu0.b32.cont [5/16] 0.0, 128
        %2214 = vxpose.xlu0.b32.cont [6/16] 0.0, 128
        %2215 = vxpose.xlu0.b32.cont [7/16] 0.0, 128
        %2216 = vxpose.xlu0.b32.cont [8/16] 0.0, 128
        %2217 = vxpose.xlu0.b32.cont [9/16] 0.0, 128
        %2218 = vxpose.xlu0.b32.cont [10/16] 0.0, 128
        %2219 = vxpose.xlu0.b32.cont [11/16] 0.0, 128
        %2220 = vxpose.xlu0.b32.cont [12/16] 0.0, 128
        %2221 = vxpose.xlu0.b32.cont [13/16] 0.0, 128
        %2222 = vxpose.xlu0.b32.cont [14/16] 0.0, 128
        %2223 = vxpose.xlu0.b32.cont [15/16] 0.0, 128
        %2224 = vxpose.xlu0.b32.end [16/16] 0.0, 128
        %v2225 = vpop.trf.xlu0
        %v2226 = vpop.trf.xlu0
        %v2227 = vpop.trf.xlu0
        %v2228 = vpop.trf.xlu0
        %v2229 = vpop.trf.xlu0
        %v2230 = vpop.trf.xlu0
        %v2231 = vpop.trf.xlu0
        %v2232 = vpop.trf.xlu0
        %v2233 = vpop.trf.xlu0
        %v2234 = vpop.trf.xlu0
        %v2235 = vpop.trf.xlu0
        %v2236 = vpop.trf.xlu0
        %v2237 = vpop.trf.xlu0
        %v2238 = vpop.trf.xlu0
        %v2239 = vpop.trf.xlu0
        %v2240 = vpop.trf.xlu0
        %2242 = vrot.lane.b32.xlu0 %v1136, 96
        %v2243 = vpop.permute.xlu0 %2242
        %v2246 = vsel %vm1180, %v2225, 0
        %v2249 = vsel %vm1180, %v2226, 0
        %v2252 = vsel %vm1180, %v2227, 0
        %v2255 = vsel %vm1180, %v2228, 0
        %2257 = vmatprep.subr.mxu0 0.0
        %2258 = vmatpush1.msra.mxu0 %v2243
        %2259 = vmatprep.subr.mxu0 0.0
        %2260 = vmatpush1.msra.mxu0 0.0
        %2261 = vmatprep.subr.mxu0 0.0
        %2262 = vmatpush1.msra.mxu0 0.0
        %2263 = vmatprep.subr.mxu0 0.0
        %2264 = vmatpush1.msra.mxu0 0.0
        %2265 = vmatprep.subr.mxu0 0.0
        %2266 = vmatpush1.msra.mxu0 0.0
        %2267 = vmatprep.subr.mxu0 0.0
        %2268 = vmatpush1.msra.mxu0 0.0
        %2269 = vmatprep.subr.mxu0 0.0
        %2270 = vmatpush1.msra.mxu0 0.0
        %2271 = vmatprep.subr.mxu0 0.0
        %2272 = vmatpush1.msra.mxu0 0.0
        %2273 = vmatprep.subr.mxu0 0.0
        %2274 = vmatpush1.msra.mxu0 0.0
        %2275 = vmatprep.subr.mxu0 0.0
        %2276 = vmatpush1.msra.mxu0 0.0
        %2277 = vmatprep.subr.mxu0 0.0
        %2278 = vmatpush1.msra.mxu0 0.0
        %2279 = vmatprep.subr.mxu0 0.0
        %2280 = vmatpush1.msra.mxu0 0.0
        %2281 = vmatprep.subr.mxu0 0.0
        %2282 = vmatpush1.msra.mxu0 0.0
        %2283 = vmatprep.subr.mxu0 0.0
        %2284 = vmatpush1.msra.mxu0 0.0
        %2285 = vmatprep.subr.mxu0 0.0
        %2286 = vmatpush1.msra.mxu0 0.0
        %2287 = vmatprep.subr.mxu0 0.0
        %2288 = vmatpush1.msra.mxu0 0.0
        %2289 = vmatprep.subr.mxu0 0.0
        %2290 = vmatpush1.msra.mxu0 0.0
        %2291 = vmatprep.subr.mxu0 0.0
        %2292 = vmatpush1.msra.mxu0 0.0
        %2293 = vmatprep.subr.mxu0 0.0
        %2294 = vmatpush1.msra.mxu0 0.0
        %2295 = vmatprep.subr.mxu0 0.0
        %2296 = vmatpush1.msra.mxu0 0.0
        %2297 = vmatprep.subr.mxu0 0.0
        %2298 = vmatpush1.msra.mxu0 0.0
        %2299 = vmatprep.subr.mxu0 0.0
        %2300 = vmatpush1.msra.mxu0 0.0
        %2301 = vmatprep.subr.mxu0 0.0
        %2302 = vmatpush1.msra.mxu0 0.0
        %2303 = vmatprep.subr.mxu0 0.0
        %2304 = vmatpush1.msra.mxu0 0.0
        %2305 = vmatprep.subr.mxu0 0.0
        %2306 = vmatpush1.msra.mxu0 0.0
        %2307 = vmatprep.subr.mxu0 0.0
        %2308 = vmatpush1.msra.mxu0 0.0
        %2309 = vmatprep.subr.mxu0 0.0
        %2310 = vmatpush1.msra.mxu0 0.0
        %2311 = vmatprep.subr.mxu0 0.0
        %2312 = vmatpush1.msra.mxu0 0.0
        %2313 = vmatprep.subr.mxu0 0.0
        %2314 = vmatpush1.msra.mxu0 0.0
        %2315 = vmatprep.subr.mxu0 0.0
        %2316 = vmatpush1.msra.mxu0 0.0
        %2317 = vmatprep.subr.mxu0 0.0
        %2318 = vmatpush1.msra.mxu0 0.0
        %2319 = vmatprep.subr.mxu0 0.0
        %2320 = vmatpush1.msra.mxu0 0.0
        %2321 = vmatprep.mubr.f32.mxu0 0.0
        %2322 = vmatmul.mubr.f32.gmra.mrb[0].mxu0 %v2246
        %v2323 = vpop.f32.mrb[0].mxu0
        %v2324 = vadd.f32 0.0, %v2323
        %v2325 = vpop.f32.mrb[0].mxu0
        %2326 = vmatprep.mubr.f32.mxu0 0.0
        %2327 = vmatmul.mubr.f32.gmra.mrb[0].mxu0 %v2249
        %v2328 = vpop.f32.mrb[0].mxu0
        %v2329 = vadd.f32 0.0, %v2328
        %v2330 = vpop.f32.mrb[0].mxu0
        %2331 = vmatprep.mubr.f32.mxu0 0.0
        %2332 = vmatmul.mubr.f32.gmra.mrb[0].mxu0 %v2252
        %v2333 = vpop.f32.mrb[0].mxu0
        %v2334 = vadd.f32 0.0, %v2333
        %v2335 = vpop.f32.mrb[0].mxu0
        %2336 = vmatprep.mubr.f32.mxu0 0.0
        %2337 = vmatmul.mubr.f32.gmra.mrb[0].mxu0 %v2255
        %v2338 = vpop.f32.mrb[0].mxu0
        %v2339 = vadd.f32 0.0, %v2338
        %v2340 = vpop.f32.mrb[0].mxu0
        %2341 = vdwg.mxu0
        %2342 = vxpose.xlu0.b32.start [1/16] %v1137, 128
        %2343 = vxpose.xlu0.b32.cont [2/16] 0.0, 128
        %2344 = vxpose.xlu0.b32.cont [3/16] 0.0, 128
        %2345 = vxpose.xlu0.b32.cont [4/16] 0.0, 128
        %2346 = vxpose.xlu0.b32.cont [5/16] 0.0, 128
        %2347 = vxpose.xlu0.b32.cont [6/16] 0.0, 128
        %2348 = vxpose.xlu0.b32.cont [7/16] 0.0, 128
        %2349 = vxpose.xlu0.b32.cont [8/16] 0.0, 128
        %2350 = vxpose.xlu0.b32.cont [9/16] 0.0, 128
        %2351 = vxpose.xlu0.b32.cont [10/16] 0.0, 128
        %2352 = vxpose.xlu0.b32.cont [11/16] 0.0, 128
        %2353 = vxpose.xlu0.b32.cont [12/16] 0.0, 128
        %2354 = vxpose.xlu0.b32.cont [13/16] 0.0, 128
        %2355 = vxpose.xlu0.b32.cont [14/16] 0.0, 128
        %2356 = vxpose.xlu0.b32.cont [15/16] 0.0, 128
        %2357 = vxpose.xlu0.b32.end [16/16] 0.0, 128
        %v2358 = vpop.trf.xlu0
        %v2359 = vpop.trf.xlu0
        %v2360 = vpop.trf.xlu0
        %v2361 = vpop.trf.xlu0
        %v2362 = vpop.trf.xlu0
        %v2363 = vpop.trf.xlu0
        %v2364 = vpop.trf.xlu0
        %v2365 = vpop.trf.xlu0
        %v2366 = vpop.trf.xlu0
        %v2367 = vpop.trf.xlu0
        %v2368 = vpop.trf.xlu0
        %v2369 = vpop.trf.xlu0
        %v2370 = vpop.trf.xlu0
        %v2371 = vpop.trf.xlu0
        %v2372 = vpop.trf.xlu0
        %v2373 = vpop.trf.xlu0
        %2375 = vrot.lane.b32.xlu0 %v1137, 96
        %v2376 = vpop.permute.xlu0 %2375
        %v2379 = vsel %vm1180, %v2358, 0
        %v2382 = vsel %vm1180, %v2359, 0
        %v2385 = vsel %vm1180, %v2360, 0
        %v2388 = vsel %vm1180, %v2361, 0
        %2390 = vmatprep.subr.mxu0 0.0
        %2391 = vmatpush1.msra.mxu0 %v2376
        %2392 = vmatprep.subr.mxu0 0.0
        %2393 = vmatpush1.msra.mxu0 0.0
        %2394 = vmatprep.subr.mxu0 0.0
        %2395 = vmatpush1.msra.mxu0 0.0
        %2396 = vmatprep.subr.mxu0 0.0
        %2397 = vmatpush1.msra.mxu0 0.0
        %2398 = vmatprep.subr.mxu0 0.0
        %2399 = vmatpush1.msra.mxu0 0.0
        %2400 = vmatprep.subr.mxu0 0.0
        %2401 = vmatpush1.msra.mxu0 0.0
        %2402 = vmatprep.subr.mxu0 0.0
        %2403 = vmatpush1.msra.mxu0 0.0
        %2404 = vmatprep.subr.mxu0 0.0
        %2405 = vmatpush1.msra.mxu0 0.0
        %2406 = vmatprep.subr.mxu0 0.0
        %2407 = vmatpush1.msra.mxu0 0.0
        %2408 = vmatprep.subr.mxu0 0.0
        %2409 = vmatpush1.msra.mxu0 0.0
        %2410 = vmatprep.subr.mxu0 0.0
        %2411 = vmatpush1.msra.mxu0 0.0
        %2412 = vmatprep.subr.mxu0 0.0
        %2413 = vmatpush1.msra.mxu0 0.0
        %2414 = vmatprep.subr.mxu0 0.0
        %2415 = vmatpush1.msra.mxu0 0.0
        %2416 = vmatprep.subr.mxu0 0.0
        %2417 = vmatpush1.msra.mxu0 0.0
        %2418 = vmatprep.subr.mxu0 0.0
        %2419 = vmatpush1.msra.mxu0 0.0
        %2420 = vmatprep.subr.mxu0 0.0
        %2421 = vmatpush1.msra.mxu0 0.0
        %2422 = vmatprep.subr.mxu0 0.0
        %2423 = vmatpush1.msra.mxu0 0.0
        %2424 = vmatprep.subr.mxu0 0.0
        %2425 = vmatpush1.msra.mxu0 0.0
        %2426 = vmatprep.subr.mxu0 0.0
        %2427 = vmatpush1.msra.mxu0 0.0
        %2428 = vmatprep.subr.mxu0 0.0
        %2429 = vmatpush1.msra.mxu0 0.0
        %2430 = vmatprep.subr.mxu0 0.0
        %2431 = vmatpush1.msra.mxu0 0.0
        %2432 = vmatprep.subr.mxu0 0.0
        %2433 = vmatpush1.msra.mxu0 0.0
        %2434 = vmatprep.subr.mxu0 0.0
        %2435 = vmatpush1.msra.mxu0 0.0
        %2436 = vmatprep.subr.mxu0 0.0
        %2437 = vmatpush1.msra.mxu0 0.0
        %2438 = vmatprep.subr.mxu0 0.0
        %2439 = vmatpush1.msra.mxu0 0.0
        %2440 = vmatprep.subr.mxu0 0.0
        %2441 = vmatpush1.msra.mxu0 0.0
        %2442 = vmatprep.subr.mxu0 0.0
        %2443 = vmatpush1.msra.mxu0 0.0
        %2444 = vmatprep.subr.mxu0 0.0
        %2445 = vmatpush1.msra.mxu0 0.0
        %2446 = vmatprep.subr.mxu0 0.0
        %2447 = vmatpush1.msra.mxu0 0.0
        %2448 = vmatprep.subr.mxu0 0.0
        %2449 = vmatpush1.msra.mxu0 0.0
        %2450 = vmatprep.subr.mxu0 0.0
        %2451 = vmatpush1.msra.mxu0 0.0
        %2452 = vmatprep.subr.mxu0 0.0
        %2453 = vmatpush1.msra.mxu0 0.0
        %2454 = vmatprep.mubr.f32.mxu0 0.0
        %2455 = vmatmul.mubr.f32.gmra.mrb[0].mxu0 %v2379
        %v2456 = vpop.f32.mrb[0].mxu0
        %v2457 = vadd.f32 0.0, %v2456
        %v2458 = vpop.f32.mrb[0].mxu0
        %2459 = vmatprep.mubr.f32.mxu0 0.0
        %2460 = vmatmul.mubr.f32.gmra.mrb[0].mxu0 %v2382
        %v2461 = vpop.f32.mrb[0].mxu0
        %v2462 = vadd.f32 0.0, %v2461
        %v2463 = vpop.f32.mrb[0].mxu0
        %2464 = vmatprep.mubr.f32.mxu0 0.0
        %2465 = vmatmul.mubr.f32.gmra.mrb[0].mxu0 %v2385
        %v2466 = vpop.f32.mrb[0].mxu0
        %v2467 = vadd.f32 0.0, %v2466
        %v2468 = vpop.f32.mrb[0].mxu0
        %2469 = vmatprep.mubr.f32.mxu0 0.0
        %2470 = vmatmul.mubr.f32.gmra.mrb[0].mxu0 %v2388
        %v2471 = vpop.f32.mrb[0].mxu0
        %v2472 = vadd.f32 0.0, %v2471
        %v2473 = vpop.f32.mrb[0].mxu0
        %2474 = vdwg.mxu0
        %2475 = vxpose.xlu0.b32.start [1/16] %v1138, 128
        %2476 = vxpose.xlu0.b32.cont [2/16] 0.0, 128
        %2477 = vxpose.xlu0.b32.cont [3/16] 0.0, 128
        %2478 = vxpose.xlu0.b32.cont [4/16] 0.0, 128
        %2479 = vxpose.xlu0.b32.cont [5/16] 0.0, 128
        %2480 = vxpose.xlu0.b32.cont [6/16] 0.0, 128
        %2481 = vxpose.xlu0.b32.cont [7/16] 0.0, 128
        %2482 = vxpose.xlu0.b32.cont [8/16] 0.0, 128
        %2483 = vxpose.xlu0.b32.cont [9/16] 0.0, 128
        %2484 = vxpose.xlu0.b32.cont [10/16] 0.0, 128
        %2485 = vxpose.xlu0.b32.cont [11/16] 0.0, 128
        %2486 = vxpose.xlu0.b32.cont [12/16] 0.0, 128
        %2487 = vxpose.xlu0.b32.cont [13/16] 0.0, 128
        %2488 = vxpose.xlu0.b32.cont [14/16] 0.0, 128
        %2489 = vxpose.xlu0.b32.cont [15/16] 0.0, 128
        %2490 = vxpose.xlu0.b32.end [16/16] 0.0, 128
        %v2491 = vpop.trf.xlu0
        %v2492 = vpop.trf.xlu0
        %v2493 = vpop.trf.xlu0
        %v2494 = vpop.trf.xlu0
        %v2495 = vpop.trf.xlu0
        %v2496 = vpop.trf.xlu0
        %v2497 = vpop.trf.xlu0
        %v2498 = vpop.trf.xlu0
        %v2499 = vpop.trf.xlu0
        %v2500 = vpop.trf.xlu0
        %v2501 = vpop.trf.xlu0
        %v2502 = vpop.trf.xlu0
        %v2503 = vpop.trf.xlu0
        %v2504 = vpop.trf.xlu0
        %v2505 = vpop.trf.xlu0
        %v2506 = vpop.trf.xlu0
        %2508 = vrot.lane.b32.xlu0 %v1138, 96
        %v2509 = vpop.permute.xlu0 %2508
        %v2512 = vsel %vm1180, %v2491, 0
        %v2515 = vsel %vm1180, %v2492, 0
        %v2518 = vsel %vm1180, %v2493, 0
        %v2521 = vsel %vm1180, %v2494, 0
        %2523 = vmatprep.subr.mxu0 0.0
        %2524 = vmatpush1.msra.mxu0 %v2509
        %2525 = vmatprep.subr.mxu0 0.0
        %2526 = vmatpush1.msra.mxu0 0.0
        %2527 = vmatprep.subr.mxu0 0.0
        %2528 = vmatpush1.msra.mxu0 0.0
        %2529 = vmatprep.subr.mxu0 0.0
        %2530 = vmatpush1.msra.mxu0 0.0
        %2531 = vmatprep.subr.mxu0 0.0
        %2532 = vmatpush1.msra.mxu0 0.0
        %2533 = vmatprep.subr.mxu0 0.0
        %2534 = vmatpush1.msra.mxu0 0.0
        %2535 = vmatprep.subr.mxu0 0.0
        %2536 = vmatpush1.msra.mxu0 0.0
        %2537 = vmatprep.subr.mxu0 0.0
        %2538 = vmatpush1.msra.mxu0 0.0
        %2539 = vmatprep.subr.mxu0 0.0
        %2540 = vmatpush1.msra.mxu0 0.0
        %2541 = vmatprep.subr.mxu0 0.0
        %2542 = vmatpush1.msra.mxu0 0.0
        %2543 = vmatprep.subr.mxu0 0.0
        %2544 = vmatpush1.msra.mxu0 0.0
        %2545 = vmatprep.subr.mxu0 0.0
        %2546 = vmatpush1.msra.mxu0 0.0
        %2547 = vmatprep.subr.mxu0 0.0
        %2548 = vmatpush1.msra.mxu0 0.0
        %2549 = vmatprep.subr.mxu0 0.0
        %2550 = vmatpush1.msra.mxu0 0.0
        %2551 = vmatprep.subr.mxu0 0.0
        %2552 = vmatpush1.msra.mxu0 0.0
        %2553 = vmatprep.subr.mxu0 0.0
        %2554 = vmatpush1.msra.mxu0 0.0
        %2555 = vmatprep.subr.mxu0 0.0
        %2556 = vmatpush1.msra.mxu0 0.0
        %2557 = vmatprep.subr.mxu0 0.0
        %2558 = vmatpush1.msra.mxu0 0.0
        %2559 = vmatprep.subr.mxu0 0.0
        %2560 = vmatpush1.msra.mxu0 0.0
        %2561 = vmatprep.subr.mxu0 0.0
        %2562 = vmatpush1.msra.mxu0 0.0
        %2563 = vmatprep.subr.mxu0 0.0
        %2564 = vmatpush1.msra.mxu0 0.0
        %2565 = vmatprep.subr.mxu0 0.0
        %2566 = vmatpush1.msra.mxu0 0.0
        %2567 = vmatprep.subr.mxu0 0.0
        %2568 = vmatpush1.msra.mxu0 0.0
        %2569 = vmatprep.subr.mxu0 0.0
        %2570 = vmatpush1.msra.mxu0 0.0
        %2571 = vmatprep.subr.mxu0 0.0
        %2572 = vmatpush1.msra.mxu0 0.0
        %2573 = vmatprep.subr.mxu0 0.0
        %2574 = vmatpush1.msra.mxu0 0.0
        %2575 = vmatprep.subr.mxu0 0.0
        %2576 = vmatpush1.msra.mxu0 0.0
        %2577 = vmatprep.subr.mxu0 0.0
        %2578 = vmatpush1.msra.mxu0 0.0
        %2579 = vmatprep.subr.mxu0 0.0
        %2580 = vmatpush1.msra.mxu0 0.0
        %2581 = vmatprep.subr.mxu0 0.0
        %2582 = vmatpush1.msra.mxu0 0.0
        %2583 = vmatprep.subr.mxu0 0.0
        %2584 = vmatpush1.msra.mxu0 0.0
        %2585 = vmatprep.subr.mxu0 0.0
        %2586 = vmatpush1.msra.mxu0 0.0
        %2587 = vmatprep.mubr.f32.mxu0 0.0
        %2588 = vmatmul.mubr.f32.gmra.mrb[0].mxu0 %v2512
        %v2589 = vpop.f32.mrb[0].mxu0
        %v2590 = vadd.f32 0.0, %v2589
        %v2591 = vpop.f32.mrb[0].mxu0
        %2592 = vmatprep.mubr.f32.mxu0 0.0
        %2593 = vmatmul.mubr.f32.gmra.mrb[0].mxu0 %v2515
        %v2594 = vpop.f32.mrb[0].mxu0
        %v2595 = vadd.f32 0.0, %v2594
        %v2596 = vpop.f32.mrb[0].mxu0
        %2597 = vmatprep.mubr.f32.mxu0 0.0
        %2598 = vmatmul.mubr.f32.gmra.mrb[0].mxu0 %v2518
        %v2599 = vpop.f32.mrb[0].mxu0
        %v2600 = vadd.f32 0.0, %v2599
        %v2601 = vpop.f32.mrb[0].mxu0
        %2602 = vmatprep.mubr.f32.mxu0 0.0
        %2603 = vmatmul.mubr.f32.gmra.mrb[0].mxu0 %v2521
        %v2604 = vpop.f32.mrb[0].mxu0
        %v2605 = vadd.f32 0.0, %v2604
        %v2606 = vpop.f32.mrb[0].mxu0
        %2607 = vdwg.mxu0
        %2608 = vxpose.xlu0.b32.start [1/16] %v1139, 128
        %2609 = vxpose.xlu0.b32.cont [2/16] 0.0, 128
        %2610 = vxpose.xlu0.b32.cont [3/16] 0.0, 128
        %2611 = vxpose.xlu0.b32.cont [4/16] 0.0, 128
        %2612 = vxpose.xlu0.b32.cont [5/16] 0.0, 128
        %2613 = vxpose.xlu0.b32.cont [6/16] 0.0, 128
        %2614 = vxpose.xlu0.b32.cont [7/16] 0.0, 128
        %2615 = vxpose.xlu0.b32.cont [8/16] 0.0, 128
        %2616 = vxpose.xlu0.b32.cont [9/16] 0.0, 128
        %2617 = vxpose.xlu0.b32.cont [10/16] 0.0, 128
        %2618 = vxpose.xlu0.b32.cont [11/16] 0.0, 128
        %2619 = vxpose.xlu0.b32.cont [12/16] 0.0, 128
        %2620 = vxpose.xlu0.b32.cont [13/16] 0.0, 128
        %2621 = vxpose.xlu0.b32.cont [14/16] 0.0, 128
        %2622 = vxpose.xlu0.b32.cont [15/16] 0.0, 128
        %2623 = vxpose.xlu0.b32.end [16/16] 0.0, 128
        %v2624 = vpop.trf.xlu0
        %v2625 = vpop.trf.xlu0
        %v2626 = vpop.trf.xlu0
        %v2627 = vpop.trf.xlu0
        %v2628 = vpop.trf.xlu0
        %v2629 = vpop.trf.xlu0
        %v2630 = vpop.trf.xlu0
        %v2631 = vpop.trf.xlu0
        %v2632 = vpop.trf.xlu0
        %v2633 = vpop.trf.xlu0
        %v2634 = vpop.trf.xlu0
        %v2635 = vpop.trf.xlu0
        %v2636 = vpop.trf.xlu0
        %v2637 = vpop.trf.xlu0
        %v2638 = vpop.trf.xlu0
        %v2639 = vpop.trf.xlu0
        %2641 = vrot.lane.b32.xlu0 %v1139, 96
        %v2642 = vpop.permute.xlu0 %2641
        %v2645 = vsel %vm1180, %v2624, 0
        %v2648 = vsel %vm1180, %v2625, 0
        %v2651 = vsel %vm1180, %v2626, 0
        %v2654 = vsel %vm1180, %v2627, 0
        %2656 = vmatprep.subr.mxu0 0.0
        %2657 = vmatpush1.msra.mxu0 %v2642
        %2658 = vmatprep.subr.mxu0 0.0
        %2659 = vmatpush1.msra.mxu0 0.0
        %2660 = vmatprep.subr.mxu0 0.0
        %2661 = vmatpush1.msra.mxu0 0.0
        %2662 = vmatprep.subr.mxu0 0.0
        %2663 = vmatpush1.msra.mxu0 0.0
        %2664 = vmatprep.subr.mxu0 0.0
        %2665 = vmatpush1.msra.mxu0 0.0
        %2666 = vmatprep.subr.mxu0 0.0
        %2667 = vmatpush1.msra.mxu0 0.0
        %2668 = vmatprep.subr.mxu0 0.0
        %2669 = vmatpush1.msra.mxu0 0.0
        %2670 = vmatprep.subr.mxu0 0.0
        %2671 = vmatpush1.msra.mxu0 0.0
        %2672 = vmatprep.subr.mxu0 0.0
        %2673 = vmatpush1.msra.mxu0 0.0
        %2674 = vmatprep.subr.mxu0 0.0
        %2675 = vmatpush1.msra.mxu0 0.0
        %2676 = vmatprep.subr.mxu0 0.0
        %2677 = vmatpush1.msra.mxu0 0.0
        %2678 = vmatprep.subr.mxu0 0.0
        %2679 = vmatpush1.msra.mxu0 0.0
        %2680 = vmatprep.subr.mxu0 0.0
        %2681 = vmatpush1.msra.mxu0 0.0
        %2682 = vmatprep.subr.mxu0 0.0
        %2683 = vmatpush1.msra.mxu0 0.0
        %2684 = vmatprep.subr.mxu0 0.0
        %2685 = vmatpush1.msra.mxu0 0.0
        %2686 = vmatprep.subr.mxu0 0.0
        %2687 = vmatpush1.msra.mxu0 0.0
        %2688 = vmatprep.subr.mxu0 0.0
        %2689 = vmatpush1.msra.mxu0 0.0
        %2690 = vmatprep.subr.mxu0 0.0
        %2691 = vmatpush1.msra.mxu0 0.0
        %2692 = vmatprep.subr.mxu0 0.0
        %2693 = vmatpush1.msra.mxu0 0.0
        %2694 = vmatprep.subr.mxu0 0.0
        %2695 = vmatpush1.msra.mxu0 0.0
        %2696 = vmatprep.subr.mxu0 0.0
        %2697 = vmatpush1.msra.mxu0 0.0
        %2698 = vmatprep.subr.mxu0 0.0
        %2699 = vmatpush1.msra.mxu0 0.0
        %2700 = vmatprep.subr.mxu0 0.0
        %2701 = vmatpush1.msra.mxu0 0.0
        %2702 = vmatprep.subr.mxu0 0.0
        %2703 = vmatpush1.msra.mxu0 0.0
        %2704 = vmatprep.subr.mxu0 0.0
        %2705 = vmatpush1.msra.mxu0 0.0
        %2706 = vmatprep.subr.mxu0 0.0
        %2707 = vmatpush1.msra.mxu0 0.0
        %2708 = vmatprep.subr.mxu0 0.0
        %2709 = vmatpush1.msra.mxu0 0.0
        %2710 = vmatprep.subr.mxu0 0.0
        %2711 = vmatpush1.msra.mxu0 0.0
        %2712 = vmatprep.subr.mxu0 0.0
        %2713 = vmatpush1.msra.mxu0 0.0
        %2714 = vmatprep.subr.mxu0 0.0
        %2715 = vmatpush1.msra.mxu0 0.0
        %2716 = vmatprep.subr.mxu0 0.0
        %2717 = vmatpush1.msra.mxu0 0.0
        %2718 = vmatprep.subr.mxu0 0.0
        %2719 = vmatpush1.msra.mxu0 0.0
        %2720 = vmatprep.mubr.f32.mxu0 0.0
        %2721 = vmatmul.mubr.f32.gmra.mrb[0].mxu0 %v2645
        %v2722 = vpop.f32.mrb[0].mxu0
        %v2723 = vadd.f32 0.0, %v2722
        %v2724 = vpop.f32.mrb[0].mxu0
        %2725 = vmatprep.mubr.f32.mxu0 0.0
        %2726 = vmatmul.mubr.f32.gmra.mrb[0].mxu0 %v2648
        %v2727 = vpop.f32.mrb[0].mxu0
        %v2728 = vadd.f32 0.0, %v2727
        %v2729 = vpop.f32.mrb[0].mxu0
        %2730 = vmatprep.mubr.f32.mxu0 0.0
        %2731 = vmatmul.mubr.f32.gmra.mrb[0].mxu0 %v2651
        %v2732 = vpop.f32.mrb[0].mxu0
        %v2733 = vadd.f32 0.0, %v2732
        %v2734 = vpop.f32.mrb[0].mxu0
        %2735 = vmatprep.mubr.f32.mxu0 0.0
        %2736 = vmatmul.mubr.f32.gmra.mrb[0].mxu0 %v2654
        %v2737 = vpop.f32.mrb[0].mxu0
        %v2738 = vadd.f32 0.0, %v2737
        %v2739 = vpop.f32.mrb[0].mxu0
        %2740 = vdwg.mxu0
        %2741 = vxpose.xlu0.b32.start [1/16] %v1140, 128
        %2742 = vxpose.xlu0.b32.cont [2/16] 0.0, 128
        %2743 = vxpose.xlu0.b32.cont [3/16] 0.0, 128
        %2744 = vxpose.xlu0.b32.cont [4/16] 0.0, 128
        %2745 = vxpose.xlu0.b32.cont [5/16] 0.0, 128
        %2746 = vxpose.xlu0.b32.cont [6/16] 0.0, 128
        %2747 = vxpose.xlu0.b32.cont [7/16] 0.0, 128
        %2748 = vxpose.xlu0.b32.cont [8/16] 0.0, 128
        %2749 = vxpose.xlu0.b32.cont [9/16] 0.0, 128
        %2750 = vxpose.xlu0.b32.cont [10/16] 0.0, 128
        %2751 = vxpose.xlu0.b32.cont [11/16] 0.0, 128
        %2752 = vxpose.xlu0.b32.cont [12/16] 0.0, 128
        %2753 = vxpose.xlu0.b32.cont [13/16] 0.0, 128
        %2754 = vxpose.xlu0.b32.cont [14/16] 0.0, 128
        %2755 = vxpose.xlu0.b32.cont [15/16] 0.0, 128
        %2756 = vxpose.xlu0.b32.end [16/16] 0.0, 128
        %v2757 = vpop.trf.xlu0
        %v2758 = vpop.trf.xlu0
        %v2759 = vpop.trf.xlu0
        %v2760 = vpop.trf.xlu0
        %v2761 = vpop.trf.xlu0
        %v2762 = vpop.trf.xlu0
        %v2763 = vpop.trf.xlu0
        %v2764 = vpop.trf.xlu0
        %v2765 = vpop.trf.xlu0
        %v2766 = vpop.trf.xlu0
        %v2767 = vpop.trf.xlu0
        %v2768 = vpop.trf.xlu0
        %v2769 = vpop.trf.xlu0
        %v2770 = vpop.trf.xlu0
        %v2771 = vpop.trf.xlu0
        %v2772 = vpop.trf.xlu0
        %2774 = vrot.lane.b32.xlu0 %v1140, 96
        %v2775 = vpop.permute.xlu0 %2774
        %v2778 = vsel %vm1180, %v2757, 0
        %v2781 = vsel %vm1180, %v2758, 0
        %v2784 = vsel %vm1180, %v2759, 0
        %v2787 = vsel %vm1180, %v2760, 0
        %2789 = vmatprep.subr.mxu0 0.0
        %2790 = vmatpush1.msra.mxu0 %v2775
        %2791 = vmatprep.subr.mxu0 0.0
        %2792 = vmatpush1.msra.mxu0 0.0
        %2793 = vmatprep.subr.mxu0 0.0
        %2794 = vmatpush1.msra.mxu0 0.0
        %2795 = vmatprep.subr.mxu0 0.0
        %2796 = vmatpush1.msra.mxu0 0.0
        %2797 = vmatprep.subr.mxu0 0.0
        %2798 = vmatpush1.msra.mxu0 0.0
        %2799 = vmatprep.subr.mxu0 0.0
        %2800 = vmatpush1.msra.mxu0 0.0
        %2801 = vmatprep.subr.mxu0 0.0
        %2802 = vmatpush1.msra.mxu0 0.0
        %2803 = vmatprep.subr.mxu0 0.0
        %2804 = vmatpush1.msra.mxu0 0.0
        %2805 = vmatprep.subr.mxu0 0.0
        %2806 = vmatpush1.msra.mxu0 0.0
        %2807 = vmatprep.subr.mxu0 0.0
        %2808 = vmatpush1.msra.mxu0 0.0
        %2809 = vmatprep.subr.mxu0 0.0
        %2810 = vmatpush1.msra.mxu0 0.0
        %2811 = vmatprep.subr.mxu0 0.0
        %2812 = vmatpush1.msra.mxu0 0.0
        %2813 = vmatprep.subr.mxu0 0.0
        %2814 = vmatpush1.msra.mxu0 0.0
        %2815 = vmatprep.subr.mxu0 0.0
        %2816 = vmatpush1.msra.mxu0 0.0
        %2817 = vmatprep.subr.mxu0 0.0
        %2818 = vmatpush1.msra.mxu0 0.0
        %2819 = vmatprep.subr.mxu0 0.0
        %2820 = vmatpush1.msra.mxu0 0.0
        %2821 = vmatprep.subr.mxu0 0.0
        %2822 = vmatpush1.msra.mxu0 0.0
        %2823 = vmatprep.subr.mxu0 0.0
        %2824 = vmatpush1.msra.mxu0 0.0
        %2825 = vmatprep.subr.mxu0 0.0
        %2826 = vmatpush1.msra.mxu0 0.0
        %2827 = vmatprep.subr.mxu0 0.0
        %2828 = vmatpush1.msra.mxu0 0.0
        %2829 = vmatprep.subr.mxu0 0.0
        %2830 = vmatpush1.msra.mxu0 0.0
        %2831 = vmatprep.subr.mxu0 0.0
        %2832 = vmatpush1.msra.mxu0 0.0
        %2833 = vmatprep.subr.mxu0 0.0
        %2834 = vmatpush1.msra.mxu0 0.0
        %2835 = vmatprep.subr.mxu0 0.0
        %2836 = vmatpush1.msra.mxu0 0.0
        %2837 = vmatprep.subr.mxu0 0.0
        %2838 = vmatpush1.msra.mxu0 0.0
        %2839 = vmatprep.subr.mxu0 0.0
        %2840 = vmatpush1.msra.mxu0 0.0
        %2841 = vmatprep.subr.mxu0 0.0
        %2842 = vmatpush1.msra.mxu0 0.0
        %2843 = vmatprep.subr.mxu0 0.0
        %2844 = vmatpush1.msra.mxu0 0.0
        %2845 = vmatprep.subr.mxu0 0.0
        %2846 = vmatpush1.msra.mxu0 0.0
        %2847 = vmatprep.subr.mxu0 0.0
        %2848 = vmatpush1.msra.mxu0 0.0
        %2849 = vmatprep.subr.mxu0 0.0
        %2850 = vmatpush1.msra.mxu0 0.0
        %2851 = vmatprep.subr.mxu0 0.0
        %2852 = vmatpush1.msra.mxu0 0.0
        %2853 = vmatprep.mubr.f32.mxu0 0.0
        %2854 = vmatmul.mubr.f32.gmra.mrb[0].mxu0 %v2778
        %v2855 = vpop.f32.mrb[0].mxu0
        %v2856 = vadd.f32 0.0, %v2855
        %v2857 = vpop.f32.mrb[0].mxu0
        %2858 = vmatprep.mubr.f32.mxu0 0.0
        %2859 = vmatmul.mubr.f32.gmra.mrb[0].mxu0 %v2781
        %v2860 = vpop.f32.mrb[0].mxu0
        %v2861 = vadd.f32 0.0, %v2860
        %v2862 = vpop.f32.mrb[0].mxu0
        %2863 = vmatprep.mubr.f32.mxu0 0.0
        %2864 = vmatmul.mubr.f32.gmra.mrb[0].mxu0 %v2784
        %v2865 = vpop.f32.mrb[0].mxu0
        %v2866 = vadd.f32 0.0, %v2865
        %v2867 = vpop.f32.mrb[0].mxu0
        %2868 = vmatprep.mubr.f32.mxu0 0.0
        %2869 = vmatmul.mubr.f32.gmra.mrb[0].mxu0 %v2787
        %v2870 = vpop.f32.mrb[0].mxu0
        %v2871 = vadd.f32 0.0, %v2870
        %v2872 = vpop.f32.mrb[0].mxu0
        %2873 = vdwg.mxu0
        %2874 = vxpose.xlu0.b32.start [1/16] %v1141, 128
        %2875 = vxpose.xlu0.b32.cont [2/16] 0.0, 128
        %2876 = vxpose.xlu0.b32.cont [3/16] 0.0, 128
        %2877 = vxpose.xlu0.b32.cont [4/16] 0.0, 128
        %2878 = vxpose.xlu0.b32.cont [5/16] 0.0, 128
        %2879 = vxpose.xlu0.b32.cont [6/16] 0.0, 128
        %2880 = vxpose.xlu0.b32.cont [7/16] 0.0, 128
        %2881 = vxpose.xlu0.b32.cont [8/16] 0.0, 128
        %2882 = vxpose.xlu0.b32.cont [9/16] 0.0, 128
        %2883 = vxpose.xlu0.b32.cont [10/16] 0.0, 128
        %2884 = vxpose.xlu0.b32.cont [11/16] 0.0, 128
        %2885 = vxpose.xlu0.b32.cont [12/16] 0.0, 128
        %2886 = vxpose.xlu0.b32.cont [13/16] 0.0, 128
        %2887 = vxpose.xlu0.b32.cont [14/16] 0.0, 128
        %2888 = vxpose.xlu0.b32.cont [15/16] 0.0, 128
        %2889 = vxpose.xlu0.b32.end [16/16] 0.0, 128
        %v2890 = vpop.trf.xlu0
        %v2891 = vpop.trf.xlu0
        %v2892 = vpop.trf.xlu0
        %v2893 = vpop.trf.xlu0
        %v2894 = vpop.trf.xlu0
        %v2895 = vpop.trf.xlu0
        %v2896 = vpop.trf.xlu0
        %v2897 = vpop.trf.xlu0
        %v2898 = vpop.trf.xlu0
        %v2899 = vpop.trf.xlu0
        %v2900 = vpop.trf.xlu0
        %v2901 = vpop.trf.xlu0
        %v2902 = vpop.trf.xlu0
        %v2903 = vpop.trf.xlu0
        %v2904 = vpop.trf.xlu0
        %v2905 = vpop.trf.xlu0
        %2907 = vrot.lane.b32.xlu0 %v1141, 96
        %v2908 = vpop.permute.xlu0 %2907
        %v2911 = vsel %vm1180, %v2890, 0
        %v2914 = vsel %vm1180, %v2891, 0
        %v2917 = vsel %vm1180, %v2892, 0
        %v2920 = vsel %vm1180, %v2893, 0
        %2922 = vmatprep.subr.mxu0 0.0
        %2923 = vmatpush1.msra.mxu0 %v2908
        %2924 = vmatprep.subr.mxu0 0.0
        %2925 = vmatpush1.msra.mxu0 0.0
        %2926 = vmatprep.subr.mxu0 0.0
        %2927 = vmatpush1.msra.mxu0 0.0
        %2928 = vmatprep.subr.mxu0 0.0
        %2929 = vmatpush1.msra.mxu0 0.0
        %2930 = vmatprep.subr.mxu0 0.0
        %2931 = vmatpush1.msra.mxu0 0.0
        %2932 = vmatprep.subr.mxu0 0.0
        %2933 = vmatpush1.msra.mxu0 0.0
        %2934 = vmatprep.subr.mxu0 0.0
        %2935 = vmatpush1.msra.mxu0 0.0
        %2936 = vmatprep.subr.mxu0 0.0
        %2937 = vmatpush1.msra.mxu0 0.0
        %2938 = vmatprep.subr.mxu0 0.0
        %2939 = vmatpush1.msra.mxu0 0.0
        %2940 = vmatprep.subr.mxu0 0.0
        %2941 = vmatpush1.msra.mxu0 0.0
        %2942 = vmatprep.subr.mxu0 0.0
        %2943 = vmatpush1.msra.mxu0 0.0
        %2944 = vmatprep.subr.mxu0 0.0
        %2945 = vmatpush1.msra.mxu0 0.0
        %2946 = vmatprep.subr.mxu0 0.0
        %2947 = vmatpush1.msra.mxu0 0.0
        %2948 = vmatprep.subr.mxu0 0.0
        %2949 = vmatpush1.msra.mxu0 0.0
        %2950 = vmatprep.subr.mxu0 0.0
        %2951 = vmatpush1.msra.mxu0 0.0
        %2952 = vmatprep.subr.mxu0 0.0
        %2953 = vmatpush1.msra.mxu0 0.0
        %2954 = vmatprep.subr.mxu0 0.0
        %2955 = vmatpush1.msra.mxu0 0.0
        %2956 = vmatprep.subr.mxu0 0.0
        %2957 = vmatpush1.msra.mxu0 0.0
        %2958 = vmatprep.subr.mxu0 0.0
        %2959 = vmatpush1.msra.mxu0 0.0
        %2960 = vmatprep.subr.mxu0 0.0
        %2961 = vmatpush1.msra.mxu0 0.0
        %2962 = vmatprep.subr.mxu0 0.0
        %2963 = vmatpush1.msra.mxu0 0.0
        %2964 = vmatprep.subr.mxu0 0.0
        %2965 = vmatpush1.msra.mxu0 0.0
        %2966 = vmatprep.subr.mxu0 0.0
        %2967 = vmatpush1.msra.mxu0 0.0
        %2968 = vmatprep.subr.mxu0 0.0
        %2969 = vmatpush1.msra.mxu0 0.0
        %2970 = vmatprep.subr.mxu0 0.0
        %2971 = vmatpush1.msra.mxu0 0.0
        %2972 = vmatprep.subr.mxu0 0.0
        %2973 = vmatpush1.msra.mxu0 0.0
        %2974 = vmatprep.subr.mxu0 0.0
        %2975 = vmatpush1.msra.mxu0 0.0
        %2976 = vmatprep.subr.mxu0 0.0
        %2977 = vmatpush1.msra.mxu0 0.0
        %2978 = vmatprep.subr.mxu0 0.0
        %2979 = vmatpush1.msra.mxu0 0.0
        %2980 = vmatprep.subr.mxu0 0.0
        %2981 = vmatpush1.msra.mxu0 0.0
        %2982 = vmatprep.subr.mxu0 0.0
        %2983 = vmatpush1.msra.mxu0 0.0
        %2984 = vmatprep.subr.mxu0 0.0
        %2985 = vmatpush1.msra.mxu0 0.0
        %2986 = vmatprep.mubr.f32.mxu0 0.0
        %2987 = vmatmul.mubr.f32.gmra.mrb[0].mxu0 %v2911
        %v2988 = vpop.f32.mrb[0].mxu0
        %v2989 = vadd.f32 0.0, %v2988
        %v2990 = vpop.f32.mrb[0].mxu0
        %2991 = vmatprep.mubr.f32.mxu0 0.0
        %2992 = vmatmul.mubr.f32.gmra.mrb[0].mxu0 %v2914
        %v2993 = vpop.f32.mrb[0].mxu0
        %v2994 = vadd.f32 0.0, %v2993
        %v2995 = vpop.f32.mrb[0].mxu0
        %2996 = vmatprep.mubr.f32.mxu0 0.0
        %2997 = vmatmul.mubr.f32.gmra.mrb[0].mxu0 %v2917
        %v2998 = vpop.f32.mrb[0].mxu0
        %v2999 = vadd.f32 0.0, %v2998
        %v3000 = vpop.f32.mrb[0].mxu0
        %3001 = vmatprep.mubr.f32.mxu0 0.0
        %3002 = vmatmul.mubr.f32.gmra.mrb[0].mxu0 %v2920
        %v3003 = vpop.f32.mrb[0].mxu0
        %v3004 = vadd.f32 0.0, %v3003
        %v3005 = vpop.f32.mrb[0].mxu0
        %3006 = vdwg.mxu0
        %3007 = vxpose.xlu0.b32.start [1/16] %v1142, 128
        %3008 = vxpose.xlu0.b32.cont [2/16] 0.0, 128
        %3009 = vxpose.xlu0.b32.cont [3/16] 0.0, 128
        %3010 = vxpose.xlu0.b32.cont [4/16] 0.0, 128
        %3011 = vxpose.xlu0.b32.cont [5/16] 0.0, 128
        %3012 = vxpose.xlu0.b32.cont [6/16] 0.0, 128
        %3013 = vxpose.xlu0.b32.cont [7/16] 0.0, 128
        %3014 = vxpose.xlu0.b32.cont [8/16] 0.0, 128
        %3015 = vxpose.xlu0.b32.cont [9/16] 0.0, 128
        %3016 = vxpose.xlu0.b32.cont [10/16] 0.0, 128
        %3017 = vxpose.xlu0.b32.cont [11/16] 0.0, 128
        %3018 = vxpose.xlu0.b32.cont [12/16] 0.0, 128
        %3019 = vxpose.xlu0.b32.cont [13/16] 0.0, 128
        %3020 = vxpose.xlu0.b32.cont [14/16] 0.0, 128
        %3021 = vxpose.xlu0.b32.cont [15/16] 0.0, 128
        %3022 = vxpose.xlu0.b32.end [16/16] 0.0, 128
        %v3023 = vpop.trf.xlu0
        %v3024 = vpop.trf.xlu0
        %v3025 = vpop.trf.xlu0
        %v3026 = vpop.trf.xlu0
        %v3027 = vpop.trf.xlu0
        %v3028 = vpop.trf.xlu0
        %v3029 = vpop.trf.xlu0
        %v3030 = vpop.trf.xlu0
        %v3031 = vpop.trf.xlu0
        %v3032 = vpop.trf.xlu0
        %v3033 = vpop.trf.xlu0
        %v3034 = vpop.trf.xlu0
        %v3035 = vpop.trf.xlu0
        %v3036 = vpop.trf.xlu0
        %v3037 = vpop.trf.xlu0
        %v3038 = vpop.trf.xlu0
        %3040 = vrot.lane.b32.xlu0 %v1142, 96
        %v3041 = vpop.permute.xlu0 %3040
        %v3044 = vsel %vm1180, %v3023, 0
        %v3047 = vsel %vm1180, %v3024, 0
        %v3050 = vsel %vm1180, %v3025, 0
        %v3053 = vsel %vm1180, %v3026, 0
        %3055 = vmatprep.subr.mxu0 0.0
        %3056 = vmatpush1.msra.mxu0 %v3041
        %3057 = vmatprep.subr.mxu0 0.0
        %3058 = vmatpush1.msra.mxu0 0.0
        %3059 = vmatprep.subr.mxu0 0.0
        %3060 = vmatpush1.msra.mxu0 0.0
        %3061 = vmatprep.subr.mxu0 0.0
        %3062 = vmatpush1.msra.mxu0 0.0
        %3063 = vmatprep.subr.mxu0 0.0
        %3064 = vmatpush1.msra.mxu0 0.0
        %3065 = vmatprep.subr.mxu0 0.0
        %3066 = vmatpush1.msra.mxu0 0.0
        %3067 = vmatprep.subr.mxu0 0.0
        %3068 = vmatpush1.msra.mxu0 0.0
        %3069 = vmatprep.subr.mxu0 0.0
        %3070 = vmatpush1.msra.mxu0 0.0
        %3071 = vmatprep.subr.mxu0 0.0
        %3072 = vmatpush1.msra.mxu0 0.0
        %3073 = vmatprep.subr.mxu0 0.0
        %3074 = vmatpush1.msra.mxu0 0.0
        %3075 = vmatprep.subr.mxu0 0.0
        %3076 = vmatpush1.msra.mxu0 0.0
        %3077 = vmatprep.subr.mxu0 0.0
        %3078 = vmatpush1.msra.mxu0 0.0
        %3079 = vmatprep.subr.mxu0 0.0
        %3080 = vmatpush1.msra.mxu0 0.0
        %3081 = vmatprep.subr.mxu0 0.0
        %3082 = vmatpush1.msra.mxu0 0.0
        %3083 = vmatprep.subr.mxu0 0.0
        %3084 = vmatpush1.msra.mxu0 0.0
        %3085 = vmatprep.subr.mxu0 0.0
        %3086 = vmatpush1.msra.mxu0 0.0
        %3087 = vmatprep.subr.mxu0 0.0
        %3088 = vmatpush1.msra.mxu0 0.0
        %3089 = vmatprep.subr.mxu0 0.0
        %3090 = vmatpush1.msra.mxu0 0.0
        %3091 = vmatprep.subr.mxu0 0.0
        %3092 = vmatpush1.msra.mxu0 0.0
        %3093 = vmatprep.subr.mxu0 0.0
        %3094 = vmatpush1.msra.mxu0 0.0
        %3095 = vmatprep.subr.mxu0 0.0
        %3096 = vmatpush1.msra.mxu0 0.0
        %3097 = vmatprep.subr.mxu0 0.0
        %3098 = vmatpush1.msra.mxu0 0.0
        %3099 = vmatprep.subr.mxu0 0.0
        %3100 = vmatpush1.msra.mxu0 0.0
        %3101 = vmatprep.subr.mxu0 0.0
        %3102 = vmatpush1.msra.mxu0 0.0
        %3103 = vmatprep.subr.mxu0 0.0
        %3104 = vmatpush1.msra.mxu0 0.0
        %3105 = vmatprep.subr.mxu0 0.0
        %3106 = vmatpush1.msra.mxu0 0.0
        %3107 = vmatprep.subr.mxu0 0.0
        %3108 = vmatpush1.msra.mxu0 0.0
        %3109 = vmatprep.subr.mxu0 0.0
        %3110 = vmatpush1.msra.mxu0 0.0
        %3111 = vmatprep.subr.mxu0 0.0
        %3112 = vmatpush1.msra.mxu0 0.0
        %3113 = vmatprep.subr.mxu0 0.0
        %3114 = vmatpush1.msra.mxu0 0.0
        %3115 = vmatprep.subr.mxu0 0.0
        %3116 = vmatpush1.msra.mxu0 0.0
        %3117 = vmatprep.subr.mxu0 0.0
        %3118 = vmatpush1.msra.mxu0 0.0
        %3119 = vmatprep.mubr.f32.mxu0 0.0
        %3120 = vmatmul.mubr.f32.gmra.mrb[0].mxu0 %v3044
        %v3121 = vpop.f32.mrb[0].mxu0
        %v3122 = vadd.f32 0.0, %v3121
        %v3123 = vpop.f32.mrb[0].mxu0
        %3124 = vmatprep.mubr.f32.mxu0 0.0
        %3125 = vmatmul.mubr.f32.gmra.mrb[0].mxu0 %v3047
        %v3126 = vpop.f32.mrb[0].mxu0
        %v3127 = vadd.f32 0.0, %v3126
        %v3128 = vpop.f32.mrb[0].mxu0
        %3129 = vmatprep.mubr.f32.mxu0 0.0
        %3130 = vmatmul.mubr.f32.gmra.mrb[0].mxu0 %v3050
        %v3131 = vpop.f32.mrb[0].mxu0
        %v3132 = vadd.f32 0.0, %v3131
        %v3133 = vpop.f32.mrb[0].mxu0
        %3134 = vmatprep.mubr.f32.mxu0 0.0
        %3135 = vmatmul.mubr.f32.gmra.mrb[0].mxu0 %v3053
        %v3136 = vpop.f32.mrb[0].mxu0
        %v3137 = vadd.f32 0.0, %v3136
        %v3138 = vpop.f32.mrb[0].mxu0
        %3139 = vdwg.mxu0
        %3140 = vxpose.xlu0.b32.start [1/16] %v1143, 128
        %3141 = vxpose.xlu0.b32.cont [2/16] 0.0, 128
        %3142 = vxpose.xlu0.b32.cont [3/16] 0.0, 128
        %3143 = vxpose.xlu0.b32.cont [4/16] 0.0, 128
        %3144 = vxpose.xlu0.b32.cont [5/16] 0.0, 128
        %3145 = vxpose.xlu0.b32.cont [6/16] 0.0, 128
        %3146 = vxpose.xlu0.b32.cont [7/16] 0.0, 128
        %3147 = vxpose.xlu0.b32.cont [8/16] 0.0, 128
        %3148 = vxpose.xlu0.b32.cont [9/16] 0.0, 128
        %3149 = vxpose.xlu0.b32.cont [10/16] 0.0, 128
        %3150 = vxpose.xlu0.b32.cont [11/16] 0.0, 128
        %3151 = vxpose.xlu0.b32.cont [12/16] 0.0, 128
        %3152 = vxpose.xlu0.b32.cont [13/16] 0.0, 128
        %3153 = vxpose.xlu0.b32.cont [14/16] 0.0, 128
        %3154 = vxpose.xlu0.b32.cont [15/16] 0.0, 128
        %3155 = vxpose.xlu0.b32.end [16/16] 0.0, 128
        %v3156 = vpop.trf.xlu0
        %v3157 = vpop.trf.xlu0
        %v3158 = vpop.trf.xlu0
        %v3159 = vpop.trf.xlu0
        %v3160 = vpop.trf.xlu0
        %v3161 = vpop.trf.xlu0
        %v3162 = vpop.trf.xlu0
        %v3163 = vpop.trf.xlu0
        %v3164 = vpop.trf.xlu0
        %v3165 = vpop.trf.xlu0
        %v3166 = vpop.trf.xlu0
        %v3167 = vpop.trf.xlu0
        %v3168 = vpop.trf.xlu0
        %v3169 = vpop.trf.xlu0
        %v3170 = vpop.trf.xlu0
        %v3171 = vpop.trf.xlu0
        %3173 = vrot.lane.b32.xlu0 %v1143, 96
        %v3174 = vpop.permute.xlu0 %3173
        %v3177 = vsel %vm1180, %v3156, 0
        %v3180 = vsel %vm1180, %v3157, 0
        %v3183 = vsel %vm1180, %v3158, 0
        %v3186 = vsel %vm1180, %v3159, 0
        %3188 = vmatprep.subr.mxu0 0.0
        %3189 = vmatpush1.msra.mxu0 %v3174
        %3190 = vmatprep.subr.mxu0 0.0
        %3191 = vmatpush1.msra.mxu0 0.0
        %3192 = vmatprep.subr.mxu0 0.0
        %3193 = vmatpush1.msra.mxu0 0.0
        %3194 = vmatprep.subr.mxu0 0.0
        %3195 = vmatpush1.msra.mxu0 0.0
        %3196 = vmatprep.subr.mxu0 0.0
        %3197 = vmatpush1.msra.mxu0 0.0
        %3198 = vmatprep.subr.mxu0 0.0
        %3199 = vmatpush1.msra.mxu0 0.0
        %3200 = vmatprep.subr.mxu0 0.0
        %3201 = vmatpush1.msra.mxu0 0.0
        %3202 = vmatprep.subr.mxu0 0.0
        %3203 = vmatpush1.msra.mxu0 0.0
        %3204 = vmatprep.subr.mxu0 0.0
        %3205 = vmatpush1.msra.mxu0 0.0
        %3206 = vmatprep.subr.mxu0 0.0
        %3207 = vmatpush1.msra.mxu0 0.0
        %3208 = vmatprep.subr.mxu0 0.0
        %3209 = vmatpush1.msra.mxu0 0.0
        %3210 = vmatprep.subr.mxu0 0.0
        %3211 = vmatpush1.msra.mxu0 0.0
        %3212 = vmatprep.subr.mxu0 0.0
        %3213 = vmatpush1.msra.mxu0 0.0
        %3214 = vmatprep.subr.mxu0 0.0
        %3215 = vmatpush1.msra.mxu0 0.0
        %3216 = vmatprep.subr.mxu0 0.0
        %3217 = vmatpush1.msra.mxu0 0.0
        %3218 = vmatprep.subr.mxu0 0.0
        %3219 = vmatpush1.msra.mxu0 0.0
        %3220 = vmatprep.subr.mxu0 0.0
        %3221 = vmatpush1.msra.mxu0 0.0
        %3222 = vmatprep.subr.mxu0 0.0
        %3223 = vmatpush1.msra.mxu0 0.0
        %3224 = vmatprep.subr.mxu0 0.0
        %3225 = vmatpush1.msra.mxu0 0.0
        %3226 = vmatprep.subr.mxu0 0.0
        %3227 = vmatpush1.msra.mxu0 0.0
        %3228 = vmatprep.subr.mxu0 0.0
        %3229 = vmatpush1.msra.mxu0 0.0
        %3230 = vmatprep.subr.mxu0 0.0
        %3231 = vmatpush1.msra.mxu0 0.0
        %3232 = vmatprep.subr.mxu0 0.0
        %3233 = vmatpush1.msra.mxu0 0.0
        %3234 = vmatprep.subr.mxu0 0.0
        %3235 = vmatpush1.msra.mxu0 0.0
        %3236 = vmatprep.subr.mxu0 0.0
        %3237 = vmatpush1.msra.mxu0 0.0
        %3238 = vmatprep.subr.mxu0 0.0
        %3239 = vmatpush1.msra.mxu0 0.0
        %3240 = vmatprep.subr.mxu0 0.0
        %3241 = vmatpush1.msra.mxu0 0.0
        %3242 = vmatprep.subr.mxu0 0.0
        %3243 = vmatpush1.msra.mxu0 0.0
        %3244 = vmatprep.subr.mxu0 0.0
        %3245 = vmatpush1.msra.mxu0 0.0
        %3246 = vmatprep.subr.mxu0 0.0
        %3247 = vmatpush1.msra.mxu0 0.0
        %3248 = vmatprep.subr.mxu0 0.0
        %3249 = vmatpush1.msra.mxu0 0.0
        %3250 = vmatprep.subr.mxu0 0.0
        %3251 = vmatpush1.msra.mxu0 0.0
        %3252 = vmatprep.mubr.f32.mxu0 0.0
        %3253 = vmatmul.mubr.f32.gmra.mrb[0].mxu0 %v3177
        %v3254 = vpop.f32.mrb[0].mxu0
        %v3255 = vadd.f32 0.0, %v3254
        %v3256 = vpop.f32.mrb[0].mxu0
        %3257 = vmatprep.mubr.f32.mxu0 0.0
        %3258 = vmatmul.mubr.f32.gmra.mrb[0].mxu0 %v3180
        %v3259 = vpop.f32.mrb[0].mxu0
        %v3260 = vadd.f32 0.0, %v3259
        %v3261 = vpop.f32.mrb[0].mxu0
        %3262 = vmatprep.mubr.f32.mxu0 0.0
        %3263 = vmatmul.mubr.f32.gmra.mrb[0].mxu0 %v3183
        %v3264 = vpop.f32.mrb[0].mxu0
        %v3265 = vadd.f32 0.0, %v3264
        %v3266 = vpop.f32.mrb[0].mxu0
        %3267 = vmatprep.mubr.f32.mxu0 0.0
        %3268 = vmatmul.mubr.f32.gmra.mrb[0].mxu0 %v3186
        %v3269 = vpop.f32.mrb[0].mxu0
        %v3270 = vadd.f32 0.0, %v3269
        %v3271 = vpop.f32.mrb[0].mxu0
        %3272 = vdwg.mxu0
        %v3273 = vsel %vm838, %v1260, -inf
        %3274 = vmax.xlane.f32.xlu0 %v3273
        %v3275 = vpop.xlane.xlu0 %3274
        %v3276 = vsel %vm838, %v1265, -inf
        %3277 = vmax.xlane.f32.xlu0 %v3276
        %v3278 = vpop.xlane.xlu0 %3277
        %v3279 = vsel %vm838, %v1270, -inf
        %3280 = vmax.xlane.f32.xlu0 %v3279
        %v3281 = vpop.xlane.xlu0 %3280
        %v3282 = vsel %vm838, %v1275, -inf
        %3283 = vmax.xlane.f32.xlu0 %v3282
        %v3284 = vpop.xlane.xlu0 %3283
        %v3285 = vsel %vm838, %v1393, -inf
        %3286 = vmax.xlane.f32.xlu0 %v3285
        %v3287 = vpop.xlane.xlu0 %3286
        %v3288 = vsel %vm838, %v1398, -inf
        %3289 = vmax.xlane.f32.xlu0 %v3288
        %v3290 = vpop.xlane.xlu0 %3289
        %v3291 = vsel %vm838, %v1403, -inf
        %3292 = vmax.xlane.f32.xlu0 %v3291
        %v3293 = vpop.xlane.xlu0 %3292
        %v3294 = vsel %vm838, %v1408, -inf
        %3295 = vmax.xlane.f32.xlu0 %v3294
        %v3296 = vpop.xlane.xlu0 %3295
        %v3297 = vsel %vm838, %v1526, -inf
        %3298 = vmax.xlane.f32.xlu0 %v3297
        %v3299 = vpop.xlane.xlu0 %3298
        %v3300 = vsel %vm838, %v1531, -inf
        %3301 = vmax.xlane.f32.xlu0 %v3300
        %v3302 = vpop.xlane.xlu0 %3301
        %v3303 = vsel %vm838, %v1536, -inf
        %3304 = vmax.xlane.f32.xlu0 %v3303
        %v3305 = vpop.xlane.xlu0 %3304
        %v3306 = vsel %vm838, %v1541, -inf
        %3307 = vmax.xlane.f32.xlu0 %v3306
        %v3308 = vpop.xlane.xlu0 %3307
        %v3309 = vsel %vm838, %v1659, -inf
        %3310 = vmax.xlane.f32.xlu0 %v3309
        %v3311 = vpop.xlane.xlu0 %3310
        %v3312 = vsel %vm838, %v1664, -inf
        %3313 = vmax.xlane.f32.xlu0 %v3312
        %v3314 = vpop.xlane.xlu0 %3313
        %v3315 = vsel %vm838, %v1669, -inf
        %3316 = vmax.xlane.f32.xlu0 %v3315
        %v3317 = vpop.xlane.xlu0 %3316
        %v3318 = vsel %vm838, %v1674, -inf
        %3319 = vmax.xlane.f32.xlu0 %v3318
        %v3320 = vpop.xlane.xlu0 %3319
        %v3321 = vsel %vm838, %v1792, -inf
        %3322 = vmax.xlane.f32.xlu0 %v3321
        %v3323 = vpop.xlane.xlu0 %3322
        %v3324 = vsel %vm838, %v1797, -inf
        %3325 = vmax.xlane.f32.xlu0 %v3324
        %v3326 = vpop.xlane.xlu0 %3325
        %v3327 = vsel %vm838, %v1802, -inf
        %3328 = vmax.xlane.f32.xlu0 %v3327
        %v3329 = vpop.xlane.xlu0 %3328
        %v3330 = vsel %vm838, %v1807, -inf
        %3331 = vmax.xlane.f32.xlu0 %v3330
        %v3332 = vpop.xlane.xlu0 %3331
        %v3333 = vsel %vm838, %v1925, -inf
        %3334 = vmax.xlane.f32.xlu0 %v3333
        %v3335 = vpop.xlane.xlu0 %3334
        %v3336 = vsel %vm838, %v1930, -inf
        %3337 = vmax.xlane.f32.xlu0 %v3336
        %v3338 = vpop.xlane.xlu0 %3337
        %v3339 = vsel %vm838, %v1935, -inf
        %3340 = vmax.xlane.f32.xlu0 %v3339
        %v3341 = vpop.xlane.xlu0 %3340
        %v3342 = vsel %vm838, %v1940, -inf
        %3343 = vmax.xlane.f32.xlu0 %v3342
        %v3344 = vpop.xlane.xlu0 %3343
        %v3345 = vsel %vm838, %v2058, -inf
        %3346 = vmax.xlane.f32.xlu0 %v3345
        %v3347 = vpop.xlane.xlu0 %3346
        %v3348 = vsel %vm838, %v2063, -inf
        %3349 = vmax.xlane.f32.xlu0 %v3348
        %v3350 = vpop.xlane.xlu0 %3349
        %v3351 = vsel %vm838, %v2068, -inf
        %3352 = vmax.xlane.f32.xlu0 %v3351
        %v3353 = vpop.xlane.xlu0 %3352
        %v3354 = vsel %vm838, %v2073, -inf
        %3355 = vmax.xlane.f32.xlu0 %v3354
        %v3356 = vpop.xlane.xlu0 %3355
        %v3357 = vsel %vm838, %v2191, -inf
        %3358 = vmax.xlane.f32.xlu0 %v3357
        %v3359 = vpop.xlane.xlu0 %3358
        %v3360 = vsel %vm838, %v2196, -inf
        %3361 = vmax.xlane.f32.xlu0 %v3360
        %v3362 = vpop.xlane.xlu0 %3361
        %v3363 = vsel %vm838, %v2201, -inf
        %3364 = vmax.xlane.f32.xlu0 %v3363
        %v3365 = vpop.xlane.xlu0 %3364
        %v3366 = vsel %vm838, %v2206, -inf
        %3367 = vmax.xlane.f32.xlu0 %v3366
        %v3368 = vpop.xlane.xlu0 %3367
        %v3369 = vsel %vm838, %v2324, -inf
        %3370 = vmax.xlane.f32.xlu0 %v3369
        %v3371 = vpop.xlane.xlu0 %3370
        %v3372 = vsel %vm838, %v2329, -inf
        %3373 = vmax.xlane.f32.xlu0 %v3372
        %v3374 = vpop.xlane.xlu0 %3373
        %v3375 = vsel %vm838, %v2334, -inf
        %3376 = vmax.xlane.f32.xlu0 %v3375
        %v3377 = vpop.xlane.xlu0 %3376
        %v3378 = vsel %vm838, %v2339, -inf
        %3379 = vmax.xlane.f32.xlu0 %v3378
        %v3380 = vpop.xlane.xlu0 %3379
        %v3381 = vsel %vm838, %v2457, -inf
        %3382 = vmax.xlane.f32.xlu0 %v3381
        %v3383 = vpop.xlane.xlu0 %3382
        %v3384 = vsel %vm838, %v2462, -inf
        %3385 = vmax.xlane.f32.xlu0 %v3384
        %v3386 = vpop.xlane.xlu0 %3385
        %v3387 = vsel %vm838, %v2467, -inf
        %3388 = vmax.xlane.f32.xlu0 %v3387
        %v3389 = vpop.xlane.xlu0 %3388
        %v3390 = vsel %vm838, %v2472, -inf
        %3391 = vmax.xlane.f32.xlu0 %v3390
        %v3392 = vpop.xlane.xlu0 %3391
        %v3393 = vsel %vm838, %v2590, -inf
        %3394 = vmax.xlane.f32.xlu0 %v3393
        %v3395 = vpop.xlane.xlu0 %3394
        %v3396 = vsel %vm838, %v2595, -inf
        %3397 = vmax.xlane.f32.xlu0 %v3396
        %v3398 = vpop.xlane.xlu0 %3397
        %v3399 = vsel %vm838, %v2600, -inf
        %3400 = vmax.xlane.f32.xlu0 %v3399
        %v3401 = vpop.xlane.xlu0 %3400
        %v3402 = vsel %vm838, %v2605, -inf
        %3403 = vmax.xlane.f32.xlu0 %v3402
        %v3404 = vpop.xlane.xlu0 %3403
        %v3405 = vsel %vm838, %v2723, -inf
        %3406 = vmax.xlane.f32.xlu0 %v3405
        %v3407 = vpop.xlane.xlu0 %3406
        %v3408 = vsel %vm838, %v2728, -inf
        %3409 = vmax.xlane.f32.xlu0 %v3408
        %v3410 = vpop.xlane.xlu0 %3409
        %v3411 = vsel %vm838, %v2733, -inf
        %3412 = vmax.xlane.f32.xlu0 %v3411
        %v3413 = vpop.xlane.xlu0 %3412
        %v3414 = vsel %vm838, %v2738, -inf
        %3415 = vmax.xlane.f32.xlu0 %v3414
        %v3416 = vpop.xlane.xlu0 %3415
        %v3417 = vsel %vm838, %v2856, -inf
        %3418 = vmax.xlane.f32.xlu0 %v3417
        %v3419 = vpop.xlane.xlu0 %3418
        %v3420 = vsel %vm838, %v2861, -inf
        %3421 = vmax.xlane.f32.xlu0 %v3420
        %v3422 = vpop.xlane.xlu0 %3421
        %v3423 = vsel %vm838, %v2866, -inf
        %3424 = vmax.xlane.f32.xlu0 %v3423
        %v3425 = vpop.xlane.xlu0 %3424
        %v3426 = vsel %vm838, %v2871, -inf
        %3427 = vmax.xlane.f32.xlu0 %v3426
        %v3428 = vpop.xlane.xlu0 %3427
        %v3429 = vsel %vm838, %v2989, -inf
        %3430 = vmax.xlane.f32.xlu0 %v3429
        %v3431 = vpop.xlane.xlu0 %3430
        %v3432 = vsel %vm838, %v2994, -inf
        %3433 = vmax.xlane.f32.xlu0 %v3432
        %v3434 = vpop.xlane.xlu0 %3433
        %v3435 = vsel %vm838, %v2999, -inf
        %3436 = vmax.xlane.f32.xlu0 %v3435
        %v3437 = vpop.xlane.xlu0 %3436
        %v3438 = vsel %vm838, %v3004, -inf
        %3439 = vmax.xlane.f32.xlu0 %v3438
        %v3440 = vpop.xlane.xlu0 %3439
        %v3441 = vsel %vm838, %v3122, -inf
        %3442 = vmax.xlane.f32.xlu0 %v3441
        %v3443 = vpop.xlane.xlu0 %3442
        %v3444 = vsel %vm838, %v3127, -inf
        %3445 = vmax.xlane.f32.xlu0 %v3444
        %v3446 = vpop.xlane.xlu0 %3445
        %v3447 = vsel %vm838, %v3132, -inf
        %3448 = vmax.xlane.f32.xlu0 %v3447
        %v3449 = vpop.xlane.xlu0 %3448
        %v3450 = vsel %vm838, %v3137, -inf
        %3451 = vmax.xlane.f32.xlu0 %v3450
        %v3452 = vpop.xlane.xlu0 %3451
        %v3453 = vsel %vm838, %v3255, -inf
        %3454 = vmax.xlane.f32.xlu0 %v3453
        %v3455 = vpop.xlane.xlu0 %3454
        %v3456 = vsel %vm838, %v3260, -inf
        %3457 = vmax.xlane.f32.xlu0 %v3456
        %v3458 = vpop.xlane.xlu0 %3457
        %v3459 = vsel %vm838, %v3265, -inf
        %3460 = vmax.xlane.f32.xlu0 %v3459
        %v3461 = vpop.xlane.xlu0 %3460
        %v3462 = vsel %vm838, %v3270, -inf
        %3463 = vmax.xlane.f32.xlu0 %v3462
        %v3464 = vpop.xlane.xlu0 %3463
        %v3465 = vsub.f32 %v1260, %v3275
        %v3466 = vsub.f32 %v1265, %v3278
        %v3467 = vsub.f32 %v1270, %v3281
        %v3468 = vsub.f32 %v1275, %v3284
        %v3469 = vsub.f32 %v1393, %v3287
        %v3470 = vsub.f32 %v1398, %v3290
        %v3471 = vsub.f32 %v1403, %v3293
        %v3472 = vsub.f32 %v1408, %v3296
        %v3473 = vsub.f32 %v1526, %v3299
        %v3474 = vsub.f32 %v1531, %v3302
        %v3475 = vsub.f32 %v1536, %v3305
        %v3476 = vsub.f32 %v1541, %v3308
        %v3477 = vsub.f32 %v1659, %v3311
        %v3478 = vsub.f32 %v1664, %v3314
        %v3479 = vsub.f32 %v1669, %v3317
        %v3480 = vsub.f32 %v1674, %v3320
        %v3481 = vsub.f32 %v1792, %v3323
        %v3482 = vsub.f32 %v1797, %v3326
        %v3483 = vsub.f32 %v1802, %v3329
        %v3484 = vsub.f32 %v1807, %v3332
        %v3485 = vsub.f32 %v1925, %v3335
        %v3486 = vsub.f32 %v1930, %v3338
        %v3487 = vsub.f32 %v1935, %v3341
        %v3488 = vsub.f32 %v1940, %v3344
        %v3489 = vsub.f32 %v2058, %v3347
        %v3490 = vsub.f32 %v2063, %v3350
        %v3491 = vsub.f32 %v2068, %v3353
        %v3492 = vsub.f32 %v2073, %v3356
        %v3493 = vsub.f32 %v2191, %v3359
        %v3494 = vsub.f32 %v2196, %v3362
        %v3495 = vsub.f32 %v2201, %v3365
        %v3496 = vsub.f32 %v2206, %v3368
        %v3497 = vsub.f32 %v2324, %v3371
        %v3498 = vsub.f32 %v2329, %v3374
        %v3499 = vsub.f32 %v2334, %v3377
        %v3500 = vsub.f32 %v2339, %v3380
        %v3501 = vsub.f32 %v2457, %v3383
        %v3502 = vsub.f32 %v2462, %v3386
        %v3503 = vsub.f32 %v2467, %v3389
        %v3504 = vsub.f32 %v2472, %v3392
        %v3505 = vsub.f32 %v2590, %v3395
        %v3506 = vsub.f32 %v2595, %v3398
        %v3507 = vsub.f32 %v2600, %v3401
        %v3508 = vsub.f32 %v2605, %v3404
        %v3509 = vsub.f32 %v2723, %v3407
        %v3510 = vsub.f32 %v2728, %v3410
        %v3511 = vsub.f32 %v2733, %v3413
        %v3512 = vsub.f32 %v2738, %v3416
        %v3513 = vsub.f32 %v2856, %v3419
        %v3514 = vsub.f32 %v2861, %v3422
        %v3515 = vsub.f32 %v2866, %v3425
        %v3516 = vsub.f32 %v2871, %v3428
        %v3517 = vsub.f32 %v2989, %v3431
        %v3518 = vsub.f32 %v2994, %v3434
        %v3519 = vsub.f32 %v2999, %v3437
        %v3520 = vsub.f32 %v3004, %v3440
        %v3521 = vsub.f32 %v3122, %v3443
        %v3522 = vsub.f32 %v3127, %v3446
        %v3523 = vsub.f32 %v3132, %v3449
        %v3524 = vsub.f32 %v3137, %v3452
        %v3525 = vsub.f32 %v3255, %v3455
        %v3526 = vsub.f32 %v3260, %v3458
        %v3527 = vsub.f32 %v3265, %v3461
        %v3528 = vsub.f32 %v3270, %v3464
        %v3529 = vmul.f32 %v3465, 1.442695
        %v3530 = vpow.pop %v3529
        %v3531 = vmul.f32 %v3466, 1.442695
        %v3532 = vpow.pop %v3531
        %v3533 = vmul.f32 %v3467, 1.442695
        %v3534 = vpow.pop %v3533
        %v3535 = vmul.f32 %v3468, 1.442695
        %v3536 = vpow.pop %v3535
        %v3537 = vmul.f32 %v3469, 1.442695
        %v3538 = vpow.pop %v3537
        %v3539 = vmul.f32 %v3470, 1.442695
        %v3540 = vpow.pop %v3539
        %v3541 = vmul.f32 %v3471, 1.442695
        %v3542 = vpow.pop %v3541
        %v3543 = vmul.f32 %v3472, 1.442695
        %v3544 = vpow.pop %v3543
        %v3545 = vmul.f32 %v3473, 1.442695
        %v3546 = vpow.pop %v3545
        %v3547 = vmul.f32 %v3474, 1.442695
        %v3548 = vpow.pop %v3547
        %v3549 = vmul.f32 %v3475, 1.442695
        %v3550 = vpow.pop %v3549
        %v3551 = vmul.f32 %v3476, 1.442695
        %v3552 = vpow.pop %v3551
        %v3553 = vmul.f32 %v3477, 1.442695
        %v3554 = vpow.pop %v3553
        %v3555 = vmul.f32 %v3478, 1.442695
        %v3556 = vpow.pop %v3555
        %v3557 = vmul.f32 %v3479, 1.442695
        %v3558 = vpow.pop %v3557
        %v3559 = vmul.f32 %v3480, 1.442695
        %v3560 = vpow.pop %v3559
        %v3561 = vmul.f32 %v3481, 1.442695
        %v3562 = vpow.pop %v3561
        %v3563 = vmul.f32 %v3482, 1.442695
        %v3564 = vpow.pop %v3563
        %v3565 = vmul.f32 %v3483, 1.442695
        %v3566 = vpow.pop %v3565
        %v3567 = vmul.f32 %v3484, 1.442695
        %v3568 = vpow.pop %v3567
        %v3569 = vmul.f32 %v3485, 1.442695
        %v3570 = vpow.pop %v3569
        %v3571 = vmul.f32 %v3486, 1.442695
        %v3572 = vpow.pop %v3571
        %v3573 = vmul.f32 %v3487, 1.442695
        %v3574 = vpow.pop %v3573
        %v3575 = vmul.f32 %v3488, 1.442695
        %v3576 = vpow.pop %v3575
        %v3577 = vmul.f32 %v3489, 1.442695
        %v3578 = vpow.pop %v3577
        %v3579 = vmul.f32 %v3490, 1.442695
        %v3580 = vpow.pop %v3579
        %v3581 = vmul.f32 %v3491, 1.442695
        %v3582 = vpow.pop %v3581
        %v3583 = vmul.f32 %v3492, 1.442695
        %v3584 = vpow.pop %v3583
        %v3585 = vmul.f32 %v3493, 1.442695
        %v3586 = vpow.pop %v3585
        %v3587 = vmul.f32 %v3494, 1.442695
        %v3588 = vpow.pop %v3587
        %v3589 = vmul.f32 %v3495, 1.442695
        %v3590 = vpow.pop %v3589
        %v3591 = vmul.f32 %v3496, 1.442695
        %v3592 = vpow.pop %v3591
        %v3593 = vmul.f32 %v3497, 1.442695
        %v3594 = vpow.pop %v3593
        %v3595 = vmul.f32 %v3498, 1.442695
        %v3596 = vpow.pop %v3595
        %v3597 = vmul.f32 %v3499, 1.442695
        %v3598 = vpow.pop %v3597
        %v3599 = vmul.f32 %v3500, 1.442695
        %v3600 = vpow.pop %v3599
        %v3601 = vmul.f32 %v3501, 1.442695
        %v3602 = vpow.pop %v3601
        %v3603 = vmul.f32 %v3502, 1.442695
        %v3604 = vpow.pop %v3603
        %v3605 = vmul.f32 %v3503, 1.442695
        %v3606 = vpow.pop %v3605
        %v3607 = vmul.f32 %v3504, 1.442695
        %v3608 = vpow.pop %v3607
        %v3609 = vmul.f32 %v3505, 1.442695
        %v3610 = vpow.pop %v3609
        %v3611 = vmul.f32 %v3506, 1.442695
        %v3612 = vpow.pop %v3611
        %v3613 = vmul.f32 %v3507, 1.442695
        %v3614 = vpow.pop %v3613
        %v3615 = vmul.f32 %v3508, 1.442695
        %v3616 = vpow.pop %v3615
        %v3617 = vmul.f32 %v3509, 1.442695
        %v3618 = vpow.pop %v3617
        %v3619 = vmul.f32 %v3510, 1.442695
        %v3620 = vpow.pop %v3619
        %v3621 = vmul.f32 %v3511, 1.442695
        %v3622 = vpow.pop %v3621
        %v3623 = vmul.f32 %v3512, 1.442695
        %v3624 = vpow.pop %v3623
        %v3625 = vmul.f32 %v3513, 1.442695
        %v3626 = vpow.pop %v3625
        %v3627 = vmul.f32 %v3514, 1.442695
        %v3628 = vpow.pop %v3627
        %v3629 = vmul.f32 %v3515, 1.442695
        %v3630 = vpow.pop %v3629
        %v3631 = vmul.f32 %v3516, 1.442695
        %v3632 = vpow.pop %v3631
        %v3633 = vmul.f32 %v3517, 1.442695
        %v3634 = vpow.pop %v3633
        %v3635 = vmul.f32 %v3518, 1.442695
        %v3636 = vpow.pop %v3635
        %v3637 = vmul.f32 %v3519, 1.442695
        %v3638 = vpow.pop %v3637
        %v3639 = vmul.f32 %v3520, 1.442695
        %v3640 = vpow.pop %v3639
        %v3641 = vmul.f32 %v3521, 1.442695
        %v3642 = vpow.pop %v3641
        %v3643 = vmul.f32 %v3522, 1.442695
        %v3644 = vpow.pop %v3643
        %v3645 = vmul.f32 %v3523, 1.442695
        %v3646 = vpow.pop %v3645
        %v3647 = vmul.f32 %v3524, 1.442695
        %v3648 = vpow.pop %v3647
        %v3649 = vmul.f32 %v3525, 1.442695
        %v3650 = vpow.pop %v3649
        %v3651 = vmul.f32 %v3526, 1.442695
        %v3652 = vpow.pop %v3651
        %v3653 = vmul.f32 %v3527, 1.442695
        %v3654 = vpow.pop %v3653
        %v3655 = vmul.f32 %v3528, 1.442695
        %v3656 = vpow.pop %v3655
        %v3657 = vsel %vm838, %v3530, 0.0
        %3658 = vadd.xlane.f32.xlu0 %v3657
        %v3659 = vpop.xlane.xlu0 %3658
        %v3660 = vsel %vm838, %v3532, 0.0
        %3661 = vadd.xlane.f32.xlu0 %v3660
        %v3662 = vpop.xlane.xlu0 %3661
        %v3663 = vsel %vm838, %v3534, 0.0
        %3664 = vadd.xlane.f32.xlu0 %v3663
        %v3665 = vpop.xlane.xlu0 %3664
        %v3666 = vsel %vm838, %v3536, 0.0
        %3667 = vadd.xlane.f32.xlu0 %v3666
        %v3668 = vpop.xlane.xlu0 %3667
        %v3669 = vsel %vm838, %v3538, 0.0
        %3670 = vadd.xlane.f32.xlu0 %v3669
        %v3671 = vpop.xlane.xlu0 %3670
        %v3672 = vsel %vm838, %v3540, 0.0
        %3673 = vadd.xlane.f32.xlu0 %v3672
        %v3674 = vpop.xlane.xlu0 %3673
        %v3675 = vsel %vm838, %v3542, 0.0
        %3676 = vadd.xlane.f32.xlu0 %v3675
        %v3677 = vpop.xlane.xlu0 %3676
        %v3678 = vsel %vm838, %v3544, 0.0
        %3679 = vadd.xlane.f32.xlu0 %v3678
        %v3680 = vpop.xlane.xlu0 %3679
        %v3681 = vsel %vm838, %v3546, 0.0
        %3682 = vadd.xlane.f32.xlu0 %v3681
        %v3683 = vpop.xlane.xlu0 %3682
        %v3684 = vsel %vm838, %v3548, 0.0
        %3685 = vadd.xlane.f32.xlu0 %v3684
        %v3686 = vpop.xlane.xlu0 %3685
        %v3687 = vsel %vm838, %v3550, 0.0
        %3688 = vadd.xlane.f32.xlu0 %v3687
        %v3689 = vpop.xlane.xlu0 %3688
        %v3690 = vsel %vm838, %v3552, 0.0
        %3691 = vadd.xlane.f32.xlu0 %v3690
        %v3692 = vpop.xlane.xlu0 %3691
        %v3693 = vsel %vm838, %v3554, 0.0
        %3694 = vadd.xlane.f32.xlu0 %v3693
        %v3695 = vpop.xlane.xlu0 %3694
        %v3696 = vsel %vm838, %v3556, 0.0
        %3697 = vadd.xlane.f32.xlu0 %v3696
        %v3698 = vpop.xlane.xlu0 %3697
        %v3699 = vsel %vm838, %v3558, 0.0
        %3700 = vadd.xlane.f32.xlu0 %v3699
        %v3701 = vpop.xlane.xlu0 %3700
        %v3702 = vsel %vm838, %v3560, 0.0
        %3703 = vadd.xlane.f32.xlu0 %v3702
        %v3704 = vpop.xlane.xlu0 %3703
        %v3705 = vsel %vm838, %v3562, 0.0
        %3706 = vadd.xlane.f32.xlu0 %v3705
        %v3707 = vpop.xlane.xlu0 %3706
        %v3708 = vsel %vm838, %v3564, 0.0
        %3709 = vadd.xlane.f32.xlu0 %v3708
        %v3710 = vpop.xlane.xlu0 %3709
        %v3711 = vsel %vm838, %v3566, 0.0
        %3712 = vadd.xlane.f32.xlu0 %v3711
        %v3713 = vpop.xlane.xlu0 %3712
        %v3714 = vsel %vm838, %v3568, 0.0
        %3715 = vadd.xlane.f32.xlu0 %v3714
        %v3716 = vpop.xlane.xlu0 %3715
        %v3717 = vsel %vm838, %v3570, 0.0
        %3718 = vadd.xlane.f32.xlu0 %v3717
        %v3719 = vpop.xlane.xlu0 %3718
        %v3720 = vsel %vm838, %v3572, 0.0
        %3721 = vadd.xlane.f32.xlu0 %v3720
        %v3722 = vpop.xlane.xlu0 %3721
        %v3723 = vsel %vm838, %v3574, 0.0
        %3724 = vadd.xlane.f32.xlu0 %v3723
        %v3725 = vpop.xlane.xlu0 %3724
        %v3726 = vsel %vm838, %v3576, 0.0
        %3727 = vadd.xlane.f32.xlu0 %v3726
        %v3728 = vpop.xlane.xlu0 %3727
        %v3729 = vsel %vm838, %v3578, 0.0
        %3730 = vadd.xlane.f32.xlu0 %v3729
        %v3731 = vpop.xlane.xlu0 %3730
        %v3732 = vsel %vm838, %v3580, 0.0
        %3733 = vadd.xlane.f32.xlu0 %v3732
        %v3734 = vpop.xlane.xlu0 %3733
        %v3735 = vsel %vm838, %v3582, 0.0
        %3736 = vadd.xlane.f32.xlu0 %v3735
        %v3737 = vpop.xlane.xlu0 %3736
        %v3738 = vsel %vm838, %v3584, 0.0
        %3739 = vadd.xlane.f32.xlu0 %v3738
        %v3740 = vpop.xlane.xlu0 %3739
        %v3741 = vsel %vm838, %v3586, 0.0
        %3742 = vadd.xlane.f32.xlu0 %v3741
        %v3743 = vpop.xlane.xlu0 %3742
        %v3744 = vsel %vm838, %v3588, 0.0
        %3745 = vadd.xlane.f32.xlu0 %v3744
        %v3746 = vpop.xlane.xlu0 %3745
        %v3747 = vsel %vm838, %v3590, 0.0
        %3748 = vadd.xlane.f32.xlu0 %v3747
        %v3749 = vpop.xlane.xlu0 %3748
        %v3750 = vsel %vm838, %v3592, 0.0
        %3751 = vadd.xlane.f32.xlu0 %v3750
        %v3752 = vpop.xlane.xlu0 %3751
        %v3753 = vsel %vm838, %v3594, 0.0
        %3754 = vadd.xlane.f32.xlu0 %v3753
        %v3755 = vpop.xlane.xlu0 %3754
        %v3756 = vsel %vm838, %v3596, 0.0
        %3757 = vadd.xlane.f32.xlu0 %v3756
        %v3758 = vpop.xlane.xlu0 %3757
        %v3759 = vsel %vm838, %v3598, 0.0
        %3760 = vadd.xlane.f32.xlu0 %v3759
        %v3761 = vpop.xlane.xlu0 %3760
        %v3762 = vsel %vm838, %v3600, 0.0
        %3763 = vadd.xlane.f32.xlu0 %v3762
        %v3764 = vpop.xlane.xlu0 %3763
        %v3765 = vsel %vm838, %v3602, 0.0
        %3766 = vadd.xlane.f32.xlu0 %v3765
        %v3767 = vpop.xlane.xlu0 %3766
        %v3768 = vsel %vm838, %v3604, 0.0
        %3769 = vadd.xlane.f32.xlu0 %v3768
        %v3770 = vpop.xlane.xlu0 %3769
        %v3771 = vsel %vm838, %v3606, 0.0
        %3772 = vadd.xlane.f32.xlu0 %v3771
        %v3773 = vpop.xlane.xlu0 %3772
        %v3774 = vsel %vm838, %v3608, 0.0
        %3775 = vadd.xlane.f32.xlu0 %v3774
        %v3776 = vpop.xlane.xlu0 %3775
        %v3777 = vsel %vm838, %v3610, 0.0
        %3778 = vadd.xlane.f32.xlu0 %v3777
        %v3779 = vpop.xlane.xlu0 %3778
        %v3780 = vsel %vm838, %v3612, 0.0
        %3781 = vadd.xlane.f32.xlu0 %v3780
        %v3782 = vpop.xlane.xlu0 %3781
        %v3783 = vsel %vm838, %v3614, 0.0
        %3784 = vadd.xlane.f32.xlu0 %v3783
        %v3785 = vpop.xlane.xlu0 %3784
        %v3786 = vsel %vm838, %v3616, 0.0
        %3787 = vadd.xlane.f32.xlu0 %v3786
        %v3788 = vpop.xlane.xlu0 %3787
        %v3789 = vsel %vm838, %v3618, 0.0
        %3790 = vadd.xlane.f32.xlu0 %v3789
        %v3791 = vpop.xlane.xlu0 %3790
        %v3792 = vsel %vm838, %v3620, 0.0
        %3793 = vadd.xlane.f32.xlu0 %v3792
        %v3794 = vpop.xlane.xlu0 %3793
        %v3795 = vsel %vm838, %v3622, 0.0
        %3796 = vadd.xlane.f32.xlu0 %v3795
        %v3797 = vpop.xlane.xlu0 %3796
        %v3798 = vsel %vm838, %v3624, 0.0
        %3799 = vadd.xlane.f32.xlu0 %v3798
        %v3800 = vpop.xlane.xlu0 %3799
        %v3801 = vsel %vm838, %v3626, 0.0
        %3802 = vadd.xlane.f32.xlu0 %v3801
        %v3803 = vpop.xlane.xlu0 %3802
        %v3804 = vsel %vm838, %v3628, 0.0
        %3805 = vadd.xlane.f32.xlu0 %v3804
        %v3806 = vpop.xlane.xlu0 %3805
        %v3807 = vsel %vm838, %v3630, 0.0
        %3808 = vadd.xlane.f32.xlu0 %v3807
        %v3809 = vpop.xlane.xlu0 %3808
        %v3810 = vsel %vm838, %v3632, 0.0
        %3811 = vadd.xlane.f32.xlu0 %v3810
        %v3812 = vpop.xlane.xlu0 %3811
        %v3813 = vsel %vm838, %v3634, 0.0
        %3814 = vadd.xlane.f32.xlu0 %v3813
        %v3815 = vpop.xlane.xlu0 %3814
        %v3816 = vsel %vm838, %v3636, 0.0
        %3817 = vadd.xlane.f32.xlu0 %v3816
        %v3818 = vpop.xlane.xlu0 %3817
        %v3819 = vsel %vm838, %v3638, 0.0
        %3820 = vadd.xlane.f32.xlu0 %v3819
        %v3821 = vpop.xlane.xlu0 %3820
        %v3822 = vsel %vm838, %v3640, 0.0
        %3823 = vadd.xlane.f32.xlu0 %v3822
        %v3824 = vpop.xlane.xlu0 %3823
        %v3825 = vsel %vm838, %v3642, 0.0
        %3826 = vadd.xlane.f32.xlu0 %v3825
        %v3827 = vpop.xlane.xlu0 %3826
        %v3828 = vsel %vm838, %v3644, 0.0
        %3829 = vadd.xlane.f32.xlu0 %v3828
        %v3830 = vpop.xlane.xlu0 %3829
        %v3831 = vsel %vm838, %v3646, 0.0
        %3832 = vadd.xlane.f32.xlu0 %v3831
        %v3833 = vpop.xlane.xlu0 %3832
        %v3834 = vsel %vm838, %v3648, 0.0
        %3835 = vadd.xlane.f32.xlu0 %v3834
        %v3836 = vpop.xlane.xlu0 %3835
        %v3837 = vsel %vm838, %v3650, 0.0
        %3838 = vadd.xlane.f32.xlu0 %v3837
        %v3839 = vpop.xlane.xlu0 %3838
        %v3840 = vsel %vm838, %v3652, 0.0
        %3841 = vadd.xlane.f32.xlu0 %v3840
        %v3842 = vpop.xlane.xlu0 %3841
        %v3843 = vsel %vm838, %v3654, 0.0
        %3844 = vadd.xlane.f32.xlu0 %v3843
        %v3845 = vpop.xlane.xlu0 %3844
        %v3846 = vsel %vm838, %v3656, 0.0
        %3847 = vadd.xlane.f32.xlu0 %v3846
        %v3848 = vpop.xlane.xlu0 %3847
        %v3849 = vrcp.pop %v3659
        %v3850 = vrcp.pop %v3662
        %v3851 = vrcp.pop %v3665
        %v3852 = vrcp.pop %v3668
        %v3853 = vrcp.pop %v3671
        %v3854 = vrcp.pop %v3674
        %v3855 = vrcp.pop %v3677
        %v3856 = vrcp.pop %v3680
        %v3857 = vrcp.pop %v3683
        %v3858 = vrcp.pop %v3686
        %v3859 = vrcp.pop %v3689
        %v3860 = vrcp.pop %v3692
        %v3861 = vrcp.pop %v3695
        %v3862 = vrcp.pop %v3698
        %v3863 = vrcp.pop %v3701
        %v3864 = vrcp.pop %v3704
        %v3865 = vrcp.pop %v3707
        %v3866 = vrcp.pop %v3710
        %v3867 = vrcp.pop %v3713
        %v3868 = vrcp.pop %v3716
        %v3869 = vrcp.pop %v3719
        %v3870 = vrcp.pop %v3722
        %v3871 = vrcp.pop %v3725
        %v3872 = vrcp.pop %v3728
        %v3873 = vrcp.pop %v3731
        %v3874 = vrcp.pop %v3734
        %v3875 = vrcp.pop %v3737
        %v3876 = vrcp.pop %v3740
        %v3877 = vrcp.pop %v3743
        %v3878 = vrcp.pop %v3746
        %v3879 = vrcp.pop %v3749
        %v3880 = vrcp.pop %v3752
        %v3881 = vrcp.pop %v3755
        %v3882 = vrcp.pop %v3758
        %v3883 = vrcp.pop %v3761
        %v3884 = vrcp.pop %v3764
        %v3885 = vrcp.pop %v3767
        %v3886 = vrcp.pop %v3770
        %v3887 = vrcp.pop %v3773
        %v3888 = vrcp.pop %v3776
        %v3889 = vrcp.pop %v3779
        %v3890 = vrcp.pop %v3782
        %v3891 = vrcp.pop %v3785
        %v3892 = vrcp.pop %v3788
        %v3893 = vrcp.pop %v3791
        %v3894 = vrcp.pop %v3794
        %v3895 = vrcp.pop %v3797
        %v3896 = vrcp.pop %v3800
        %v3897 = vrcp.pop %v3803
        %v3898 = vrcp.pop %v3806
        %v3899 = vrcp.pop %v3809
        %v3900 = vrcp.pop %v3812
        %v3901 = vrcp.pop %v3815
        %v3902 = vrcp.pop %v3818
        %v3903 = vrcp.pop %v3821
        %v3904 = vrcp.pop %v3824
        %v3905 = vrcp.pop %v3827
        %v3906 = vrcp.pop %v3830
        %v3907 = vrcp.pop %v3833
        %v3908 = vrcp.pop %v3836
        %v3909 = vrcp.pop %v3839
        %v3910 = vrcp.pop %v3842
        %v3911 = vrcp.pop %v3845
        %v3912 = vrcp.pop %v3848
        %v3913 = vmul.f32 %v3530, %v3849
        %v3914 = vmul.f32 %v3532, %v3850
        %v3915 = vmul.f32 %v3534, %v3851
        %v3916 = vmul.f32 %v3536, %v3852
        %v3917 = vmul.f32 %v3538, %v3853
        %v3918 = vmul.f32 %v3540, %v3854
        %v3919 = vmul.f32 %v3542, %v3855
        %v3920 = vmul.f32 %v3544, %v3856
        %v3921 = vmul.f32 %v3546, %v3857
        %v3922 = vmul.f32 %v3548, %v3858
        %v3923 = vmul.f32 %v3550, %v3859
        %v3924 = vmul.f32 %v3552, %v3860
        %v3925 = vmul.f32 %v3554, %v3861
        %v3926 = vmul.f32 %v3556, %v3862
        %v3927 = vmul.f32 %v3558, %v3863
        %v3928 = vmul.f32 %v3560, %v3864
        %v3929 = vmul.f32 %v3562, %v3865
        %v3930 = vmul.f32 %v3564, %v3866
        %v3931 = vmul.f32 %v3566, %v3867
        %v3932 = vmul.f32 %v3568, %v3868
        %v3933 = vmul.f32 %v3570, %v3869
        %v3934 = vmul.f32 %v3572, %v3870
        %v3935 = vmul.f32 %v3574, %v3871
        %v3936 = vmul.f32 %v3576, %v3872
        %v3937 = vmul.f32 %v3578, %v3873
        %v3938 = vmul.f32 %v3580, %v3874
        %v3939 = vmul.f32 %v3582, %v3875
        %v3940 = vmul.f32 %v3584, %v3876
        %v3941 = vmul.f32 %v3586, %v3877
        %v3942 = vmul.f32 %v3588, %v3878
        %v3943 = vmul.f32 %v3590, %v3879
        %v3944 = vmul.f32 %v3592, %v3880
        %v3945 = vmul.f32 %v3594, %v3881
        %v3946 = vmul.f32 %v3596, %v3882
        %v3947 = vmul.f32 %v3598, %v3883
        %v3948 = vmul.f32 %v3600, %v3884
        %v3949 = vmul.f32 %v3602, %v3885
        %v3950 = vmul.f32 %v3604, %v3886
        %v3951 = vmul.f32 %v3606, %v3887
        %v3952 = vmul.f32 %v3608, %v3888
        %v3953 = vmul.f32 %v3610, %v3889
        %v3954 = vmul.f32 %v3612, %v3890
        %v3955 = vmul.f32 %v3614, %v3891
        %v3956 = vmul.f32 %v3616, %v3892
        %v3957 = vmul.f32 %v3618, %v3893
        %v3958 = vmul.f32 %v3620, %v3894
        %v3959 = vmul.f32 %v3622, %v3895
        %v3960 = vmul.f32 %v3624, %v3896
        %v3961 = vmul.f32 %v3626, %v3897
        %v3962 = vmul.f32 %v3628, %v3898
        %v3963 = vmul.f32 %v3630, %v3899
        %v3964 = vmul.f32 %v3632, %v3900
        %v3965 = vmul.f32 %v3634, %v3901
        %v3966 = vmul.f32 %v3636, %v3902
        %v3967 = vmul.f32 %v3638, %v3903
        %v3968 = vmul.f32 %v3640, %v3904
        %v3969 = vmul.f32 %v3642, %v3905
        %v3970 = vmul.f32 %v3644, %v3906
        %v3971 = vmul.f32 %v3646, %v3907
        %v3972 = vmul.f32 %v3648, %v3908
        %v3973 = vmul.f32 %v3650, %v3909
        %v3974 = vmul.f32 %v3652, %v3910
        %v3975 = vmul.f32 %v3654, %v3911
        %v3976 = vmul.f32 %v3656, %v3912
        %3977 = vrot.lane.b32.xlu0 %v1128, 64
        %v3978 = vpop.permute.xlu0 %3977
        %v3979 = vsel %vm838, %v3978, 0
        %v3982 = vsel %vm838, %v3913, 0
        %v3985 = vsel %vm838, %v3914, 0
        %v3988 = vsel %vm838, %v3915, 0
        %v3991 = vsel %vm838, %v3916, 0
        %3993 = vmatprep.subr.mxu0 0.0
        %3994 = vmatpush1.xpose.msra.mxu0 %v3982
        %3995 = vmatprep.subr.mxu0 0.0
        %3996 = vmatpush1.xpose.msra.mxu0 %v3985
        %3997 = vmatprep.subr.mxu0 0.0
        %3998 = vmatpush1.xpose.msra.mxu0 %v3988
        %3999 = vmatprep.subr.mxu0 0.0
        %4000 = vmatpush1.xpose.msra.mxu0 %v3991
        %4001 = vmatprep.subr.mxu0 0.0
        %4002 = vmatpush1.xpose.msra.mxu0 0.0
        %4003 = vmatprep.subr.mxu0 0.0
        %4004 = vmatpush1.xpose.msra.mxu0 0.0
        %4005 = vmatprep.subr.mxu0 0.0
        %4006 = vmatpush1.xpose.msra.mxu0 0.0
        %4007 = vmatprep.subr.mxu0 0.0
        %4008 = vmatpush1.xpose.msra.mxu0 0.0
        %4009 = vmatprep.subr.mxu0 0.0
        %4010 = vmatpush1.xpose.msra.mxu0 0.0
        %4011 = vmatprep.subr.mxu0 0.0
        %4012 = vmatpush1.xpose.msra.mxu0 0.0
        %4013 = vmatprep.subr.mxu0 0.0
        %4014 = vmatpush1.xpose.msra.mxu0 0.0
        %4015 = vmatprep.subr.mxu0 0.0
        %4016 = vmatpush1.xpose.msra.mxu0 0.0
        %4017 = vmatprep.subr.mxu0 0.0
        %4018 = vmatpush1.xpose.msra.mxu0 0.0
        %4019 = vmatprep.subr.mxu0 0.0
        %4020 = vmatpush1.xpose.msra.mxu0 0.0
        %4021 = vmatprep.subr.mxu0 0.0
        %4022 = vmatpush1.xpose.msra.mxu0 0.0
        %4023 = vmatprep.subr.mxu0 0.0
        %4024 = vmatpush1.xpose.msra.mxu0 0.0
        %4025 = vmatprep.subr.mxu0 0.0
        %4026 = vmatpush1.xpose.msra.mxu0 0.0
        %4027 = vmatprep.subr.mxu0 0.0
        %4028 = vmatpush1.xpose.msra.mxu0 0.0
        %4029 = vmatprep.subr.mxu0 0.0
        %4030 = vmatpush1.xpose.msra.mxu0 0.0
        %4031 = vmatprep.subr.mxu0 0.0
        %4032 = vmatpush1.xpose.msra.mxu0 0.0
        %4033 = vmatprep.subr.mxu0 0.0
        %4034 = vmatpush1.xpose.msra.mxu0 0.0
        %4035 = vmatprep.subr.mxu0 0.0
        %4036 = vmatpush1.xpose.msra.mxu0 0.0
        %4037 = vmatprep.subr.mxu0 0.0
        %4038 = vmatpush1.xpose.msra.mxu0 0.0
        %4039 = vmatprep.subr.mxu0 0.0
        %4040 = vmatpush1.xpose.msra.mxu0 0.0
        %4041 = vmatprep.subr.mxu0 0.0
        %4042 = vmatpush1.xpose.msra.mxu0 0.0
        %4043 = vmatprep.subr.mxu0 0.0
        %4044 = vmatpush1.xpose.msra.mxu0 0.0
        %4045 = vmatprep.subr.mxu0 0.0
        %4046 = vmatpush1.xpose.msra.mxu0 0.0
        %4047 = vmatprep.subr.mxu0 0.0
        %4048 = vmatpush1.xpose.msra.mxu0 0.0
        %4049 = vmatprep.subr.mxu0 0.0
        %4050 = vmatpush1.xpose.msra.mxu0 0.0
        %4051 = vmatprep.subr.mxu0 0.0
        %4052 = vmatpush1.xpose.msra.mxu0 0.0
        %4053 = vmatprep.subr.mxu0 0.0
        %4054 = vmatpush1.xpose.msra.mxu0 0.0
        %4055 = vmatprep.subr.mxu0 0.0
        %4056 = vmatpush1.xpose.msra.mxu0 0.0
        %4057 = vmatprep.mubr.f32.mxu0 0.0
        %4058 = vmatmul.mubr.f32.gmra.mrb[0].mxu0 %v3979
        %v4059 = vpop.f32.mrb[0].mxu0
        %v4060 = vadd.f32 0.0, %v4059
        %v4061 = vpop.f32.mrb[0].mxu0
        %4062 = vdwg.mxu0
        %4063 = vrot.lane.b32.xlu0 %v1129, 64
        %v4064 = vpop.permute.xlu0 %4063
        %v4065 = vsel %vm838, %v4064, 0
        %v4068 = vsel %vm838, %v3917, 0
        %v4071 = vsel %vm838, %v3918, 0
        %v4074 = vsel %vm838, %v3919, 0
        %v4077 = vsel %vm838, %v3920, 0
        %4079 = vmatprep.subr.mxu0 0.0
        %4080 = vmatpush1.xpose.msra.mxu0 %v4068
        %4081 = vmatprep.subr.mxu0 0.0
        %4082 = vmatpush1.xpose.msra.mxu0 %v4071
        %4083 = vmatprep.subr.mxu0 0.0
        %4084 = vmatpush1.xpose.msra.mxu0 %v4074
        %4085 = vmatprep.subr.mxu0 0.0
        %4086 = vmatpush1.xpose.msra.mxu0 %v4077
        %4087 = vmatprep.subr.mxu0 0.0
        %4088 = vmatpush1.xpose.msra.mxu0 0.0
        %4089 = vmatprep.subr.mxu0 0.0
        %4090 = vmatpush1.xpose.msra.mxu0 0.0
        %4091 = vmatprep.subr.mxu0 0.0
        %4092 = vmatpush1.xpose.msra.mxu0 0.0
        %4093 = vmatprep.subr.mxu0 0.0
        %4094 = vmatpush1.xpose.msra.mxu0 0.0
        %4095 = vmatprep.subr.mxu0 0.0
        %4096 = vmatpush1.xpose.msra.mxu0 0.0
        %4097 = vmatprep.subr.mxu0 0.0
        %4098 = vmatpush1.xpose.msra.mxu0 0.0
        %4099 = vmatprep.subr.mxu0 0.0
        %4100 = vmatpush1.xpose.msra.mxu0 0.0
        %4101 = vmatprep.subr.mxu0 0.0
        %4102 = vmatpush1.xpose.msra.mxu0 0.0
        %4103 = vmatprep.subr.mxu0 0.0
        %4104 = vmatpush1.xpose.msra.mxu0 0.0
        %4105 = vmatprep.subr.mxu0 0.0
        %4106 = vmatpush1.xpose.msra.mxu0 0.0
        %4107 = vmatprep.subr.mxu0 0.0
        %4108 = vmatpush1.xpose.msra.mxu0 0.0
        %4109 = vmatprep.subr.mxu0 0.0
        %4110 = vmatpush1.xpose.msra.mxu0 0.0
        %4111 = vmatprep.subr.mxu0 0.0
        %4112 = vmatpush1.xpose.msra.mxu0 0.0
        %4113 = vmatprep.subr.mxu0 0.0
        %4114 = vmatpush1.xpose.msra.mxu0 0.0
        %4115 = vmatprep.subr.mxu0 0.0
        %4116 = vmatpush1.xpose.msra.mxu0 0.0
        %4117 = vmatprep.subr.mxu0 0.0
        %4118 = vmatpush1.xpose.msra.mxu0 0.0
        %4119 = vmatprep.subr.mxu0 0.0
        %4120 = vmatpush1.xpose.msra.mxu0 0.0
        %4121 = vmatprep.subr.mxu0 0.0
        %4122 = vmatpush1.xpose.msra.mxu0 0.0
        %4123 = vmatprep.subr.mxu0 0.0
        %4124 = vmatpush1.xpose.msra.mxu0 0.0
        %4125 = vmatprep.subr.mxu0 0.0
        %4126 = vmatpush1.xpose.msra.mxu0 0.0
        %4127 = vmatprep.subr.mxu0 0.0
        %4128 = vmatpush1.xpose.msra.mxu0 0.0
        %4129 = vmatprep.subr.mxu0 0.0
        %4130 = vmatpush1.xpose.msra.mxu0 0.0
        %4131 = vmatprep.subr.mxu0 0.0
        %4132 = vmatpush1.xpose.msra.mxu0 0.0
        %4133 = vmatprep.subr.mxu0 0.0
        %4134 = vmatpush1.xpose.msra.mxu0 0.0
        %4135 = vmatprep.subr.mxu0 0.0
        %4136 = vmatpush1.xpose.msra.mxu0 0.0
        %4137 = vmatprep.subr.mxu0 0.0
        %4138 = vmatpush1.xpose.msra.mxu0 0.0
        %4139 = vmatprep.subr.mxu0 0.0
        %4140 = vmatpush1.xpose.msra.mxu0 0.0
        %4141 = vmatprep.subr.mxu0 0.0
        %4142 = vmatpush1.xpose.msra.mxu0 0.0
        %4143 = vmatprep.mubr.f32.mxu0 0.0
        %4144 = vmatmul.mubr.f32.gmra.mrb[0].mxu0 %v4065
        %v4145 = vpop.f32.mrb[0].mxu0
        %v4146 = vadd.f32 0.0, %v4145
        %v4147 = vpop.f32.mrb[0].mxu0
        %4148 = vdwg.mxu0
        %4149 = vrot.lane.b32.xlu0 %v1130, 64
        %v4150 = vpop.permute.xlu0 %4149
        %v4151 = vsel %vm838, %v4150, 0
        %v4154 = vsel %vm838, %v3921, 0
        %v4157 = vsel %vm838, %v3922, 0
        %v4160 = vsel %vm838, %v3923, 0
        %v4163 = vsel %vm838, %v3924, 0
        %4165 = vmatprep.subr.mxu0 0.0
        %4166 = vmatpush1.xpose.msra.mxu0 %v4154
        %4167 = vmatprep.subr.mxu0 0.0
        %4168 = vmatpush1.xpose.msra.mxu0 %v4157
        %4169 = vmatprep.subr.mxu0 0.0
        %4170 = vmatpush1.xpose.msra.mxu0 %v4160
        %4171 = vmatprep.subr.mxu0 0.0
        %4172 = vmatpush1.xpose.msra.mxu0 %v4163
        %4173 = vmatprep.subr.mxu0 0.0
        %4174 = vmatpush1.xpose.msra.mxu0 0.0
        %4175 = vmatprep.subr.mxu0 0.0
        %4176 = vmatpush1.xpose.msra.mxu0 0.0
        %4177 = vmatprep.subr.mxu0 0.0
        %4178 = vmatpush1.xpose.msra.mxu0 0.0
        %4179 = vmatprep.subr.mxu0 0.0
        %4180 = vmatpush1.xpose.msra.mxu0 0.0
        %4181 = vmatprep.subr.mxu0 0.0
        %4182 = vmatpush1.xpose.msra.mxu0 0.0
        %4183 = vmatprep.subr.mxu0 0.0
        %4184 = vmatpush1.xpose.msra.mxu0 0.0
        %4185 = vmatprep.subr.mxu0 0.0
        %4186 = vmatpush1.xpose.msra.mxu0 0.0
        %4187 = vmatprep.subr.mxu0 0.0
        %4188 = vmatpush1.xpose.msra.mxu0 0.0
        %4189 = vmatprep.subr.mxu0 0.0
        %4190 = vmatpush1.xpose.msra.mxu0 0.0
        %4191 = vmatprep.subr.mxu0 0.0
        %4192 = vmatpush1.xpose.msra.mxu0 0.0
        %4193 = vmatprep.subr.mxu0 0.0
        %4194 = vmatpush1.xpose.msra.mxu0 0.0
        %4195 = vmatprep.subr.mxu0 0.0
        %4196 = vmatpush1.xpose.msra.mxu0 0.0
        %4197 = vmatprep.subr.mxu0 0.0
        %4198 = vmatpush1.xpose.msra.mxu0 0.0
        %4199 = vmatprep.subr.mxu0 0.0
        %4200 = vmatpush1.xpose.msra.mxu0 0.0
        %4201 = vmatprep.subr.mxu0 0.0
        %4202 = vmatpush1.xpose.msra.mxu0 0.0
        %4203 = vmatprep.subr.mxu0 0.0
        %4204 = vmatpush1.xpose.msra.mxu0 0.0
        %4205 = vmatprep.subr.mxu0 0.0
        %4206 = vmatpush1.xpose.msra.mxu0 0.0
        %4207 = vmatprep.subr.mxu0 0.0
        %4208 = vmatpush1.xpose.msra.mxu0 0.0
        %4209 = vmatprep.subr.mxu0 0.0
        %4210 = vmatpush1.xpose.msra.mxu0 0.0
        %4211 = vmatprep.subr.mxu0 0.0
        %4212 = vmatpush1.xpose.msra.mxu0 0.0
        %4213 = vmatprep.subr.mxu0 0.0
        %4214 = vmatpush1.xpose.msra.mxu0 0.0
        %4215 = vmatprep.subr.mxu0 0.0
        %4216 = vmatpush1.xpose.msra.mxu0 0.0
        %4217 = vmatprep.subr.mxu0 0.0
        %4218 = vmatpush1.xpose.msra.mxu0 0.0
        %4219 = vmatprep.subr.mxu0 0.0
        %4220 = vmatpush1.xpose.msra.mxu0 0.0
        %4221 = vmatprep.subr.mxu0 0.0
        %4222 = vmatpush1.xpose.msra.mxu0 0.0
        %4223 = vmatprep.subr.mxu0 0.0
        %4224 = vmatpush1.xpose.msra.mxu0 0.0
        %4225 = vmatprep.subr.mxu0 0.0
        %4226 = vmatpush1.xpose.msra.mxu0 0.0
        %4227 = vmatprep.subr.mxu0 0.0
        %4228 = vmatpush1.xpose.msra.mxu0 0.0
        %4229 = vmatprep.mubr.f32.mxu0 0.0
        %4230 = vmatmul.mubr.f32.gmra.mrb[0].mxu0 %v4151
        %v4231 = vpop.f32.mrb[0].mxu0
        %v4232 = vadd.f32 0.0, %v4231
        %v4233 = vpop.f32.mrb[0].mxu0
        %4234 = vdwg.mxu0
        %4235 = vrot.lane.b32.xlu0 %v1131, 64
        %v4236 = vpop.permute.xlu0 %4235
        %v4237 = vsel %vm838, %v4236, 0
        %v4240 = vsel %vm838, %v3925, 0
        %v4243 = vsel %vm838, %v3926, 0
        %v4246 = vsel %vm838, %v3927, 0
        %v4249 = vsel %vm838, %v3928, 0
        %4251 = vmatprep.subr.mxu0 0.0
        %4252 = vmatpush1.xpose.msra.mxu0 %v4240
        %4253 = vmatprep.subr.mxu0 0.0
        %4254 = vmatpush1.xpose.msra.mxu0 %v4243
        %4255 = vmatprep.subr.mxu0 0.0
        %4256 = vmatpush1.xpose.msra.mxu0 %v4246
        %4257 = vmatprep.subr.mxu0 0.0
        %4258 = vmatpush1.xpose.msra.mxu0 %v4249
        %4259 = vmatprep.subr.mxu0 0.0
        %4260 = vmatpush1.xpose.msra.mxu0 0.0
        %4261 = vmatprep.subr.mxu0 0.0
        %4262 = vmatpush1.xpose.msra.mxu0 0.0
        %4263 = vmatprep.subr.mxu0 0.0
        %4264 = vmatpush1.xpose.msra.mxu0 0.0
        %4265 = vmatprep.subr.mxu0 0.0
        %4266 = vmatpush1.xpose.msra.mxu0 0.0
        %4267 = vmatprep.subr.mxu0 0.0
        %4268 = vmatpush1.xpose.msra.mxu0 0.0
        %4269 = vmatprep.subr.mxu0 0.0
        %4270 = vmatpush1.xpose.msra.mxu0 0.0
        %4271 = vmatprep.subr.mxu0 0.0
        %4272 = vmatpush1.xpose.msra.mxu0 0.0
        %4273 = vmatprep.subr.mxu0 0.0
        %4274 = vmatpush1.xpose.msra.mxu0 0.0
        %4275 = vmatprep.subr.mxu0 0.0
        %4276 = vmatpush1.xpose.msra.mxu0 0.0
        %4277 = vmatprep.subr.mxu0 0.0
        %4278 = vmatpush1.xpose.msra.mxu0 0.0
        %4279 = vmatprep.subr.mxu0 0.0
        %4280 = vmatpush1.xpose.msra.mxu0 0.0
        %4281 = vmatprep.subr.mxu0 0.0
        %4282 = vmatpush1.xpose.msra.mxu0 0.0
        %4283 = vmatprep.subr.mxu0 0.0
        %4284 = vmatpush1.xpose.msra.mxu0 0.0
        %4285 = vmatprep.subr.mxu0 0.0
        %4286 = vmatpush1.xpose.msra.mxu0 0.0
        %4287 = vmatprep.subr.mxu0 0.0
        %4288 = vmatpush1.xpose.msra.mxu0 0.0
        %4289 = vmatprep.subr.mxu0 0.0
        %4290 = vmatpush1.xpose.msra.mxu0 0.0
        %4291 = vmatprep.subr.mxu0 0.0
        %4292 = vmatpush1.xpose.msra.mxu0 0.0
        %4293 = vmatprep.subr.mxu0 0.0
        %4294 = vmatpush1.xpose.msra.mxu0 0.0
        %4295 = vmatprep.subr.mxu0 0.0
        %4296 = vmatpush1.xpose.msra.mxu0 0.0
        %4297 = vmatprep.subr.mxu0 0.0
        %4298 = vmatpush1.xpose.msra.mxu0 0.0
        %4299 = vmatprep.subr.mxu0 0.0
        %4300 = vmatpush1.xpose.msra.mxu0 0.0
        %4301 = vmatprep.subr.mxu0 0.0
        %4302 = vmatpush1.xpose.msra.mxu0 0.0
        %4303 = vmatprep.subr.mxu0 0.0
        %4304 = vmatpush1.xpose.msra.mxu0 0.0
        %4305 = vmatprep.subr.mxu0 0.0
        %4306 = vmatpush1.xpose.msra.mxu0 0.0
        %4307 = vmatprep.subr.mxu0 0.0
        %4308 = vmatpush1.xpose.msra.mxu0 0.0
        %4309 = vmatprep.subr.mxu0 0.0
        %4310 = vmatpush1.xpose.msra.mxu0 0.0
        %4311 = vmatprep.subr.mxu0 0.0
        %4312 = vmatpush1.xpose.msra.mxu0 0.0
        %4313 = vmatprep.subr.mxu0 0.0
        %4314 = vmatpush1.xpose.msra.mxu0 0.0
        %4315 = vmatprep.mubr.f32.mxu0 0.0
        %4316 = vmatmul.mubr.f32.gmra.mrb[0].mxu0 %v4237
        %v4317 = vpop.f32.mrb[0].mxu0
        %v4318 = vadd.f32 0.0, %v4317
        %v4319 = vpop.f32.mrb[0].mxu0
        %4320 = vdwg.mxu0
        %4321 = vrot.lane.b32.xlu0 %v1132, 64
        %v4322 = vpop.permute.xlu0 %4321
        %v4323 = vsel %vm838, %v4322, 0
        %v4326 = vsel %vm838, %v3929, 0
        %v4329 = vsel %vm838, %v3930, 0
        %v4332 = vsel %vm838, %v3931, 0
        %v4335 = vsel %vm838, %v3932, 0
        %4337 = vmatprep.subr.mxu0 0.0
        %4338 = vmatpush1.xpose.msra.mxu0 %v4326
        %4339 = vmatprep.subr.mxu0 0.0
        %4340 = vmatpush1.xpose.msra.mxu0 %v4329
        %4341 = vmatprep.subr.mxu0 0.0
        %4342 = vmatpush1.xpose.msra.mxu0 %v4332
        %4343 = vmatprep.subr.mxu0 0.0
        %4344 = vmatpush1.xpose.msra.mxu0 %v4335
        %4345 = vmatprep.subr.mxu0 0.0
        %4346 = vmatpush1.xpose.msra.mxu0 0.0
        %4347 = vmatprep.subr.mxu0 0.0
        %4348 = vmatpush1.xpose.msra.mxu0 0.0
        %4349 = vmatprep.subr.mxu0 0.0
        %4350 = vmatpush1.xpose.msra.mxu0 0.0
        %4351 = vmatprep.subr.mxu0 0.0
        %4352 = vmatpush1.xpose.msra.mxu0 0.0
        %4353 = vmatprep.subr.mxu0 0.0
        %4354 = vmatpush1.xpose.msra.mxu0 0.0
        %4355 = vmatprep.subr.mxu0 0.0
        %4356 = vmatpush1.xpose.msra.mxu0 0.0
        %4357 = vmatprep.subr.mxu0 0.0
        %4358 = vmatpush1.xpose.msra.mxu0 0.0
        %4359 = vmatprep.subr.mxu0 0.0
        %4360 = vmatpush1.xpose.msra.mxu0 0.0
        %4361 = vmatprep.subr.mxu0 0.0
        %4362 = vmatpush1.xpose.msra.mxu0 0.0
        %4363 = vmatprep.subr.mxu0 0.0
        %4364 = vmatpush1.xpose.msra.mxu0 0.0
        %4365 = vmatprep.subr.mxu0 0.0
        %4366 = vmatpush1.xpose.msra.mxu0 0.0
        %4367 = vmatprep.subr.mxu0 0.0
        %4368 = vmatpush1.xpose.msra.mxu0 0.0
        %4369 = vmatprep.subr.mxu0 0.0
        %4370 = vmatpush1.xpose.msra.mxu0 0.0
        %4371 = vmatprep.subr.mxu0 0.0
        %4372 = vmatpush1.xpose.msra.mxu0 0.0
        %4373 = vmatprep.subr.mxu0 0.0
        %4374 = vmatpush1.xpose.msra.mxu0 0.0
        %4375 = vmatprep.subr.mxu0 0.0
        %4376 = vmatpush1.xpose.msra.mxu0 0.0
        %4377 = vmatprep.subr.mxu0 0.0
        %4378 = vmatpush1.xpose.msra.mxu0 0.0
        %4379 = vmatprep.subr.mxu0 0.0
        %4380 = vmatpush1.xpose.msra.mxu0 0.0
        %4381 = vmatprep.subr.mxu0 0.0
        %4382 = vmatpush1.xpose.msra.mxu0 0.0
        %4383 = vmatprep.subr.mxu0 0.0
        %4384 = vmatpush1.xpose.msra.mxu0 0.0
        %4385 = vmatprep.subr.mxu0 0.0
        %4386 = vmatpush1.xpose.msra.mxu0 0.0
        %4387 = vmatprep.subr.mxu0 0.0
        %4388 = vmatpush1.xpose.msra.mxu0 0.0
        %4389 = vmatprep.subr.mxu0 0.0
        %4390 = vmatpush1.xpose.msra.mxu0 0.0
        %4391 = vmatprep.subr.mxu0 0.0
        %4392 = vmatpush1.xpose.msra.mxu0 0.0
        %4393 = vmatprep.subr.mxu0 0.0
        %4394 = vmatpush1.xpose.msra.mxu0 0.0
        %4395 = vmatprep.subr.mxu0 0.0
        %4396 = vmatpush1.xpose.msra.mxu0 0.0
        %4397 = vmatprep.subr.mxu0 0.0
        %4398 = vmatpush1.xpose.msra.mxu0 0.0
        %4399 = vmatprep.subr.mxu0 0.0
        %4400 = vmatpush1.xpose.msra.mxu0 0.0
        %4401 = vmatprep.mubr.f32.mxu0 0.0
        %4402 = vmatmul.mubr.f32.gmra.mrb[0].mxu0 %v4323
        %v4403 = vpop.f32.mrb[0].mxu0
        %v4404 = vadd.f32 0.0, %v4403
        %v4405 = vpop.f32.mrb[0].mxu0
        %4406 = vdwg.mxu0
        %4407 = vrot.lane.b32.xlu0 %v1133, 64
        %v4408 = vpop.permute.xlu0 %4407
        %v4409 = vsel %vm838, %v4408, 0
        %v4412 = vsel %vm838, %v3933, 0
        %v4415 = vsel %vm838, %v3934, 0
        %v4418 = vsel %vm838, %v3935, 0
        %v4421 = vsel %vm838, %v3936, 0
        %4423 = vmatprep.subr.mxu0 0.0
        %4424 = vmatpush1.xpose.msra.mxu0 %v4412
        %4425 = vmatprep.subr.mxu0 0.0
        %4426 = vmatpush1.xpose.msra.mxu0 %v4415
        %4427 = vmatprep.subr.mxu0 0.0
        %4428 = vmatpush1.xpose.msra.mxu0 %v4418
        %4429 = vmatprep.subr.mxu0 0.0
        %4430 = vmatpush1.xpose.msra.mxu0 %v4421
        %4431 = vmatprep.subr.mxu0 0.0
        %4432 = vmatpush1.xpose.msra.mxu0 0.0
        %4433 = vmatprep.subr.mxu0 0.0
        %4434 = vmatpush1.xpose.msra.mxu0 0.0
        %4435 = vmatprep.subr.mxu0 0.0
        %4436 = vmatpush1.xpose.msra.mxu0 0.0
        %4437 = vmatprep.subr.mxu0 0.0
        %4438 = vmatpush1.xpose.msra.mxu0 0.0
        %4439 = vmatprep.subr.mxu0 0.0
        %4440 = vmatpush1.xpose.msra.mxu0 0.0
        %4441 = vmatprep.subr.mxu0 0.0
        %4442 = vmatpush1.xpose.msra.mxu0 0.0
        %4443 = vmatprep.subr.mxu0 0.0
        %4444 = vmatpush1.xpose.msra.mxu0 0.0
        %4445 = vmatprep.subr.mxu0 0.0
        %4446 = vmatpush1.xpose.msra.mxu0 0.0
        %4447 = vmatprep.subr.mxu0 0.0
        %4448 = vmatpush1.xpose.msra.mxu0 0.0
        %4449 = vmatprep.subr.mxu0 0.0
        %4450 = vmatpush1.xpose.msra.mxu0 0.0
        %4451 = vmatprep.subr.mxu0 0.0
        %4452 = vmatpush1.xpose.msra.mxu0 0.0
        %4453 = vmatprep.subr.mxu0 0.0
        %4454 = vmatpush1.xpose.msra.mxu0 0.0
        %4455 = vmatprep.subr.mxu0 0.0
        %4456 = vmatpush1.xpose.msra.mxu0 0.0
        %4457 = vmatprep.subr.mxu0 0.0
        %4458 = vmatpush1.xpose.msra.mxu0 0.0
        %4459 = vmatprep.subr.mxu0 0.0
        %4460 = vmatpush1.xpose.msra.mxu0 0.0
        %4461 = vmatprep.subr.mxu0 0.0
        %4462 = vmatpush1.xpose.msra.mxu0 0.0
        %4463 = vmatprep.subr.mxu0 0.0
        %4464 = vmatpush1.xpose.msra.mxu0 0.0
        %4465 = vmatprep.subr.mxu0 0.0
        %4466 = vmatpush1.xpose.msra.mxu0 0.0
        %4467 = vmatprep.subr.mxu0 0.0
        %4468 = vmatpush1.xpose.msra.mxu0 0.0
        %4469 = vmatprep.subr.mxu0 0.0
        %4470 = vmatpush1.xpose.msra.mxu0 0.0
        %4471 = vmatprep.subr.mxu0 0.0
        %4472 = vmatpush1.xpose.msra.mxu0 0.0
        %4473 = vmatprep.subr.mxu0 0.0
        %4474 = vmatpush1.xpose.msra.mxu0 0.0
        %4475 = vmatprep.subr.mxu0 0.0
        %4476 = vmatpush1.xpose.msra.mxu0 0.0
        %4477 = vmatprep.subr.mxu0 0.0
        %4478 = vmatpush1.xpose.msra.mxu0 0.0
        %4479 = vmatprep.subr.mxu0 0.0
        %4480 = vmatpush1.xpose.msra.mxu0 0.0
        %4481 = vmatprep.subr.mxu0 0.0
        %4482 = vmatpush1.xpose.msra.mxu0 0.0
        %4483 = vmatprep.subr.mxu0 0.0
        %4484 = vmatpush1.xpose.msra.mxu0 0.0
        %4485 = vmatprep.subr.mxu0 0.0
        %4486 = vmatpush1.xpose.msra.mxu0 0.0
        %4487 = vmatprep.mubr.f32.mxu0 0.0
        %4488 = vmatmul.mubr.f32.gmra.mrb[0].mxu0 %v4409
        %v4489 = vpop.f32.mrb[0].mxu0
        %v4490 = vadd.f32 0.0, %v4489
        %v4491 = vpop.f32.mrb[0].mxu0
        %4492 = vdwg.mxu0
        %4493 = vrot.lane.b32.xlu0 %v1134, 64
        %v4494 = vpop.permute.xlu0 %4493
        %v4495 = vsel %vm838, %v4494, 0
        %v4498 = vsel %vm838, %v3937, 0
        %v4501 = vsel %vm838, %v3938, 0
        %v4504 = vsel %vm838, %v3939, 0
        %v4507 = vsel %vm838, %v3940, 0
        %4509 = vmatprep.subr.mxu0 0.0
        %4510 = vmatpush1.xpose.msra.mxu0 %v4498
        %4511 = vmatprep.subr.mxu0 0.0
        %4512 = vmatpush1.xpose.msra.mxu0 %v4501
        %4513 = vmatprep.subr.mxu0 0.0
        %4514 = vmatpush1.xpose.msra.mxu0 %v4504
        %4515 = vmatprep.subr.mxu0 0.0
        %4516 = vmatpush1.xpose.msra.mxu0 %v4507
        %4517 = vmatprep.subr.mxu0 0.0
        %4518 = vmatpush1.xpose.msra.mxu0 0.0
        %4519 = vmatprep.subr.mxu0 0.0
        %4520 = vmatpush1.xpose.msra.mxu0 0.0
        %4521 = vmatprep.subr.mxu0 0.0
        %4522 = vmatpush1.xpose.msra.mxu0 0.0
        %4523 = vmatprep.subr.mxu0 0.0
        %4524 = vmatpush1.xpose.msra.mxu0 0.0
        %4525 = vmatprep.subr.mxu0 0.0
        %4526 = vmatpush1.xpose.msra.mxu0 0.0
        %4527 = vmatprep.subr.mxu0 0.0
        %4528 = vmatpush1.xpose.msra.mxu0 0.0
        %4529 = vmatprep.subr.mxu0 0.0
        %4530 = vmatpush1.xpose.msra.mxu0 0.0
        %4531 = vmatprep.subr.mxu0 0.0
        %4532 = vmatpush1.xpose.msra.mxu0 0.0
        %4533 = vmatprep.subr.mxu0 0.0
        %4534 = vmatpush1.xpose.msra.mxu0 0.0
        %4535 = vmatprep.subr.mxu0 0.0
        %4536 = vmatpush1.xpose.msra.mxu0 0.0
        %4537 = vmatprep.subr.mxu0 0.0
        %4538 = vmatpush1.xpose.msra.mxu0 0.0
        %4539 = vmatprep.subr.mxu0 0.0
        %4540 = vmatpush1.xpose.msra.mxu0 0.0
        %4541 = vmatprep.subr.mxu0 0.0
        %4542 = vmatpush1.xpose.msra.mxu0 0.0
        %4543 = vmatprep.subr.mxu0 0.0
        %4544 = vmatpush1.xpose.msra.mxu0 0.0
        %4545 = vmatprep.subr.mxu0 0.0
        %4546 = vmatpush1.xpose.msra.mxu0 0.0
        %4547 = vmatprep.subr.mxu0 0.0
        %4548 = vmatpush1.xpose.msra.mxu0 0.0
        %4549 = vmatprep.subr.mxu0 0.0
        %4550 = vmatpush1.xpose.msra.mxu0 0.0
        %4551 = vmatprep.subr.mxu0 0.0
        %4552 = vmatpush1.xpose.msra.mxu0 0.0
        %4553 = vmatprep.subr.mxu0 0.0
        %4554 = vmatpush1.xpose.msra.mxu0 0.0
        %4555 = vmatprep.subr.mxu0 0.0
        %4556 = vmatpush1.xpose.msra.mxu0 0.0
        %4557 = vmatprep.subr.mxu0 0.0
        %4558 = vmatpush1.xpose.msra.mxu0 0.0
        %4559 = vmatprep.subr.mxu0 0.0
        %4560 = vmatpush1.xpose.msra.mxu0 0.0
        %4561 = vmatprep.subr.mxu0 0.0
        %4562 = vmatpush1.xpose.msra.mxu0 0.0
        %4563 = vmatprep.subr.mxu0 0.0
        %4564 = vmatpush1.xpose.msra.mxu0 0.0
        %4565 = vmatprep.subr.mxu0 0.0
        %4566 = vmatpush1.xpose.msra.mxu0 0.0
        %4567 = vmatprep.subr.mxu0 0.0
        %4568 = vmatpush1.xpose.msra.mxu0 0.0
        %4569 = vmatprep.subr.mxu0 0.0
        %4570 = vmatpush1.xpose.msra.mxu0 0.0
        %4571 = vmatprep.subr.mxu0 0.0
        %4572 = vmatpush1.xpose.msra.mxu0 0.0
        %4573 = vmatprep.mubr.f32.mxu0 0.0
        %4574 = vmatmul.mubr.f32.gmra.mrb[0].mxu0 %v4495
        %v4575 = vpop.f32.mrb[0].mxu0
        %v4576 = vadd.f32 0.0, %v4575
        %v4577 = vpop.f32.mrb[0].mxu0
        %4578 = vdwg.mxu0
        %4579 = vrot.lane.b32.xlu0 %v1135, 64
        %v4580 = vpop.permute.xlu0 %4579
        %v4581 = vsel %vm838, %v4580, 0
        %v4584 = vsel %vm838, %v3941, 0
        %v4587 = vsel %vm838, %v3942, 0
        %v4590 = vsel %vm838, %v3943, 0
        %v4593 = vsel %vm838, %v3944, 0
        %4595 = vmatprep.subr.mxu0 0.0
        %4596 = vmatpush1.xpose.msra.mxu0 %v4584
        %4597 = vmatprep.subr.mxu0 0.0
        %4598 = vmatpush1.xpose.msra.mxu0 %v4587
        %4599 = vmatprep.subr.mxu0 0.0
        %4600 = vmatpush1.xpose.msra.mxu0 %v4590
        %4601 = vmatprep.subr.mxu0 0.0
        %4602 = vmatpush1.xpose.msra.mxu0 %v4593
        %4603 = vmatprep.subr.mxu0 0.0
        %4604 = vmatpush1.xpose.msra.mxu0 0.0
        %4605 = vmatprep.subr.mxu0 0.0
        %4606 = vmatpush1.xpose.msra.mxu0 0.0
        %4607 = vmatprep.subr.mxu0 0.0
        %4608 = vmatpush1.xpose.msra.mxu0 0.0
        %4609 = vmatprep.subr.mxu0 0.0
        %4610 = vmatpush1.xpose.msra.mxu0 0.0
        %4611 = vmatprep.subr.mxu0 0.0
        %4612 = vmatpush1.xpose.msra.mxu0 0.0
        %4613 = vmatprep.subr.mxu0 0.0
        %4614 = vmatpush1.xpose.msra.mxu0 0.0
        %4615 = vmatprep.subr.mxu0 0.0
        %4616 = vmatpush1.xpose.msra.mxu0 0.0
        %4617 = vmatprep.subr.mxu0 0.0
        %4618 = vmatpush1.xpose.msra.mxu0 0.0
        %4619 = vmatprep.subr.mxu0 0.0
        %4620 = vmatpush1.xpose.msra.mxu0 0.0
        %4621 = vmatprep.subr.mxu0 0.0
        %4622 = vmatpush1.xpose.msra.mxu0 0.0
        %4623 = vmatprep.subr.mxu0 0.0
        %4624 = vmatpush1.xpose.msra.mxu0 0.0
        %4625 = vmatprep.subr.mxu0 0.0
        %4626 = vmatpush1.xpose.msra.mxu0 0.0
        %4627 = vmatprep.subr.mxu0 0.0
        %4628 = vmatpush1.xpose.msra.mxu0 0.0
        %4629 = vmatprep.subr.mxu0 0.0
        %4630 = vmatpush1.xpose.msra.mxu0 0.0
        %4631 = vmatprep.subr.mxu0 0.0
        %4632 = vmatpush1.xpose.msra.mxu0 0.0
        %4633 = vmatprep.subr.mxu0 0.0
        %4634 = vmatpush1.xpose.msra.mxu0 0.0
        %4635 = vmatprep.subr.mxu0 0.0
        %4636 = vmatpush1.xpose.msra.mxu0 0.0
        %4637 = vmatprep.subr.mxu0 0.0
        %4638 = vmatpush1.xpose.msra.mxu0 0.0
        %4639 = vmatprep.subr.mxu0 0.0
        %4640 = vmatpush1.xpose.msra.mxu0 0.0
        %4641 = vmatprep.subr.mxu0 0.0
        %4642 = vmatpush1.xpose.msra.mxu0 0.0
        %4643 = vmatprep.subr.mxu0 0.0
        %4644 = vmatpush1.xpose.msra.mxu0 0.0
        %4645 = vmatprep.subr.mxu0 0.0
        %4646 = vmatpush1.xpose.msra.mxu0 0.0
        %4647 = vmatprep.subr.mxu0 0.0
        %4648 = vmatpush1.xpose.msra.mxu0 0.0
        %4649 = vmatprep.subr.mxu0 0.0
        %4650 = vmatpush1.xpose.msra.mxu0 0.0
        %4651 = vmatprep.subr.mxu0 0.0
        %4652 = vmatpush1.xpose.msra.mxu0 0.0
        %4653 = vmatprep.subr.mxu0 0.0
        %4654 = vmatpush1.xpose.msra.mxu0 0.0
        %4655 = vmatprep.subr.mxu0 0.0
        %4656 = vmatpush1.xpose.msra.mxu0 0.0
        %4657 = vmatprep.subr.mxu0 0.0
        %4658 = vmatpush1.xpose.msra.mxu0 0.0
        %4659 = vmatprep.mubr.f32.mxu0 0.0
        %4660 = vmatmul.mubr.f32.gmra.mrb[0].mxu0 %v4581
        %v4661 = vpop.f32.mrb[0].mxu0
        %v4662 = vadd.f32 0.0, %v4661
        %v4663 = vpop.f32.mrb[0].mxu0
        %4664 = vdwg.mxu0
        %4665 = vrot.lane.b32.xlu0 %v1136, 64
        %v4666 = vpop.permute.xlu0 %4665
        %v4667 = vsel %vm838, %v4666, 0
        %v4670 = vsel %vm838, %v3945, 0
        %v4673 = vsel %vm838, %v3946, 0
        %v4676 = vsel %vm838, %v3947, 0
        %v4679 = vsel %vm838, %v3948, 0
        %4681 = vmatprep.subr.mxu0 0.0
        %4682 = vmatpush1.xpose.msra.mxu0 %v4670
        %4683 = vmatprep.subr.mxu0 0.0
        %4684 = vmatpush1.xpose.msra.mxu0 %v4673
        %4685 = vmatprep.subr.mxu0 0.0
        %4686 = vmatpush1.xpose.msra.mxu0 %v4676
        %4687 = vmatprep.subr.mxu0 0.0
        %4688 = vmatpush1.xpose.msra.mxu0 %v4679
        %4689 = vmatprep.subr.mxu0 0.0
        %4690 = vmatpush1.xpose.msra.mxu0 0.0
        %4691 = vmatprep.subr.mxu0 0.0
        %4692 = vmatpush1.xpose.msra.mxu0 0.0
        %4693 = vmatprep.subr.mxu0 0.0
        %4694 = vmatpush1.xpose.msra.mxu0 0.0
        %4695 = vmatprep.subr.mxu0 0.0
        %4696 = vmatpush1.xpose.msra.mxu0 0.0
        %4697 = vmatprep.subr.mxu0 0.0
        %4698 = vmatpush1.xpose.msra.mxu0 0.0
        %4699 = vmatprep.subr.mxu0 0.0
        %4700 = vmatpush1.xpose.msra.mxu0 0.0
        %4701 = vmatprep.subr.mxu0 0.0
        %4702 = vmatpush1.xpose.msra.mxu0 0.0
        %4703 = vmatprep.subr.mxu0 0.0
        %4704 = vmatpush1.xpose.msra.mxu0 0.0
        %4705 = vmatprep.subr.mxu0 0.0
        %4706 = vmatpush1.xpose.msra.mxu0 0.0
        %4707 = vmatprep.subr.mxu0 0.0
        %4708 = vmatpush1.xpose.msra.mxu0 0.0
        %4709 = vmatprep.subr.mxu0 0.0
        %4710 = vmatpush1.xpose.msra.mxu0 0.0
        %4711 = vmatprep.subr.mxu0 0.0
        %4712 = vmatpush1.xpose.msra.mxu0 0.0
        %4713 = vmatprep.subr.mxu0 0.0
        %4714 = vmatpush1.xpose.msra.mxu0 0.0
        %4715 = vmatprep.subr.mxu0 0.0
        %4716 = vmatpush1.xpose.msra.mxu0 0.0
        %4717 = vmatprep.subr.mxu0 0.0
        %4718 = vmatpush1.xpose.msra.mxu0 0.0
        %4719 = vmatprep.subr.mxu0 0.0
        %4720 = vmatpush1.xpose.msra.mxu0 0.0
        %4721 = vmatprep.subr.mxu0 0.0
        %4722 = vmatpush1.xpose.msra.mxu0 0.0
        %4723 = vmatprep.subr.mxu0 0.0
        %4724 = vmatpush1.xpose.msra.mxu0 0.0
        %4725 = vmatprep.subr.mxu0 0.0
        %4726 = vmatpush1.xpose.msra.mxu0 0.0
        %4727 = vmatprep.subr.mxu0 0.0
        %4728 = vmatpush1.xpose.msra.mxu0 0.0
        %4729 = vmatprep.subr.mxu0 0.0
        %4730 = vmatpush1.xpose.msra.mxu0 0.0
        %4731 = vmatprep.subr.mxu0 0.0
        %4732 = vmatpush1.xpose.msra.mxu0 0.0
        %4733 = vmatprep.subr.mxu0 0.0
        %4734 = vmatpush1.xpose.msra.mxu0 0.0
        %4735 = vmatprep.subr.mxu0 0.0
        %4736 = vmatpush1.xpose.msra.mxu0 0.0
        %4737 = vmatprep.subr.mxu0 0.0
        %4738 = vmatpush1.xpose.msra.mxu0 0.0
        %4739 = vmatprep.subr.mxu0 0.0
        %4740 = vmatpush1.xpose.msra.mxu0 0.0
        %4741 = vmatprep.subr.mxu0 0.0
        %4742 = vmatpush1.xpose.msra.mxu0 0.0
        %4743 = vmatprep.subr.mxu0 0.0
        %4744 = vmatpush1.xpose.msra.mxu0 0.0
        %4745 = vmatprep.mubr.f32.mxu0 0.0
        %4746 = vmatmul.mubr.f32.gmra.mrb[0].mxu0 %v4667
        %v4747 = vpop.f32.mrb[0].mxu0
        %v4748 = vadd.f32 0.0, %v4747
        %v4749 = vpop.f32.mrb[0].mxu0
        %4750 = vdwg.mxu0
        %4751 = vrot.lane.b32.xlu0 %v1137, 64
        %v4752 = vpop.permute.xlu0 %4751
        %v4753 = vsel %vm838, %v4752, 0
        %v4756 = vsel %vm838, %v3949, 0
        %v4759 = vsel %vm838, %v3950, 0
        %v4762 = vsel %vm838, %v3951, 0
        %v4765 = vsel %vm838, %v3952, 0
        %4767 = vmatprep.subr.mxu0 0.0
        %4768 = vmatpush1.xpose.msra.mxu0 %v4756
        %4769 = vmatprep.subr.mxu0 0.0
        %4770 = vmatpush1.xpose.msra.mxu0 %v4759
        %4771 = vmatprep.subr.mxu0 0.0
        %4772 = vmatpush1.xpose.msra.mxu0 %v4762
        %4773 = vmatprep.subr.mxu0 0.0
        %4774 = vmatpush1.xpose.msra.mxu0 %v4765
        %4775 = vmatprep.subr.mxu0 0.0
        %4776 = vmatpush1.xpose.msra.mxu0 0.0
        %4777 = vmatprep.subr.mxu0 0.0
        %4778 = vmatpush1.xpose.msra.mxu0 0.0
        %4779 = vmatprep.subr.mxu0 0.0
        %4780 = vmatpush1.xpose.msra.mxu0 0.0
        %4781 = vmatprep.subr.mxu0 0.0
        %4782 = vmatpush1.xpose.msra.mxu0 0.0
        %4783 = vmatprep.subr.mxu0 0.0
        %4784 = vmatpush1.xpose.msra.mxu0 0.0
        %4785 = vmatprep.subr.mxu0 0.0
        %4786 = vmatpush1.xpose.msra.mxu0 0.0
        %4787 = vmatprep.subr.mxu0 0.0
        %4788 = vmatpush1.xpose.msra.mxu0 0.0
        %4789 = vmatprep.subr.mxu0 0.0
        %4790 = vmatpush1.xpose.msra.mxu0 0.0
        %4791 = vmatprep.subr.mxu0 0.0
        %4792 = vmatpush1.xpose.msra.mxu0 0.0
        %4793 = vmatprep.subr.mxu0 0.0
        %4794 = vmatpush1.xpose.msra.mxu0 0.0
        %4795 = vmatprep.subr.mxu0 0.0
        %4796 = vmatpush1.xpose.msra.mxu0 0.0
        %4797 = vmatprep.subr.mxu0 0.0
        %4798 = vmatpush1.xpose.msra.mxu0 0.0
        %4799 = vmatprep.subr.mxu0 0.0
        %4800 = vmatpush1.xpose.msra.mxu0 0.0
        %4801 = vmatprep.subr.mxu0 0.0
        %4802 = vmatpush1.xpose.msra.mxu0 0.0
        %4803 = vmatprep.subr.mxu0 0.0
        %4804 = vmatpush1.xpose.msra.mxu0 0.0
        %4805 = vmatprep.subr.mxu0 0.0
        %4806 = vmatpush1.xpose.msra.mxu0 0.0
        %4807 = vmatprep.subr.mxu0 0.0
        %4808 = vmatpush1.xpose.msra.mxu0 0.0
        %4809 = vmatprep.subr.mxu0 0.0
        %4810 = vmatpush1.xpose.msra.mxu0 0.0
        %4811 = vmatprep.subr.mxu0 0.0
        %4812 = vmatpush1.xpose.msra.mxu0 0.0
        %4813 = vmatprep.subr.mxu0 0.0
        %4814 = vmatpush1.xpose.msra.mxu0 0.0
        %4815 = vmatprep.subr.mxu0 0.0
        %4816 = vmatpush1.xpose.msra.mxu0 0.0
        %4817 = vmatprep.subr.mxu0 0.0
        %4818 = vmatpush1.xpose.msra.mxu0 0.0
        %4819 = vmatprep.subr.mxu0 0.0
        %4820 = vmatpush1.xpose.msra.mxu0 0.0
        %4821 = vmatprep.subr.mxu0 0.0
        %4822 = vmatpush1.xpose.msra.mxu0 0.0
        %4823 = vmatprep.subr.mxu0 0.0
        %4824 = vmatpush1.xpose.msra.mxu0 0.0
        %4825 = vmatprep.subr.mxu0 0.0
        %4826 = vmatpush1.xpose.msra.mxu0 0.0
        %4827 = vmatprep.subr.mxu0 0.0
        %4828 = vmatpush1.xpose.msra.mxu0 0.0
        %4829 = vmatprep.subr.mxu0 0.0
        %4830 = vmatpush1.xpose.msra.mxu0 0.0
        %4831 = vmatprep.mubr.f32.mxu0 0.0
        %4832 = vmatmul.mubr.f32.gmra.mrb[0].mxu0 %v4753
        %v4833 = vpop.f32.mrb[0].mxu0
        %v4834 = vadd.f32 0.0, %v4833
        %v4835 = vpop.f32.mrb[0].mxu0
        %4836 = vdwg.mxu0
        %4837 = vrot.lane.b32.xlu0 %v1138, 64
        %v4838 = vpop.permute.xlu0 %4837
        %v4839 = vsel %vm838, %v4838, 0
        %v4842 = vsel %vm838, %v3953, 0
        %v4845 = vsel %vm838, %v3954, 0
        %v4848 = vsel %vm838, %v3955, 0
        %v4851 = vsel %vm838, %v3956, 0
        %4853 = vmatprep.subr.mxu0 0.0
        %4854 = vmatpush1.xpose.msra.mxu0 %v4842
        %4855 = vmatprep.subr.mxu0 0.0
        %4856 = vmatpush1.xpose.msra.mxu0 %v4845
        %4857 = vmatprep.subr.mxu0 0.0
        %4858 = vmatpush1.xpose.msra.mxu0 %v4848
        %4859 = vmatprep.subr.mxu0 0.0
        %4860 = vmatpush1.xpose.msra.mxu0 %v4851
        %4861 = vmatprep.subr.mxu0 0.0
        %4862 = vmatpush1.xpose.msra.mxu0 0.0
        %4863 = vmatprep.subr.mxu0 0.0
        %4864 = vmatpush1.xpose.msra.mxu0 0.0
        %4865 = vmatprep.subr.mxu0 0.0
        %4866 = vmatpush1.xpose.msra.mxu0 0.0
        %4867 = vmatprep.subr.mxu0 0.0
        %4868 = vmatpush1.xpose.msra.mxu0 0.0
        %4869 = vmatprep.subr.mxu0 0.0
        %4870 = vmatpush1.xpose.msra.mxu0 0.0
        %4871 = vmatprep.subr.mxu0 0.0
        %4872 = vmatpush1.xpose.msra.mxu0 0.0
        %4873 = vmatprep.subr.mxu0 0.0
        %4874 = vmatpush1.xpose.msra.mxu0 0.0
        %4875 = vmatprep.subr.mxu0 0.0
        %4876 = vmatpush1.xpose.msra.mxu0 0.0
        %4877 = vmatprep.subr.mxu0 0.0
        %4878 = vmatpush1.xpose.msra.mxu0 0.0
        %4879 = vmatprep.subr.mxu0 0.0
        %4880 = vmatpush1.xpose.msra.mxu0 0.0
        %4881 = vmatprep.subr.mxu0 0.0
        %4882 = vmatpush1.xpose.msra.mxu0 0.0
        %4883 = vmatprep.subr.mxu0 0.0
        %4884 = vmatpush1.xpose.msra.mxu0 0.0
        %4885 = vmatprep.subr.mxu0 0.0
        %4886 = vmatpush1.xpose.msra.mxu0 0.0
        %4887 = vmatprep.subr.mxu0 0.0
        %4888 = vmatpush1.xpose.msra.mxu0 0.0
        %4889 = vmatprep.subr.mxu0 0.0
        %4890 = vmatpush1.xpose.msra.mxu0 0.0
        %4891 = vmatprep.subr.mxu0 0.0
        %4892 = vmatpush1.xpose.msra.mxu0 0.0
        %4893 = vmatprep.subr.mxu0 0.0
        %4894 = vmatpush1.xpose.msra.mxu0 0.0
        %4895 = vmatprep.subr.mxu0 0.0
        %4896 = vmatpush1.xpose.msra.mxu0 0.0
        %4897 = vmatprep.subr.mxu0 0.0
        %4898 = vmatpush1.xpose.msra.mxu0 0.0
        %4899 = vmatprep.subr.mxu0 0.0
        %4900 = vmatpush1.xpose.msra.mxu0 0.0
        %4901 = vmatprep.subr.mxu0 0.0
        %4902 = vmatpush1.xpose.msra.mxu0 0.0
        %4903 = vmatprep.subr.mxu0 0.0
        %4904 = vmatpush1.xpose.msra.mxu0 0.0
        %4905 = vmatprep.subr.mxu0 0.0
        %4906 = vmatpush1.xpose.msra.mxu0 0.0
        %4907 = vmatprep.subr.mxu0 0.0
        %4908 = vmatpush1.xpose.msra.mxu0 0.0
        %4909 = vmatprep.subr.mxu0 0.0
        %4910 = vmatpush1.xpose.msra.mxu0 0.0
        %4911 = vmatprep.subr.mxu0 0.0
        %4912 = vmatpush1.xpose.msra.mxu0 0.0
        %4913 = vmatprep.subr.mxu0 0.0
        %4914 = vmatpush1.xpose.msra.mxu0 0.0
        %4915 = vmatprep.subr.mxu0 0.0
        %4916 = vmatpush1.xpose.msra.mxu0 0.0
        %4917 = vmatprep.mubr.f32.mxu0 0.0
        %4918 = vmatmul.mubr.f32.gmra.mrb[0].mxu0 %v4839
        %v4919 = vpop.f32.mrb[0].mxu0
        %v4920 = vadd.f32 0.0, %v4919
        %v4921 = vpop.f32.mrb[0].mxu0
        %4922 = vdwg.mxu0
        %4923 = vrot.lane.b32.xlu0 %v1139, 64
        %v4924 = vpop.permute.xlu0 %4923
        %v4925 = vsel %vm838, %v4924, 0
        %v4928 = vsel %vm838, %v3957, 0
        %v4931 = vsel %vm838, %v3958, 0
        %v4934 = vsel %vm838, %v3959, 0
        %v4937 = vsel %vm838, %v3960, 0
        %4939 = vmatprep.subr.mxu0 0.0
        %4940 = vmatpush1.xpose.msra.mxu0 %v4928
        %4941 = vmatprep.subr.mxu0 0.0
        %4942 = vmatpush1.xpose.msra.mxu0 %v4931
        %4943 = vmatprep.subr.mxu0 0.0
        %4944 = vmatpush1.xpose.msra.mxu0 %v4934
        %4945 = vmatprep.subr.mxu0 0.0
        %4946 = vmatpush1.xpose.msra.mxu0 %v4937
        %4947 = vmatprep.subr.mxu0 0.0
        %4948 = vmatpush1.xpose.msra.mxu0 0.0
        %4949 = vmatprep.subr.mxu0 0.0
        %4950 = vmatpush1.xpose.msra.mxu0 0.0
        %4951 = vmatprep.subr.mxu0 0.0
        %4952 = vmatpush1.xpose.msra.mxu0 0.0
        %4953 = vmatprep.subr.mxu0 0.0
        %4954 = vmatpush1.xpose.msra.mxu0 0.0
        %4955 = vmatprep.subr.mxu0 0.0
        %4956 = vmatpush1.xpose.msra.mxu0 0.0
        %4957 = vmatprep.subr.mxu0 0.0
        %4958 = vmatpush1.xpose.msra.mxu0 0.0
        %4959 = vmatprep.subr.mxu0 0.0
        %4960 = vmatpush1.xpose.msra.mxu0 0.0
        %4961 = vmatprep.subr.mxu0 0.0
        %4962 = vmatpush1.xpose.msra.mxu0 0.0
        %4963 = vmatprep.subr.mxu0 0.0
        %4964 = vmatpush1.xpose.msra.mxu0 0.0
        %4965 = vmatprep.subr.mxu0 0.0
        %4966 = vmatpush1.xpose.msra.mxu0 0.0
        %4967 = vmatprep.subr.mxu0 0.0
        %4968 = vmatpush1.xpose.msra.mxu0 0.0
        %4969 = vmatprep.subr.mxu0 0.0
        %4970 = vmatpush1.xpose.msra.mxu0 0.0
        %4971 = vmatprep.subr.mxu0 0.0
        %4972 = vmatpush1.xpose.msra.mxu0 0.0
        %4973 = vmatprep.subr.mxu0 0.0
        %4974 = vmatpush1.xpose.msra.mxu0 0.0
        %4975 = vmatprep.subr.mxu0 0.0
        %4976 = vmatpush1.xpose.msra.mxu0 0.0
        %4977 = vmatprep.subr.mxu0 0.0
        %4978 = vmatpush1.xpose.msra.mxu0 0.0
        %4979 = vmatprep.subr.mxu0 0.0
        %4980 = vmatpush1.xpose.msra.mxu0 0.0
        %4981 = vmatprep.subr.mxu0 0.0
        %4982 = vmatpush1.xpose.msra.mxu0 0.0
        %4983 = vmatprep.subr.mxu0 0.0
        %4984 = vmatpush1.xpose.msra.mxu0 0.0
        %4985 = vmatprep.subr.mxu0 0.0
        %4986 = vmatpush1.xpose.msra.mxu0 0.0
        %4987 = vmatprep.subr.mxu0 0.0
        %4988 = vmatpush1.xpose.msra.mxu0 0.0
        %4989 = vmatprep.subr.mxu0 0.0
        %4990 = vmatpush1.xpose.msra.mxu0 0.0
        %4991 = vmatprep.subr.mxu0 0.0
        %4992 = vmatpush1.xpose.msra.mxu0 0.0
        %4993 = vmatprep.subr.mxu0 0.0
        %4994 = vmatpush1.xpose.msra.mxu0 0.0
        %4995 = vmatprep.subr.mxu0 0.0
        %4996 = vmatpush1.xpose.msra.mxu0 0.0
        %4997 = vmatprep.subr.mxu0 0.0
        %4998 = vmatpush1.xpose.msra.mxu0 0.0
        %4999 = vmatprep.subr.mxu0 0.0
        %5000 = vmatpush1.xpose.msra.mxu0 0.0
        %5001 = vmatprep.subr.mxu0 0.0
        %5002 = vmatpush1.xpose.msra.mxu0 0.0
        %5003 = vmatprep.mubr.f32.mxu0 0.0
        %5004 = vmatmul.mubr.f32.gmra.mrb[0].mxu0 %v4925
        %v5005 = vpop.f32.mrb[0].mxu0
        %v5006 = vadd.f32 0.0, %v5005
        %v5007 = vpop.f32.mrb[0].mxu0
        %5008 = vdwg.mxu0
        %5009 = vrot.lane.b32.xlu0 %v1140, 64
        %v5010 = vpop.permute.xlu0 %5009
        %v5011 = vsel %vm838, %v5010, 0
        %v5014 = vsel %vm838, %v3961, 0
        %v5017 = vsel %vm838, %v3962, 0
        %v5020 = vsel %vm838, %v3963, 0
        %v5023 = vsel %vm838, %v3964, 0
        %5025 = vmatprep.subr.mxu0 0.0
        %5026 = vmatpush1.xpose.msra.mxu0 %v5014
        %5027 = vmatprep.subr.mxu0 0.0
        %5028 = vmatpush1.xpose.msra.mxu0 %v5017
        %5029 = vmatprep.subr.mxu0 0.0
        %5030 = vmatpush1.xpose.msra.mxu0 %v5020
        %5031 = vmatprep.subr.mxu0 0.0
        %5032 = vmatpush1.xpose.msra.mxu0 %v5023
        %5033 = vmatprep.subr.mxu0 0.0
        %5034 = vmatpush1.xpose.msra.mxu0 0.0
        %5035 = vmatprep.subr.mxu0 0.0
        %5036 = vmatpush1.xpose.msra.mxu0 0.0
        %5037 = vmatprep.subr.mxu0 0.0
        %5038 = vmatpush1.xpose.msra.mxu0 0.0
        %5039 = vmatprep.subr.mxu0 0.0
        %5040 = vmatpush1.xpose.msra.mxu0 0.0
        %5041 = vmatprep.subr.mxu0 0.0
        %5042 = vmatpush1.xpose.msra.mxu0 0.0
        %5043 = vmatprep.subr.mxu0 0.0
        %5044 = vmatpush1.xpose.msra.mxu0 0.0
        %5045 = vmatprep.subr.mxu0 0.0
        %5046 = vmatpush1.xpose.msra.mxu0 0.0
        %5047 = vmatprep.subr.mxu0 0.0
        %5048 = vmatpush1.xpose.msra.mxu0 0.0
        %5049 = vmatprep.subr.mxu0 0.0
        %5050 = vmatpush1.xpose.msra.mxu0 0.0
        %5051 = vmatprep.subr.mxu0 0.0
        %5052 = vmatpush1.xpose.msra.mxu0 0.0
        %5053 = vmatprep.subr.mxu0 0.0
        %5054 = vmatpush1.xpose.msra.mxu0 0.0
        %5055 = vmatprep.subr.mxu0 0.0
        %5056 = vmatpush1.xpose.msra.mxu0 0.0
        %5057 = vmatprep.subr.mxu0 0.0
        %5058 = vmatpush1.xpose.msra.mxu0 0.0
        %5059 = vmatprep.subr.mxu0 0.0
        %5060 = vmatpush1.xpose.msra.mxu0 0.0
        %5061 = vmatprep.subr.mxu0 0.0
        %5062 = vmatpush1.xpose.msra.mxu0 0.0
        %5063 = vmatprep.subr.mxu0 0.0
        %5064 = vmatpush1.xpose.msra.mxu0 0.0
        %5065 = vmatprep.subr.mxu0 0.0
        %5066 = vmatpush1.xpose.msra.mxu0 0.0
        %5067 = vmatprep.subr.mxu0 0.0
        %5068 = vmatpush1.xpose.msra.mxu0 0.0
        %5069 = vmatprep.subr.mxu0 0.0
        %5070 = vmatpush1.xpose.msra.mxu0 0.0
        %5071 = vmatprep.subr.mxu0 0.0
        %5072 = vmatpush1.xpose.msra.mxu0 0.0
        %5073 = vmatprep.subr.mxu0 0.0
        %5074 = vmatpush1.xpose.msra.mxu0 0.0
        %5075 = vmatprep.subr.mxu0 0.0
        %5076 = vmatpush1.xpose.msra.mxu0 0.0
        %5077 = vmatprep.subr.mxu0 0.0
        %5078 = vmatpush1.xpose.msra.mxu0 0.0
        %5079 = vmatprep.subr.mxu0 0.0
        %5080 = vmatpush1.xpose.msra.mxu0 0.0
        %5081 = vmatprep.subr.mxu0 0.0
        %5082 = vmatpush1.xpose.msra.mxu0 0.0
        %5083 = vmatprep.subr.mxu0 0.0
        %5084 = vmatpush1.xpose.msra.mxu0 0.0
        %5085 = vmatprep.subr.mxu0 0.0
        %5086 = vmatpush1.xpose.msra.mxu0 0.0
        %5087 = vmatprep.subr.mxu0 0.0
        %5088 = vmatpush1.xpose.msra.mxu0 0.0
        %5089 = vmatprep.mubr.f32.mxu0 0.0
        %5090 = vmatmul.mubr.f32.gmra.mrb[0].mxu0 %v5011
        %v5091 = vpop.f32.mrb[0].mxu0
        %v5092 = vadd.f32 0.0, %v5091
        %v5093 = vpop.f32.mrb[0].mxu0
        %5094 = vdwg.mxu0
        %5095 = vrot.lane.b32.xlu0 %v1141, 64
        %v5096 = vpop.permute.xlu0 %5095
        %v5097 = vsel %vm838, %v5096, 0
        %v5100 = vsel %vm838, %v3965, 0
        %v5103 = vsel %vm838, %v3966, 0
        %v5106 = vsel %vm838, %v3967, 0
        %v5109 = vsel %vm838, %v3968, 0
        %5111 = vmatprep.subr.mxu0 0.0
        %5112 = vmatpush1.xpose.msra.mxu0 %v5100
        %5113 = vmatprep.subr.mxu0 0.0
        %5114 = vmatpush1.xpose.msra.mxu0 %v5103
        %5115 = vmatprep.subr.mxu0 0.0
        %5116 = vmatpush1.xpose.msra.mxu0 %v5106
        %5117 = vmatprep.subr.mxu0 0.0
        %5118 = vmatpush1.xpose.msra.mxu0 %v5109
        %5119 = vmatprep.subr.mxu0 0.0
        %5120 = vmatpush1.xpose.msra.mxu0 0.0
        %5121 = vmatprep.subr.mxu0 0.0
        %5122 = vmatpush1.xpose.msra.mxu0 0.0
        %5123 = vmatprep.subr.mxu0 0.0
        %5124 = vmatpush1.xpose.msra.mxu0 0.0
        %5125 = vmatprep.subr.mxu0 0.0
        %5126 = vmatpush1.xpose.msra.mxu0 0.0
        %5127 = vmatprep.subr.mxu0 0.0
        %5128 = vmatpush1.xpose.msra.mxu0 0.0
        %5129 = vmatprep.subr.mxu0 0.0
        %5130 = vmatpush1.xpose.msra.mxu0 0.0
        %5131 = vmatprep.subr.mxu0 0.0
        %5132 = vmatpush1.xpose.msra.mxu0 0.0
        %5133 = vmatprep.subr.mxu0 0.0
        %5134 = vmatpush1.xpose.msra.mxu0 0.0
        %5135 = vmatprep.subr.mxu0 0.0
        %5136 = vmatpush1.xpose.msra.mxu0 0.0
        %5137 = vmatprep.subr.mxu0 0.0
        %5138 = vmatpush1.xpose.msra.mxu0 0.0
        %5139 = vmatprep.subr.mxu0 0.0
        %5140 = vmatpush1.xpose.msra.mxu0 0.0
        %5141 = vmatprep.subr.mxu0 0.0
        %5142 = vmatpush1.xpose.msra.mxu0 0.0
        %5143 = vmatprep.subr.mxu0 0.0
        %5144 = vmatpush1.xpose.msra.mxu0 0.0
        %5145 = vmatprep.subr.mxu0 0.0
        %5146 = vmatpush1.xpose.msra.mxu0 0.0
        %5147 = vmatprep.subr.mxu0 0.0
        %5148 = vmatpush1.xpose.msra.mxu0 0.0
        %5149 = vmatprep.subr.mxu0 0.0
        %5150 = vmatpush1.xpose.msra.mxu0 0.0
        %5151 = vmatprep.subr.mxu0 0.0
        %5152 = vmatpush1.xpose.msra.mxu0 0.0
        %5153 = vmatprep.subr.mxu0 0.0
        %5154 = vmatpush1.xpose.msra.mxu0 0.0
        %5155 = vmatprep.subr.mxu0 0.0
        %5156 = vmatpush1.xpose.msra.mxu0 0.0
        %5157 = vmatprep.subr.mxu0 0.0
        %5158 = vmatpush1.xpose.msra.mxu0 0.0
        %5159 = vmatprep.subr.mxu0 0.0
        %5160 = vmatpush1.xpose.msra.mxu0 0.0
        %5161 = vmatprep.subr.mxu0 0.0
        %5162 = vmatpush1.xpose.msra.mxu0 0.0
        %5163 = vmatprep.subr.mxu0 0.0
        %5164 = vmatpush1.xpose.msra.mxu0 0.0
        %5165 = vmatprep.subr.mxu0 0.0
        %5166 = vmatpush1.xpose.msra.mxu0 0.0
        %5167 = vmatprep.subr.mxu0 0.0
        %5168 = vmatpush1.xpose.msra.mxu0 0.0
        %5169 = vmatprep.subr.mxu0 0.0
        %5170 = vmatpush1.xpose.msra.mxu0 0.0
        %5171 = vmatprep.subr.mxu0 0.0
        %5172 = vmatpush1.xpose.msra.mxu0 0.0
        %5173 = vmatprep.subr.mxu0 0.0
        %5174 = vmatpush1.xpose.msra.mxu0 0.0
        %5175 = vmatprep.mubr.f32.mxu0 0.0
        %5176 = vmatmul.mubr.f32.gmra.mrb[0].mxu0 %v5097
        %v5177 = vpop.f32.mrb[0].mxu0
        %v5178 = vadd.f32 0.0, %v5177
        %v5179 = vpop.f32.mrb[0].mxu0
        %5180 = vdwg.mxu0
        %5181 = vrot.lane.b32.xlu0 %v1142, 64
        %v5182 = vpop.permute.xlu0 %5181
        %v5183 = vsel %vm838, %v5182, 0
        %v5186 = vsel %vm838, %v3969, 0
        %v5189 = vsel %vm838, %v3970, 0
        %v5192 = vsel %vm838, %v3971, 0
        %v5195 = vsel %vm838, %v3972, 0
        %5197 = vmatprep.subr.mxu0 0.0
        %5198 = vmatpush1.xpose.msra.mxu0 %v5186
        %5199 = vmatprep.subr.mxu0 0.0
        %5200 = vmatpush1.xpose.msra.mxu0 %v5189
        %5201 = vmatprep.subr.mxu0 0.0
        %5202 = vmatpush1.xpose.msra.mxu0 %v5192
        %5203 = vmatprep.subr.mxu0 0.0
        %5204 = vmatpush1.xpose.msra.mxu0 %v5195
        %5205 = vmatprep.subr.mxu0 0.0
        %5206 = vmatpush1.xpose.msra.mxu0 0.0
        %5207 = vmatprep.subr.mxu0 0.0
        %5208 = vmatpush1.xpose.msra.mxu0 0.0
        %5209 = vmatprep.subr.mxu0 0.0
        %5210 = vmatpush1.xpose.msra.mxu0 0.0
        %5211 = vmatprep.subr.mxu0 0.0
        %5212 = vmatpush1.xpose.msra.mxu0 0.0
        %5213 = vmatprep.subr.mxu0 0.0
        %5214 = vmatpush1.xpose.msra.mxu0 0.0
        %5215 = vmatprep.subr.mxu0 0.0
        %5216 = vmatpush1.xpose.msra.mxu0 0.0
        %5217 = vmatprep.subr.mxu0 0.0
        %5218 = vmatpush1.xpose.msra.mxu0 0.0
        %5219 = vmatprep.subr.mxu0 0.0
        %5220 = vmatpush1.xpose.msra.mxu0 0.0
        %5221 = vmatprep.subr.mxu0 0.0
        %5222 = vmatpush1.xpose.msra.mxu0 0.0
        %5223 = vmatprep.subr.mxu0 0.0
        %5224 = vmatpush1.xpose.msra.mxu0 0.0
        %5225 = vmatprep.subr.mxu0 0.0
        %5226 = vmatpush1.xpose.msra.mxu0 0.0
        %5227 = vmatprep.subr.mxu0 0.0
        %5228 = vmatpush1.xpose.msra.mxu0 0.0
        %5229 = vmatprep.subr.mxu0 0.0
        %5230 = vmatpush1.xpose.msra.mxu0 0.0
        %5231 = vmatprep.subr.mxu0 0.0
        %5232 = vmatpush1.xpose.msra.mxu0 0.0
        %5233 = vmatprep.subr.mxu0 0.0
        %5234 = vmatpush1.xpose.msra.mxu0 0.0
        %5235 = vmatprep.subr.mxu0 0.0
        %5236 = vmatpush1.xpose.msra.mxu0 0.0
        %5237 = vmatprep.subr.mxu0 0.0
        %5238 = vmatpush1.xpose.msra.mxu0 0.0
        %5239 = vmatprep.subr.mxu0 0.0
        %5240 = vmatpush1.xpose.msra.mxu0 0.0
        %5241 = vmatprep.subr.mxu0 0.0
        %5242 = vmatpush1.xpose.msra.mxu0 0.0
        %5243 = vmatprep.subr.mxu0 0.0
        %5244 = vmatpush1.xpose.msra.mxu0 0.0
        %5245 = vmatprep.subr.mxu0 0.0
        %5246 = vmatpush1.xpose.msra.mxu0 0.0
        %5247 = vmatprep.subr.mxu0 0.0
        %5248 = vmatpush1.xpose.msra.mxu0 0.0
        %5249 = vmatprep.subr.mxu0 0.0
        %5250 = vmatpush1.xpose.msra.mxu0 0.0
        %5251 = vmatprep.subr.mxu0 0.0
        %5252 = vmatpush1.xpose.msra.mxu0 0.0
        %5253 = vmatprep.subr.mxu0 0.0
        %5254 = vmatpush1.xpose.msra.mxu0 0.0
        %5255 = vmatprep.subr.mxu0 0.0
        %5256 = vmatpush1.xpose.msra.mxu0 0.0
        %5257 = vmatprep.subr.mxu0 0.0
        %5258 = vmatpush1.xpose.msra.mxu0 0.0
        %5259 = vmatprep.subr.mxu0 0.0
        %5260 = vmatpush1.xpose.msra.mxu0 0.0
        %5261 = vmatprep.mubr.f32.mxu0 0.0
        %5262 = vmatmul.mubr.f32.gmra.mrb[0].mxu0 %v5183
        %v5263 = vpop.f32.mrb[0].mxu0
        %v5264 = vadd.f32 0.0, %v5263
        %v5265 = vpop.f32.mrb[0].mxu0
        %5266 = vdwg.mxu0
        %5267 = vrot.lane.b32.xlu0 %v1143, 64
        %v5268 = vpop.permute.xlu0 %5267
        %v5269 = vsel %vm838, %v5268, 0
        %v5272 = vsel %vm838, %v3973, 0
        %v5275 = vsel %vm838, %v3974, 0
        %v5278 = vsel %vm838, %v3975, 0
        %v5281 = vsel %vm838, %v3976, 0
        %5283 = vmatprep.subr.mxu0 0.0
        %5284 = vmatpush1.xpose.msra.mxu0 %v5272
        %5285 = vmatprep.subr.mxu0 0.0
        %5286 = vmatpush1.xpose.msra.mxu0 %v5275
        %5287 = vmatprep.subr.mxu0 0.0
        %5288 = vmatpush1.xpose.msra.mxu0 %v5278
        %5289 = vmatprep.subr.mxu0 0.0
        %5290 = vmatpush1.xpose.msra.mxu0 %v5281
        %5291 = vmatprep.subr.mxu0 0.0
        %5292 = vmatpush1.xpose.msra.mxu0 0.0
        %5293 = vmatprep.subr.mxu0 0.0
        %5294 = vmatpush1.xpose.msra.mxu0 0.0
        %5295 = vmatprep.subr.mxu0 0.0
        %5296 = vmatpush1.xpose.msra.mxu0 0.0
        %5297 = vmatprep.subr.mxu0 0.0
        %5298 = vmatpush1.xpose.msra.mxu0 0.0
        %5299 = vmatprep.subr.mxu0 0.0
        %5300 = vmatpush1.xpose.msra.mxu0 0.0
        %5301 = vmatprep.subr.mxu0 0.0
        %5302 = vmatpush1.xpose.msra.mxu0 0.0
        %5303 = vmatprep.subr.mxu0 0.0
        %5304 = vmatpush1.xpose.msra.mxu0 0.0
        %5305 = vmatprep.subr.mxu0 0.0
        %5306 = vmatpush1.xpose.msra.mxu0 0.0
        %5307 = vmatprep.subr.mxu0 0.0
        %5308 = vmatpush1.xpose.msra.mxu0 0.0
        %5309 = vmatprep.subr.mxu0 0.0
        %5310 = vmatpush1.xpose.msra.mxu0 0.0
        %5311 = vmatprep.subr.mxu0 0.0
        %5312 = vmatpush1.xpose.msra.mxu0 0.0
        %5313 = vmatprep.subr.mxu0 0.0
        %5314 = vmatpush1.xpose.msra.mxu0 0.0
        %5315 = vmatprep.subr.mxu0 0.0
        %5316 = vmatpush1.xpose.msra.mxu0 0.0
        %5317 = vmatprep.subr.mxu0 0.0
        %5318 = vmatpush1.xpose.msra.mxu0 0.0
        %5319 = vmatprep.subr.mxu0 0.0
        %5320 = vmatpush1.xpose.msra.mxu0 0.0
        %5321 = vmatprep.subr.mxu0 0.0
        %5322 = vmatpush1.xpose.msra.mxu0 0.0
        %5323 = vmatprep.subr.mxu0 0.0
        %5324 = vmatpush1.xpose.msra.mxu0 0.0
        %5325 = vmatprep.subr.mxu0 0.0
        %5326 = vmatpush1.xpose.msra.mxu0 0.0
        %5327 = vmatprep.subr.mxu0 0.0
        %5328 = vmatpush1.xpose.msra.mxu0 0.0
        %5329 = vmatprep.subr.mxu0 0.0
        %5330 = vmatpush1.xpose.msra.mxu0 0.0
        %5331 = vmatprep.subr.mxu0 0.0
        %5332 = vmatpush1.xpose.msra.mxu0 0.0
        %5333 = vmatprep.subr.mxu0 0.0
        %5334 = vmatpush1.xpose.msra.mxu0 0.0
        %5335 = vmatprep.subr.mxu0 0.0
        %5336 = vmatpush1.xpose.msra.mxu0 0.0
        %5337 = vmatprep.subr.mxu0 0.0
        %5338 = vmatpush1.xpose.msra.mxu0 0.0
        %5339 = vmatprep.subr.mxu0 0.0
        %5340 = vmatpush1.xpose.msra.mxu0 0.0
        %5341 = vmatprep.subr.mxu0 0.0
        %5342 = vmatpush1.xpose.msra.mxu0 0.0
        %5343 = vmatprep.subr.mxu0 0.0
        %5344 = vmatpush1.xpose.msra.mxu0 0.0
        %5345 = vmatprep.subr.mxu0 0.0
        %5346 = vmatpush1.xpose.msra.mxu0 0.0
        %5347 = vmatprep.mubr.f32.mxu0 0.0
        %5348 = vmatmul.mubr.f32.gmra.mrb[0].mxu0 %v5269
        %v5349 = vpop.f32.mrb[0].mxu0
        %v5350 = vadd.f32 0.0, %v5349
        %v5351 = vpop.f32.mrb[0].mxu0
        %5352 = vdwg.mxu0
        %v5353 = vxor.u32 %v4060, 2147483648
        %v5354 = vxor.u32 %v4146, 2147483648
        %v5355 = vxor.u32 %v4232, 2147483648
        %v5356 = vxor.u32 %v4318, 2147483648
        %v5357 = vxor.u32 %v4404, 2147483648
        %v5358 = vxor.u32 %v4490, 2147483648
        %v5359 = vxor.u32 %v4576, 2147483648
        %v5360 = vxor.u32 %v4662, 2147483648
        %v5361 = vxor.u32 %v4748, 2147483648
        %v5362 = vxor.u32 %v4834, 2147483648
        %v5363 = vxor.u32 %v4920, 2147483648
        %v5364 = vxor.u32 %v5006, 2147483648
        %v5365 = vxor.u32 %v5092, 2147483648
        %v5366 = vxor.u32 %v5178, 2147483648
        %v5367 = vxor.u32 %v5264, 2147483648
        %v5368 = vxor.u32 %v5350, 2147483648
        %v5369 = vmul.f32 %v5353, 1.442695
        %v5370 = vpow.pop %v5369
        %v5371 = vmul.f32 %v5354, 1.442695
        %v5372 = vpow.pop %v5371
        %v5373 = vmul.f32 %v5355, 1.442695
        %v5374 = vpow.pop %v5373
        %v5375 = vmul.f32 %v5356, 1.442695
        %v5376 = vpow.pop %v5375
        %v5377 = vmul.f32 %v5357, 1.442695
        %v5378 = vpow.pop %v5377
        %v5379 = vmul.f32 %v5358, 1.442695
        %v5380 = vpow.pop %v5379
        %v5381 = vmul.f32 %v5359, 1.442695
        %v5382 = vpow.pop %v5381
        %v5383 = vmul.f32 %v5360, 1.442695
        %v5384 = vpow.pop %v5383
        %v5385 = vmul.f32 %v5361, 1.442695
        %v5386 = vpow.pop %v5385
        %v5387 = vmul.f32 %v5362, 1.442695
        %v5388 = vpow.pop %v5387
        %v5389 = vmul.f32 %v5363, 1.442695
        %v5390 = vpow.pop %v5389
        %v5391 = vmul.f32 %v5364, 1.442695
        %v5392 = vpow.pop %v5391
        %v5393 = vmul.f32 %v5365, 1.442695
        %v5394 = vpow.pop %v5393
        %v5395 = vmul.f32 %v5366, 1.442695
        %v5396 = vpow.pop %v5395
        %v5397 = vmul.f32 %v5367, 1.442695
        %v5398 = vpow.pop %v5397
        %v5399 = vmul.f32 %v5368, 1.442695
        %v5400 = vpow.pop %v5399
        %v5401 = vadd.f32 %v5370, 1.0
        %v5402 = vadd.f32 %v5372, 1.0
        %v5403 = vadd.f32 %v5374, 1.0
        %v5404 = vadd.f32 %v5376, 1.0
        %v5405 = vadd.f32 %v5378, 1.0
        %v5406 = vadd.f32 %v5380, 1.0
        %v5407 = vadd.f32 %v5382, 1.0
        %v5408 = vadd.f32 %v5384, 1.0
        %v5409 = vadd.f32 %v5386, 1.0
        %v5410 = vadd.f32 %v5388, 1.0
        %v5411 = vadd.f32 %v5390, 1.0
        %v5412 = vadd.f32 %v5392, 1.0
        %v5413 = vadd.f32 %v5394, 1.0
        %v5414 = vadd.f32 %v5396, 1.0
        %v5415 = vadd.f32 %v5398, 1.0
        %v5416 = vadd.f32 %v5400, 1.0
        %v5417 = vrcp.pop %v5401
        %v5418 = vmul.f32 1.0, %v5417
        %v5419 = vrcp.pop %v5402
        %v5420 = vmul.f32 1.0, %v5419
        %v5421 = vrcp.pop %v5403
        %v5422 = vmul.f32 1.0, %v5421
        %v5423 = vrcp.pop %v5404
        %v5424 = vmul.f32 1.0, %v5423
        %v5425 = vrcp.pop %v5405
        %v5426 = vmul.f32 1.0, %v5425
        %v5427 = vrcp.pop %v5406
        %v5428 = vmul.f32 1.0, %v5427
        %v5429 = vrcp.pop %v5407
        %v5430 = vmul.f32 1.0, %v5429
        %v5431 = vrcp.pop %v5408
        %v5432 = vmul.f32 1.0, %v5431
        %v5433 = vrcp.pop %v5409
        %v5434 = vmul.f32 1.0, %v5433
        %v5435 = vrcp.pop %v5410
        %v5436 = vmul.f32 1.0, %v5435
        %v5437 = vrcp.pop %v5411
        %v5438 = vmul.f32 1.0, %v5437
        %v5439 = vrcp.pop %v5412
        %v5440 = vmul.f32 1.0, %v5439
        %v5441 = vrcp.pop %v5413
        %v5442 = vmul.f32 1.0, %v5441
        %v5443 = vrcp.pop %v5414
        %v5444 = vmul.f32 1.0, %v5443
        %v5445 = vrcp.pop %v5415
        %v5446 = vmul.f32 1.0, %v5445
        %v5447 = vrcp.pop %v5416
        %v5448 = vmul.f32 1.0, %v5447
        %v5449 = vmul.f32 %v4060, %v5418
        %v5450 = vmul.f32 %v4146, %v5420
        %v5451 = vmul.f32 %v4232, %v5422
        %v5452 = vmul.f32 %v4318, %v5424
        %v5453 = vmul.f32 %v4404, %v5426
        %v5454 = vmul.f32 %v4490, %v5428
        %v5455 = vmul.f32 %v4576, %v5430
        %v5456 = vmul.f32 %v4662, %v5432
        %v5457 = vmul.f32 %v4748, %v5434
        %v5458 = vmul.f32 %v4834, %v5436
        %v5459 = vmul.f32 %v4920, %v5438
        %v5460 = vmul.f32 %v5006, %v5440
        %v5461 = vmul.f32 %v5092, %v5442
        %v5462 = vmul.f32 %v5178, %v5444
        %v5463 = vmul.f32 %v5264, %v5446
        %v5464 = vmul.f32 %v5350, %v5448
        %v5465 = vpack.c.bf16 %v5450, %v5449
        %v5466 = vpack.c.bf16 %v5452, %v5451
        %v5467 = vpack.c.bf16 %v5454, %v5453
        %v5468 = vpack.c.bf16 %v5456, %v5455
        %v5469 = vpack.c.bf16 %v5458, %v5457
        %v5470 = vpack.c.bf16 %v5460, %v5459
        %v5471 = vpack.c.bf16 %v5462, %v5461
        %v5472 = vpack.c.bf16 %v5464, %v5463
        %v5473 = vld [vmem:[#allocation11] sm:$0xf]
        %v5474 = vld [vmem:[#allocation11 + $0x4] sm:$0xf]
        %v5475 = vld [vmem:[#allocation11 + $0x8] sm:$0xf]
        %v5476 = vld [vmem:[#allocation11 + $0xc] sm:$0xf]
        %v5477 = vld [vmem:[#allocation13] sm:$0x1]
        %v5479 = vlaneseq
        %v5480 = vshrl.u32 %v5479, 7
        %v5481 = vsub.s32 0, %v5480
        %v5482 = vrot.slane %v5477, %v5481
        %v5488 = vunpack.c.l.b16 %v5473
        %v5489 = vunpack.c.l.b16 %v5474
        %v5490 = vunpack.c.l.b16 %v5475
        %v5491 = vunpack.c.l.b16 %v5476
        %v5492 = vpack.c.b16 %v5489, %v5488
        %v5493 = vpack.c.b16 %v5491, %v5490
        %v5497 = vsel %vm838, %v5465, 0
        %v5500 = vsel %vm838, %v5466, 0
        %v5503 = vsel %vm838, %v5467, 0
        %v5506 = vsel %vm838, %v5468, 0
        %v5509 = vsel %vm838, %v5469, 0
        %v5512 = vsel %vm838, %v5470, 0
        %v5515 = vsel %vm838, %v5471, 0
        %v5518 = vsel %vm838, %v5472, 0
        %5520 = vmatprep.subr.bf16.mxu0 0
        %5521 = vmatpush1.bf16.msra.mxu0 %v5492
        %5522 = vmatprep.subr.bf16.mxu0 0
        %5523 = vmatpush1.bf16.msra.mxu0 %v5493
        %5524 = vmatprep.subr.bf16.mxu0 0
        %5525 = vmatpush1.bf16.msra.mxu0 0
        %5526 = vmatprep.subr.bf16.mxu0 0
        %5527 = vmatpush1.bf16.msra.mxu0 0
        %5528 = vmatprep.subr.bf16.mxu0 0
        %5529 = vmatpush1.bf16.msra.mxu0 0
        %5530 = vmatprep.subr.bf16.mxu0 0
        %5531 = vmatpush1.bf16.msra.mxu0 0
        %5532 = vmatprep.subr.bf16.mxu0 0
        %5533 = vmatpush1.bf16.msra.mxu0 0
        %5534 = vmatprep.subr.bf16.mxu0 0
        %5535 = vmatpush1.bf16.msra.mxu0 0
        %5536 = vmatprep.subr.bf16.mxu0 0
        %5537 = vmatpush1.bf16.msra.mxu0 0
        %5538 = vmatprep.subr.bf16.mxu0 0
        %5539 = vmatpush1.bf16.msra.mxu0 0
        %5540 = vmatprep.subr.bf16.mxu0 0
        %5541 = vmatpush1.bf16.msra.mxu0 0
        %5542 = vmatprep.subr.bf16.mxu0 0
        %5543 = vmatpush1.bf16.msra.mxu0 0
        %5544 = vmatprep.subr.bf16.mxu0 0
        %5545 = vmatpush1.bf16.msra.mxu0 0
        %5546 = vmatprep.subr.bf16.mxu0 0
        %5547 = vmatpush1.bf16.msra.mxu0 0
        %5548 = vmatprep.subr.bf16.mxu0 0
        %5549 = vmatpush1.bf16.msra.mxu0 0
        %5550 = vmatprep.subr.bf16.mxu0 0
        %5551 = vmatpush1.bf16.msra.mxu0 0
        %5552 = vmatprep.mubr.bf16.mxu0 0
        %5553 = vmatmul.mubr.bf16.gmra.mrb[0].mxu0 %v5497
        %v5554 = vpop.f32.mrb[0].mxu0
        %v5555 = vadd.f32 %v5482, %v5554
        %v5556 = vpop.f32.mrb[0].mxu0
        %v5557 = vpop.f32.mrb[0].mxu0
        %v5558 = vadd.f32 %v5482, %v5557
        %v5559 = vpop.f32.mrb[0].mxu0
        %5560 = vmatprep.mubr.bf16.mxu0 0
        %5561 = vmatmul.mubr.bf16.gmra.mrb[0].mxu0 %v5500
        %v5562 = vpop.f32.mrb[0].mxu0
        %v5563 = vadd.f32 %v5482, %v5562
        %v5564 = vpop.f32.mrb[0].mxu0
        %v5565 = vpop.f32.mrb[0].mxu0
        %v5566 = vadd.f32 %v5482, %v5565
        %v5567 = vpop.f32.mrb[0].mxu0
        %5568 = vmatprep.mubr.bf16.mxu0 0
        %5569 = vmatmul.mubr.bf16.gmra.mrb[0].mxu0 %v5503
        %v5570 = vpop.f32.mrb[0].mxu0
        %v5571 = vadd.f32 %v5482, %v5570
        %v5572 = vpop.f32.mrb[0].mxu0
        %v5573 = vpop.f32.mrb[0].mxu0
        %v5574 = vadd.f32 %v5482, %v5573
        %v5575 = vpop.f32.mrb[0].mxu0
        %5576 = vmatprep.mubr.bf16.mxu0 0
        %5577 = vmatmul.mubr.bf16.gmra.mrb[0].mxu0 %v5506
        %v5578 = vpop.f32.mrb[0].mxu0
        %v5579 = vadd.f32 %v5482, %v5578
        %v5580 = vpop.f32.mrb[0].mxu0
        %v5581 = vpop.f32.mrb[0].mxu0
        %v5582 = vadd.f32 %v5482, %v5581
        %v5583 = vpop.f32.mrb[0].mxu0
        %5584 = vmatprep.mubr.bf16.mxu0 0
        %5585 = vmatmul.mubr.bf16.gmra.mrb[0].mxu0 %v5509
        %v5586 = vpop.f32.mrb[0].mxu0
        %v5587 = vadd.f32 %v5482, %v5586
        %v5588 = vpop.f32.mrb[0].mxu0
        %v5589 = vpop.f32.mrb[0].mxu0
        %v5590 = vadd.f32 %v5482, %v5589
        %v5591 = vpop.f32.mrb[0].mxu0
        %5592 = vmatprep.mubr.bf16.mxu0 0
        %5593 = vmatmul.mubr.bf16.gmra.mrb[0].mxu0 %v5512
        %v5594 = vpop.f32.mrb[0].mxu0
        %v5595 = vadd.f32 %v5482, %v5594
        %v5596 = vpop.f32.mrb[0].mxu0
        %v5597 = vpop.f32.mrb[0].mxu0
        %v5598 = vadd.f32 %v5482, %v5597
        %v5599 = vpop.f32.mrb[0].mxu0
        %5600 = vmatprep.mubr.bf16.mxu0 0
        %5601 = vmatmul.mubr.bf16.gmra.mrb[0].mxu0 %v5515
        %v5602 = vpop.f32.mrb[0].mxu0
        %v5603 = vadd.f32 %v5482, %v5602
        %v5604 = vpop.f32.mrb[0].mxu0
        %v5605 = vpop.f32.mrb[0].mxu0
        %v5606 = vadd.f32 %v5482, %v5605
        %v5607 = vpop.f32.mrb[0].mxu0
        %5608 = vmatprep.mubr.bf16.mxu0 0
        %5609 = vmatmul.mubr.bf16.gmra.mrb[0].mxu0 %v5518
        %v5610 = vpop.f32.mrb[0].mxu0
        %v5611 = vadd.f32 %v5482, %v5610
        %v5612 = vpop.f32.mrb[0].mxu0
        %v5613 = vpop.f32.mrb[0].mxu0
        %v5614 = vadd.f32 %v5482, %v5613
        %v5615 = vpop.f32.mrb[0].mxu0
        %5616 = vdwg.mxu0
        %v5617 = vxor.u32 %v5555, 2147483648
        %v5618 = vxor.u32 %v5558, 2147483648
        %v5619 = vxor.u32 %v5563, 2147483648
        %v5620 = vxor.u32 %v5566, 2147483648
        %v5621 = vxor.u32 %v5571, 2147483648
        %v5622 = vxor.u32 %v5574, 2147483648
        %v5623 = vxor.u32 %v5579, 2147483648
        %v5624 = vxor.u32 %v5582, 2147483648
        %v5625 = vxor.u32 %v5587, 2147483648
        %v5626 = vxor.u32 %v5590, 2147483648
        %v5627 = vxor.u32 %v5595, 2147483648
        %v5628 = vxor.u32 %v5598, 2147483648
        %v5629 = vxor.u32 %v5603, 2147483648
        %v5630 = vxor.u32 %v5606, 2147483648
        %v5631 = vxor.u32 %v5611, 2147483648
        %v5632 = vxor.u32 %v5614, 2147483648
        %v5633 = vmul.f32 %v5617, 1.442695
        %v5634 = vpow.pop %v5633
        %v5635 = vmul.f32 %v5618, 1.442695
        %v5636 = vpow.pop %v5635
        %v5637 = vmul.f32 %v5619, 1.442695
        %v5638 = vpow.pop %v5637
        %v5639 = vmul.f32 %v5620, 1.442695
        %v5640 = vpow.pop %v5639
        %v5641 = vmul.f32 %v5621, 1.442695
        %v5642 = vpow.pop %v5641
        %v5643 = vmul.f32 %v5622, 1.442695
        %v5644 = vpow.pop %v5643
        %v5645 = vmul.f32 %v5623, 1.442695
        %v5646 = vpow.pop %v5645
        %v5647 = vmul.f32 %v5624, 1.442695
        %v5648 = vpow.pop %v5647
        %v5649 = vmul.f32 %v5625, 1.442695
        %v5650 = vpow.pop %v5649
        %v5651 = vmul.f32 %v5626, 1.442695
        %v5652 = vpow.pop %v5651
        %v5653 = vmul.f32 %v5627, 1.442695
        %v5654 = vpow.pop %v5653
        %v5655 = vmul.f32 %v5628, 1.442695
        %v5656 = vpow.pop %v5655
        %v5657 = vmul.f32 %v5629, 1.442695
        %v5658 = vpow.pop %v5657
        %v5659 = vmul.f32 %v5630, 1.442695
        %v5660 = vpow.pop %v5659
        %v5661 = vmul.f32 %v5631, 1.442695
        %v5662 = vpow.pop %v5661
        %v5663 = vmul.f32 %v5632, 1.442695
        %v5664 = vpow.pop %v5663
        %v5665 = vadd.f32 %v5634, 1.0
        %v5666 = vadd.f32 %v5636, 1.0
        %v5667 = vadd.f32 %v5638, 1.0
        %v5668 = vadd.f32 %v5640, 1.0
        %v5669 = vadd.f32 %v5642, 1.0
        %v5670 = vadd.f32 %v5644, 1.0
        %v5671 = vadd.f32 %v5646, 1.0
        %v5672 = vadd.f32 %v5648, 1.0
        %v5673 = vadd.f32 %v5650, 1.0
        %v5674 = vadd.f32 %v5652, 1.0
        %v5675 = vadd.f32 %v5654, 1.0
        %v5676 = vadd.f32 %v5656, 1.0
        %v5677 = vadd.f32 %v5658, 1.0
        %v5678 = vadd.f32 %v5660, 1.0
        %v5679 = vadd.f32 %v5662, 1.0
        %v5680 = vadd.f32 %v5664, 1.0
        %v5681 = vrcp.pop %v5665
        %v5682 = vmul.f32 1.0, %v5681
        %v5683 = vrcp.pop %v5666
        %v5684 = vmul.f32 1.0, %v5683
        %v5685 = vrcp.pop %v5667
        %v5686 = vmul.f32 1.0, %v5685
        %v5687 = vrcp.pop %v5668
        %v5688 = vmul.f32 1.0, %v5687
        %v5689 = vrcp.pop %v5669
        %v5690 = vmul.f32 1.0, %v5689
        %v5691 = vrcp.pop %v5670
        %v5692 = vmul.f32 1.0, %v5691
        %v5693 = vrcp.pop %v5671
        %v5694 = vmul.f32 1.0, %v5693
        %v5695 = vrcp.pop %v5672
        %v5696 = vmul.f32 1.0, %v5695
        %v5697 = vrcp.pop %v5673
        %v5698 = vmul.f32 1.0, %v5697
        %v5699 = vrcp.pop %v5674
        %v5700 = vmul.f32 1.0, %v5699
        %v5701 = vrcp.pop %v5675
        %v5702 = vmul.f32 1.0, %v5701
        %v5703 = vrcp.pop %v5676
        %v5704 = vmul.f32 1.0, %v5703
        %v5705 = vrcp.pop %v5677
        %v5706 = vmul.f32 1.0, %v5705
        %v5707 = vrcp.pop %v5678
        %v5708 = vmul.f32 1.0, %v5707
        %v5709 = vrcp.pop %v5679
        %v5710 = vmul.f32 1.0, %v5709
        %v5711 = vrcp.pop %v5680
        %v5712 = vmul.f32 1.0, %v5711
        %v5713 = vmul.f32 %v5555, %v5682
        %v5714 = vmul.f32 %v5558, %v5684
        %v5715 = vmul.f32 %v5563, %v5686
        %v5716 = vmul.f32 %v5566, %v5688
        %v5717 = vmul.f32 %v5571, %v5690
        %v5718 = vmul.f32 %v5574, %v5692
        %v5719 = vmul.f32 %v5579, %v5694
        %v5720 = vmul.f32 %v5582, %v5696
        %v5721 = vmul.f32 %v5587, %v5698
        %v5722 = vmul.f32 %v5590, %v5700
        %v5723 = vmul.f32 %v5595, %v5702
        %v5724 = vmul.f32 %v5598, %v5704
        %v5725 = vmul.f32 %v5603, %v5706
        %v5726 = vmul.f32 %v5606, %v5708
        %v5727 = vmul.f32 %v5611, %v5710
        %v5728 = vmul.f32 %v5614, %v5712
        %v5729 = vmul.f32 %v5713, %v741
        %v5730 = vmul.f32 %v5714, %v746
        %v5731 = vmul.f32 %v5715, %v751
        %v5732 = vmul.f32 %v5716, %v756
        %v5733 = vmul.f32 %v5717, %v761
        %v5734 = vmul.f32 %v5718, %v766
        %v5735 = vmul.f32 %v5719, %v771
        %v5736 = vmul.f32 %v5720, %v776
        %v5737 = vmul.f32 %v5721, %v781
        %v5738 = vmul.f32 %v5722, %v786
        %v5739 = vmul.f32 %v5723, %v791
        %v5740 = vmul.f32 %v5724, %v796
        %v5741 = vmul.f32 %v5725, %v801
        %v5742 = vmul.f32 %v5726, %v806
        %v5743 = vmul.f32 %v5727, %v811
        %v5744 = vmul.f32 %v5728, %v816
        %vm5745 = vcmask 130048
        %v5746 = vsel %vm5745, %v5729, 0.0
        %v5747 = vrot.slane %v5746, 4
        %v5748 = vadd.f32 %v5746, %v5747
        %v5749 = vrot.slane %v5748, 2
        %v5750 = vadd.f32 %v5748, %v5749
        %v5751 = vrot.slane %v5750, 1
        %v5752 = vadd.f32 %v5750, %v5751
        %v5753 = vsel %vm5745, %v5730, 0.0
        %v5754 = vrot.slane %v5753, 4
        %v5755 = vadd.f32 %v5753, %v5754
        %v5756 = vrot.slane %v5755, 2
        %v5757 = vadd.f32 %v5755, %v5756
        %v5758 = vrot.slane %v5757, 1
        %v5759 = vadd.f32 %v5757, %v5758
        %v5760 = vsel %vm5745, %v5731, 0.0
        %v5761 = vrot.slane %v5760, 4
        %v5762 = vadd.f32 %v5760, %v5761
        %v5763 = vrot.slane %v5762, 2
        %v5764 = vadd.f32 %v5762, %v5763
        %v5765 = vrot.slane %v5764, 1
        %v5766 = vadd.f32 %v5764, %v5765
        %v5767 = vsel %vm5745, %v5732, 0.0
        %v5768 = vrot.slane %v5767, 4
        %v5769 = vadd.f32 %v5767, %v5768
        %v5770 = vrot.slane %v5769, 2
        %v5771 = vadd.f32 %v5769, %v5770
        %v5772 = vrot.slane %v5771, 1
        %v5773 = vadd.f32 %v5771, %v5772
        %v5774 = vsel %vm5745, %v5733, 0.0
        %v5775 = vrot.slane %v5774, 4
        %v5776 = vadd.f32 %v5774, %v5775
        %v5777 = vrot.slane %v5776, 2
        %v5778 = vadd.f32 %v5776, %v5777
        %v5779 = vrot.slane %v5778, 1
        %v5780 = vadd.f32 %v5778, %v5779
        %v5781 = vsel %vm5745, %v5734, 0.0
        %v5782 = vrot.slane %v5781, 4
        %v5783 = vadd.f32 %v5781, %v5782
        %v5784 = vrot.slane %v5783, 2
        %v5785 = vadd.f32 %v5783, %v5784
        %v5786 = vrot.slane %v5785, 1
        %v5787 = vadd.f32 %v5785, %v5786
        %v5788 = vsel %vm5745, %v5735, 0.0
        %v5789 = vrot.slane %v5788, 4
        %v5790 = vadd.f32 %v5788, %v5789
        %v5791 = vrot.slane %v5790, 2
        %v5792 = vadd.f32 %v5790, %v5791
        %v5793 = vrot.slane %v5792, 1
        %v5794 = vadd.f32 %v5792, %v5793
        %v5795 = vsel %vm5745, %v5736, 0.0
        %v5796 = vrot.slane %v5795, 4
        %v5797 = vadd.f32 %v5795, %v5796
        %v5798 = vrot.slane %v5797, 2
        %v5799 = vadd.f32 %v5797, %v5798
        %v5800 = vrot.slane %v5799, 1
        %v5801 = vadd.f32 %v5799, %v5800
        %v5802 = vsel %vm5745, %v5737, 0.0
        %v5803 = vrot.slane %v5802, 4
        %v5804 = vadd.f32 %v5802, %v5803
        %v5805 = vrot.slane %v5804, 2
        %v5806 = vadd.f32 %v5804, %v5805
        %v5807 = vrot.slane %v5806, 1
        %v5808 = vadd.f32 %v5806, %v5807
        %v5809 = vsel %vm5745, %v5738, 0.0
        %v5810 = vrot.slane %v5809, 4
        %v5811 = vadd.f32 %v5809, %v5810
        %v5812 = vrot.slane %v5811, 2
        %v5813 = vadd.f32 %v5811, %v5812
        %v5814 = vrot.slane %v5813, 1
        %v5815 = vadd.f32 %v5813, %v5814
        %v5816 = vsel %vm5745, %v5739, 0.0
        %v5817 = vrot.slane %v5816, 4
        %v5818 = vadd.f32 %v5816, %v5817
        %v5819 = vrot.slane %v5818, 2
        %v5820 = vadd.f32 %v5818, %v5819
        %v5821 = vrot.slane %v5820, 1
        %v5822 = vadd.f32 %v5820, %v5821
        %v5823 = vsel %vm5745, %v5740, 0.0
        %v5824 = vrot.slane %v5823, 4
        %v5825 = vadd.f32 %v5823, %v5824
        %v5826 = vrot.slane %v5825, 2
        %v5827 = vadd.f32 %v5825, %v5826
        %v5828 = vrot.slane %v5827, 1
        %v5829 = vadd.f32 %v5827, %v5828
        %v5830 = vsel %vm5745, %v5741, 0.0
        %v5831 = vrot.slane %v5830, 4
        %v5832 = vadd.f32 %v5830, %v5831
        %v5833 = vrot.slane %v5832, 2
        %v5834 = vadd.f32 %v5832, %v5833
        %v5835 = vrot.slane %v5834, 1
        %v5836 = vadd.f32 %v5834, %v5835
        %v5837 = vsel %vm5745, %v5742, 0.0
        %v5838 = vrot.slane %v5837, 4
        %v5839 = vadd.f32 %v5837, %v5838
        %v5840 = vrot.slane %v5839, 2
        %v5841 = vadd.f32 %v5839, %v5840
        %v5842 = vrot.slane %v5841, 1
        %v5843 = vadd.f32 %v5841, %v5842
        %v5844 = vsel %vm5745, %v5743, 0.0
        %v5845 = vrot.slane %v5844, 4
        %v5846 = vadd.f32 %v5844, %v5845
        %v5847 = vrot.slane %v5846, 2
        %v5848 = vadd.f32 %v5846, %v5847
        %v5849 = vrot.slane %v5848, 1
        %v5850 = vadd.f32 %v5848, %v5849
        %v5851 = vsel %vm5745, %v5744, 0.0
        %v5852 = vrot.slane %v5851, 4
        %v5853 = vadd.f32 %v5851, %v5852
        %v5854 = vrot.slane %v5853, 2
        %v5855 = vadd.f32 %v5853, %v5854
        %v5856 = vrot.slane %v5855, 1
        %v5857 = vadd.f32 %v5855, %v5856
        %v5858 = vrcp.pop 8.0
        %v5859 = vmul.f32 %v5752, %v5858
        %v5860 = vmul.f32 %v5759, %v5858
        %v5861 = vmul.f32 %v5766, %v5858
        %v5862 = vmul.f32 %v5773, %v5858
        %v5863 = vmul.f32 %v5780, %v5858
        %v5864 = vmul.f32 %v5787, %v5858
        %v5865 = vmul.f32 %v5794, %v5858
        %v5866 = vmul.f32 %v5801, %v5858
        %v5867 = vmul.f32 %v5808, %v5858
        %v5868 = vmul.f32 %v5815, %v5858
        %v5869 = vmul.f32 %v5822, %v5858
        %v5870 = vmul.f32 %v5829, %v5858
        %v5871 = vmul.f32 %v5836, %v5858
        %v5872 = vmul.f32 %v5843, %v5858
        %v5873 = vmul.f32 %v5850, %v5858
        %v5874 = vmul.f32 %v5857, %v5858
        %vm5891 = vcmask 1041409
        %v5892 = vsel %vm5891, %v5860, %v5859
        %vm5893 = vcmask 1042434
        %v5894 = vsel %vm5893, %v5861, %v5892
        %vm5895 = vcmask 1043459
        %v5896 = vsel %vm5895, %v5862, %v5894
        %vm5897 = vcmask 1044484
        %v5898 = vsel %vm5897, %v5863, %v5896
        %vm5899 = vcmask 1045509
        %v5900 = vsel %vm5899, %v5864, %v5898
        %vm5901 = vcmask 1046534
        %v5902 = vsel %vm5901, %v5865, %v5900
        %vm5903 = vcmask 1047559
        %v5904 = vsel %vm5903, %v5866, %v5902
        %v5905 = vsel %vm5891, %v5868, %v5867
        %v5906 = vsel %vm5893, %v5869, %v5905
        %v5907 = vsel %vm5895, %v5870, %v5906
        %v5908 = vsel %vm5897, %v5871, %v5907
        %v5909 = vsel %vm5899, %v5872, %v5908
        %v5910 = vsel %vm5901, %v5873, %v5909
        %v5911 = vsel %vm5903, %v5874, %v5910
        %5914 = vst.msk [vmem:[%s404] sm:$0xff] %vm5745, %v5904
        %5915 = vst.msk [vmem:[%s404 + $0x8] sm:$0xff] %vm5745, %v5911
        %s5916 = sand.u32 %s194, 1
        %s5917 = scalar_lea.sflag [#allocation4], %s5916
        %s5918 = sand.u32 %s194, 1
        %s5919 = smul.addr %s5918, 16
        %s5920 = scalar_lea.vmem [#allocation14], %s5919
        // Predicated region
        $region77: #{tpu_custom_call.1} parent=47 // pred_check
          %p5921 = pneg %p204
        $region78: #{tpu_custom_call.1} parent=47 // pred_check_branch
          %5923 = sbr.rel (%p5921) target = $region80
        $region79: #{tpu_custom_call.1} parent=47 // pred_region
          %s5924 = smul.u32 2, %s29
          %s5926 = ssub.s32 256, 256
          %5927 = vsyncadd %s5917, %s5926
          %s5928 = smul.addr %s5924, 128
          %s5929 = scalar_lea.hbm %s7, %s5928
          %s5930 = sshll.u32 %s5920, 4
          %s5931 = int_to_ptr.vmem [resolvable:$true] %s5930
          %5936 = dma.vmem_to_hbm [thread:$0]  %s5931, 256, %s5929, %s5917, 128, 128, 8
        $region80: #{tpu_custom_call.1} parent=47 // pred_fallthru
          _
      $region48: #{tpu_custom_call.1} parent=5 // pred_fallthru
        _
      %p5937 = scmp.le.s32.totalorder 2, %s24
      // Predicated region
      $region81: #{tpu_custom_call.1} parent=5 // pred_check
        %p5938 = pneg %p5937
      $region82: #{tpu_custom_call.1} parent=5 // pred_check_branch
        %5940 = sbr.rel (%p5938) target = $region84
      $region83: #{tpu_custom_call.1} parent=5 // pred_region
        %s5941 = ssub.s32 %s24, 2
        // Predicated region
        $region85: #{tpu_custom_call.1} parent=83 // pred_check
          %p5942 = pneg %p210
        $region86: #{tpu_custom_call.1} parent=83 // pred_check_branch
          %5944 = sbr.rel (%p5942) target = $region88
        $region87: #{tpu_custom_call.1} parent=83 // pred_region
          %s5945 = sand.u32 %s195, 1
          %s5946 = scalar_lea.sflag [#allocation4], %s5945
          %s5947 = sand.u32 %s195, 1
          %s5948 = smul.addr %s5947, 16
          %s5949 = scalar_lea.vmem [#allocation14], %s5948
          %5950 = dma.done %s5946, 256
        $region88: #{tpu_custom_call.1} parent=83 // pred_fallthru
          _
      $region84: #{tpu_custom_call.1} parent=5 // pred_fallthru
        _
    $region6: #{tpu_custom_call.1} parent=1 // loop_footer
      %s28 = sadd.s32 1, %s24
    $region7: #{tpu_custom_call.1} parent=1 // loop_footer_branch
      %23 = sbr.rel target = $region3
    $region8: #{tpu_custom_call.1} parent=1 // loop_exit
      _
    %5951 = vsyncpa [#allocation3], 1
    %s5952 = scalar_lea.sflag [#allocation3], 1
    %5953 = vsyncpa %s5952, 1
    %5954 = vsyncpa [#allocation6], 1
    %s5955 = scalar_lea.sflag [#allocation6], 1
    %5956 = vsyncpa %s5955, 1
    %5957 = vsyncpa [#allocation9], 1
    %5958 = vsyncpa [#allocation12], 1
    %5959 = vsyncpa [#allocation4], 1
    %s5960 = scalar_lea.sflag [#allocation4], 1
    %5961 = vsyncpa %s5960, 1

</llo_original>
